<compile_context>
chip_gen: v6e
topology: v6e:2x2x1
jax: 0.10.0
libtpu: 0.0.40
codegen_flags: <defaults>
</compile_context>

<pallas_src>
import math

import jax
import jax.numpy as jnp
from jax.experimental import pallas as pl
from jax.experimental.pallas import tpu as pltpu

_INV_SQRT2 = 0.7071067811865476


def _erf_approx(x):
    # Abramowitz & Stegun 7.1.26 rational approximation, |err| <= 1.5e-7.
    # Deliberate deviation: PyTorch nn.GELU() uses exact erf; lax.erf may not
    # lower in Mosaic, so we use this near-exact polynomial inside the kernel.
    p = 0.3275911
    a1, a2, a3, a4, a5 = (0.254829592, -0.284496736, 1.421413741,
                          -1.453152027, 1.061405429)
    ax = jnp.abs(x)
    t = 1.0 / (1.0 + p * ax)            # exact divide (approx recip lost 1e-3)
    poly = ((((a5 * t + a4) * t + a3) * t + a2) * t + a1) * t
    y = 1.0 - poly * jnp.exp(-ax * ax)
    return jnp.where(x >= 0.0, y, -y)


def _gelu_exact(x):
    return 0.5 * x * (1.0 + _erf_approx(x * _INV_SQRT2))


# ----------------------------------------------------------------------------
# Tile-size / VMEM helpers
# ----------------------------------------------------------------------------
def _largest_div_tile_128(n, cap):
    """Largest multiple-of-128 divisor of n (n % 128 == 0) that is <= cap."""
    best = 128
    t = 128
    stop = min(n, cap)
    while t <= stop:
        if n % t == 0:
            best = t
        t += 128
    return best


def _pick_spatial_tile(n_pad, c, batch):
    """Spatial tile (columns) for the pointwise kernels.  n_pad % 128 == 0.

    Budget ~1 MiB per array per tile: with 3 data arrays x 2 pipeline buffers
    the per-step working set stays well under v5e's 16 MiB scoped VMEM and
    v7x's 32 MiB, while >=1024-wide tiles already sit near the HBM roofline.
    """
    per_col = 4 * c
    cap = (1 << 20) // per_col
    cap = max(128, min(8192, (cap // 128) * 128))
    if batch == 1 and n_pad >= 256:
        # keep >= 2 parallel grid steps so both v7x TensorCores get work
        cap = max(128, min(cap, (n_pad // 256) * 128))
    if n_pad <= cap:
        return n_pad
    return _largest_div_tile_128(n_pad, cap)


def _pick_mode_tile(m, bytes_per_m, budget):
    """Largest divisor of m whose double-buffered tile fits `budget` bytes.

    No forced >=2-step split: on single-TC chips (v5e/v6e) splitting a fully
    VMEM-resident problem only adds per-step pipeline overhead.
    """
    cap = max(1, budget // max(2 * bytes_per_m, 1))   # x2: double buffering
    best = 1
    for d in range(1, m + 1):
        if m % d == 0 and d <= cap:
            best = d
    return best


def _clamp_vmem_limit(needed_bytes):
    # Explicit limit: plenty of margin above the tiles, but within every
    # generation's safe scoped-VMEM range (v5e default 16 MiB, v6e/v7x 32 MiB).
    return int(min(max(4 * needed_bytes, 16 << 20), 32 << 20))


# ----------------------------------------------------------------------------
# Kernel 1: stacked real batched matmul for the complex spectral multiply
#   out[m, b, :] = x_cat[m, b, :] @ w_cat[m, :, :]
#   x_cat = [xr | xi]                     (M, B, 2Cin)
#   w_cat = [[wr, wi], [-wi, wr]]         (M, 2Cin, 2Cout)  (pre-transposed)
#   out[..., :Cout] = real part, out[..., Cout:] = imag part
# ----------------------------------------------------------------------------
def _spectral_mul_kernel(x_ref, w_ref, o_ref):
    o_ref[...] = jnp.einsum("mbc,mco->mbo", x_ref[...], w_ref[...],
                            preferred_element_type=jnp.float32)


def _spectral_multiply(x_cat, w_cat):
    M, B, C2i = x_cat.shape
    C2o = w_cat.shape[2]
    bytes_per_m = 4 * (B * C2i + C2i * C2o + B * C2o)
    tm = _pick_mode_tile(M, bytes_per_m, budget=8 << 20)
    vmem_limit = _clamp_vmem_limit(2 * tm * bytes_per_m)
    return pl.pallas_call(
        _spectral_mul_kernel,
        out_shape=jax.ShapeDtypeStruct((M, B, C2o), jnp.float32),
        grid_spec=pltpu.PrefetchScalarGridSpec(
            num_scalar_prefetch=0,
            grid=(M // tm,),
            in_specs=[pl.BlockSpec((tm, B, C2i), lambda i: (i, 0, 0)),
                      pl.BlockSpec((tm, C2i, C2o), lambda i: (i, 0, 0))],
            out_specs=pl.BlockSpec((tm, B, C2o), lambda i: (i, 0, 0))),
        compiler_params=pltpu.CompilerParams(
            dimension_semantics=("parallel",),
            vmem_limit_bytes=vmem_limit),
    )(x_cat, w_cat)


# ----------------------------------------------------------------------------
# Kernel 2: y = spec + W @ x + b in lane-dense (C, n_tile) layout,
#           plus per-tile partial per-channel (sum, sum-of-squares) packed
#           into a single (C, 2) output (partials reduced in JAX glue ->
#           fully parallel grid, megacore friendly)
# ----------------------------------------------------------------------------
def _conv_add_stats_kernel(x_ref, s_ref, w_ref, b_ref, y_ref, stat_ref):
    y = (s_ref[...]
         + jnp.dot(w_ref[...], x_ref[...], preferred_element_type=jnp.float32)
         + b_ref[...])
    y_ref[...] = y
    stat_ref[...] = jnp.concatenate(
        [jnp.sum(y, axis=1, keepdims=True),
         jnp.sum(y * y, axis=1, keepdims=True)], axis=1)


def _conv_add_stats(x3, s3, w, bias_col, *, tile_n, vmem_limit):
    B, C, N = x3.shape
    num_n = N // tile_n
    data_spec = pl.BlockSpec((None, C, tile_n), lambda b, n: (b, 0, n))
    stat_spec = pl.BlockSpec((None, None, C, 2), lambda b, n: (b, n, 0, 0))
    return pl.pallas_call(
        _conv_add_stats_kernel,
        out_shape=(jax.ShapeDtypeStruct((B, C, N), jnp.float32),
                   jax.ShapeDtypeStruct((B, num_n, C, 2), jnp.float32)),
        grid_spec=pltpu.PrefetchScalarGridSpec(
            num_scalar_prefetch=0,
            grid=(B, num_n),
            in_specs=[data_spec, data_spec,
                      pl.BlockSpec((C, C), lambda b, n: (0, 0)),
                      pl.BlockSpec((C, 1), lambda b, n: (0, 0))],
            out_specs=(data_spec, stat_spec)),
        compiler_params=pltpu.CompilerParams(
            dimension_semantics=("parallel", "parallel"),
            vmem_limit_bytes=vmem_limit),
    )(x3, s3, w, bias_col)


# ----------------------------------------------------------------------------
# Kernel 3: BatchNorm (precomputed per-channel scale/shift) + exact-GELU
# ----------------------------------------------------------------------------
def _bn_gelu_kernel(y_ref, sc_ref, sh_ref, o_ref):
    z = y_ref[...] * sc_ref[...] + sh_ref[...]
    o_ref[...] = _gelu_exact(z)


def _bn_gelu(y3, scale_col, shift_col, *, tile_n, vmem_limit):
    B, C, N = y3.shape
    data_spec = pl.BlockSpec((None, C, tile_n), lambda b, n: (b, 0, n))
    vec_spec = pl.BlockSpec((C, 1), lambda b, n: (0, 0))
    return pl.pallas_call(
        _bn_gelu_kernel,
        out_shape=jax.ShapeDtypeStruct((B, C, N), jnp.float32),
        grid_spec=pltpu.PrefetchScalarGridSpec(
            num_scalar_prefetch=0,
            grid=(B, N // tile_n),
            in_specs=[data_spec, vec_spec, vec_spec],
            out_specs=data_spec),
        compiler_params=pltpu.CompilerParams(
            dimension_semantics=("parallel", "parallel"),
            vmem_limit_bytes=vmem_limit),
    )(y3, scale_col, shift_col)


# ----------------------------------------------------------------------------
# Spectral conv 2d: FFT in JAX (glue), mode-mixing matmul in Pallas
# ----------------------------------------------------------------------------
def prepare_spectral_weight(params, modes):
    """Parameter-prep (hoisted out of the forward): stacked real weight,
    shape (M, 2Cin, 2Cout), laid out so the in-kernel contraction is a plain
    non-transposed batched matmul."""
    C = params["w1_r"].shape[0]
    M = 2 * modes * modes
    wr = jnp.concatenate([params["w1_r"], params["w2_r"]], axis=2)   # (Ci,Co,2m,m)
    wi = jnp.concatenate([params["w1_i"], params["w2_i"]], axis=2)
    wr = jnp.transpose(wr, (2, 3, 0, 1)).reshape(M, C, C)            # (M,Cin,Cout)
    wi = jnp.transpose(wi, (2, 3, 0, 1)).reshape(M, C, C)
    w_cat = jnp.concatenate(
        [jnp.concatenate([wr, wi], axis=-1),      # rows fed by Re(x)
         jnp.concatenate([-wi, wr], axis=-1)],    # rows fed by Im(x)
        axis=1).astype(jnp.float32)               # (M, 2Cin, 2Cout)
    return w_cat


def _spectral_conv2d(x, w_cat, modes):
    B, C, H, W = x.shape
    Wf = W // 2 + 1
    # TODO(synk): rfft2/irfft2 have no Pallas equivalent; done in plain JAX.
    x_ft = jnp.fft.rfft2(x, axes=(-2, -1))                     # (B, C, H, Wf)
    low = x_ft[:, :, :modes, :modes]
    high = x_ft[:, :, H - modes:, :modes]
    xm = jnp.concatenate([low, high], axis=2)                  # (B, C, 2m, m)
    M = 2 * modes * modes
    xm = jnp.transpose(xm, (2, 3, 0, 1)).reshape(M, B, C)      # (M, B, Cin) complex
    x_cat = jnp.concatenate(
        [jnp.real(xm), jnp.imag(xm)], axis=-1).astype(jnp.float32)  # (M, B, 2Cin)

    out = _spectral_multiply(x_cat, w_cat)                     # (M, B, 2Cout)
    out_r, out_i = out[..., :C], out[..., C:]
    out_r = jnp.transpose(out_r.reshape(2 * modes, modes, B, C), (2, 3, 0, 1))
    out_i = jnp.transpose(out_i.reshape(2 * modes, modes, B, C), (2, 3, 0, 1))
    out_c = jax.lax.complex(out_r, out_i)                      # (B, Co, 2m, m)

    out_ft = jnp.zeros((B, C, H, Wf), dtype=x_ft.dtype)
    out_ft = out_ft.at[:, :, :modes, :modes].set(out_c[:, :, :modes, :])
    out_ft = out_ft.at[:, :, H - modes:, :modes].set(out_c[:, :, modes:, :])
    return jnp.fft.irfft2(out_ft, s=(H, W), axes=(-2, -1))


# ----------------------------------------------------------------------------
# FNOBlock forward
# ----------------------------------------------------------------------------
def fno_block_forward(x, params, *, modes, eps=1e-5):
    B, C, H, W = x.shape
    w_cat = params.get("spec_w_cat")
    if w_cat is None:                    # fallback; prefer prepare_spectral_weight once
        w_cat = prepare_spectral_weight(params, modes)
    spec = _spectral_conv2d(x, w_cat, modes)

    N = H * W
    n_pad = (-N) % 128                   # pad spatial axis to a multiple of 128
    N_pad = N + n_pad

    # (B, C, H, W) -> (B, C, H*W) is a free reshape: no NCHW<->NHWC transposes.
    x3 = x.reshape(B, C, N).astype(jnp.float32)
    s3 = spec.reshape(B, C, N).astype(jnp.float32)
    if n_pad:
        x3 = jnp.pad(x3, ((0, 0), (0, 0), (0, n_pad)))
        s3 = jnp.pad(s3, ((0, 0), (0, 0), (0, n_pad)))

    tile_n = _pick_spatial_tile(N_pad, C, B)
    tile_bytes = 4 * C * tile_n
    vmem_limit = _clamp_vmem_limit(3 * 2 * tile_bytes + 4 * C * C + (1 << 16))

    w = params["conv_w"].astype(jnp.float32)                   # (Cout, Cin)
    bias = params["conv_b"].astype(jnp.float32)
    bias_col = bias.reshape(C, 1)

    y3, stats = _conv_add_stats(x3, s3, w, bias_col,
                                tile_n=tile_n, vmem_limit=vmem_limit)

    # Tiny (C,)-sized finalization in plain JAX (glue).
    n_tot = float(B * N)
    ssum = jnp.sum(stats[..., 0], axis=(0, 1))                 # (C,)
    ssq = jnp.sum(stats[..., 1], axis=(0, 1))
    if n_pad:
        # Padded columns hold exactly y == bias (x and spec padded with 0):
        # remove their deterministic contribution from the partial sums.
        ssum = ssum - (B * n_pad) * bias
        ssq = ssq - (B * n_pad) * bias * bias
    mean = ssum / n_tot
    # biased variance (BN train mode).  TODO(synk): switch to a centered
    # two-pass combine if B*H*W / channel means grow large (f32 cancellation).
    var = ssq / n_tot - mean * mean
    inv = jax.lax.rsqrt(var + eps)
    gamma = params["bn_gamma"].astype(jnp.float32)
    beta = params["bn_beta"].astype(jnp.float32)
    scale = (gamma * inv).reshape(C, 1)
    shift = (beta - mean * gamma * inv).reshape(C, 1)

    out3 = _bn_gelu(y3, scale, shift, tile_n=tile_n, vmem_limit=vmem_limit)
    if n_pad:
        out3 = out3[:, :, :N]
    return out3.reshape(B, C, H, W)


# ----------------------------------------------------------------------------
# Pure-JAX reference (for self-check)
# ----------------------------------------------------------------------------
def _spectral_conv2d_ref(x, w1_r, w1_i, w2_r, w2_i, modes):
    B, C, H, W = x.shape
    x_ft = jnp.fft.rfft2(x, axes=(-2, -1))
    w1 = jax.lax.complex(w1_r, w1_i)
    w2 = jax.lax.complex(w2_r, w2_i)
    out_ft = jnp.zeros((B, C, H, W // 2 + 1), dtype=x_ft.dtype)
    out_ft = out_ft.at[:, :, :modes, :modes].set(
        jnp.einsum("bixy,ioxy->boxy", x_ft[:, :, :modes, :modes], w1))
    out_ft = out_ft.at[:, :, H - modes:, :modes].set(
        jnp.einsum("bixy,ioxy->boxy", x_ft[:, :, H - modes:, :modes], w2))
    return jnp.fft.irfft2(out_ft, s=(H, W), axes=(-2, -1))


def fno_block_reference(x, params, *, modes, eps=1e-5):
    spec = _spectral_conv2d_ref(x, params["w1_r"], params["w1_i"],
                                params["w2_r"], params["w2_i"], modes)
    y = (spec
         + jnp.einsum("oc,bchw->bohw", params["conv_w"], x)
         + params["conv_b"][None, :, None, None])
    mean = jnp.mean(y, axis=(0, 2, 3), keepdims=True)
    var = jnp.var(y, axis=(0, 2, 3), keepdims=True)
    z = ((y - mean) / jnp.sqrt(var + eps)
         * params["bn_gamma"][None, :, None, None]
         + params["bn_beta"][None, :, None, None])
    return 0.5 * z * (1.0 + jax.scipy.special.erf(z * _INV_SQRT2))


if __name__ == "__main__":
    B, C, H, W = 2, 8, 16, 16     # batch, width (channels), spatial
    modes = 6

    key = jax.random.PRNGKey(0)
    ks = jax.random.split(key, 7)
    scale = 1.0 / (C * C)
    params = {
        "w1_r": scale * jax.random.uniform(ks[0], (C, C, modes, modes), jnp.float32),
        "w1_i": scale * jax.random.uniform(ks[1], (C, C, modes, modes), jnp.float32),
        "w2_r": scale * jax.random.uniform(ks[2], (C, C, modes, modes), jnp.float32),
        "w2_i": scale * jax.random.uniform(ks[3], (C, C, modes, modes), jnp.float32),
        "conv_w": (1.0 / math.sqrt(C)) * jax.random.normal(ks[4], (C, C), jnp.float32),
        "conv_b": 0.01 * jax.random.normal(ks[5], (C,), jnp.float32),
        "bn_gamma": jnp.ones((C,), jnp.float32),
        "bn_beta": jnp.zeros((C,), jnp.float32),
    }
    x = jax.random.normal(ks[6], (B, C, H, W), jnp.float32)

    # Hoisted parameter prep: stacked spectral weight built once, not per call.
    params = dict(params, spec_w_cat=prepare_spectral_weight(params, modes))

    out = jax.block_until_ready(fno_block_forward(x, params, modes=modes))
    ref = jax.block_until_ready(fno_block_reference(x, params, modes=modes))

    assert out.shape == (B, C, H, W), out.shape
    assert bool(jnp.all(jnp.isfinite(out)))
    assert bool(jnp.allclose(out, ref, rtol=1e-3, atol=1e-3)), \
        float(jnp.max(jnp.abs(out - ref)))
    print("KERNEL_OK")
</pallas_src>

<mosaic_0001>
module attributes {stable_mosaic.version = 11 : i64} {
  func.func @_spectral_mul_kernel(%arg0: i32, %arg1: memref<72x2x16xf32, #tpu.memory_space<vmem>>, %arg2: memref<72x16x16xf32, #tpu.memory_space<vmem>>, %arg3: memref<72x2x16xf32, #tpu.memory_space<vmem>>) attributes {dimension_semantics = [#tpu.dimension_semantics<parallel>], iteration_bounds = array<i64: 1>, scalar_prefetch = 0 : i64, scratch_operands = 0 : i64, tpu.core_type = #tpu.core_type<tc>, window_params = [{transform_indices = @transform_0, window_bounds = array<i64: 72, 2, 16>}, {transform_indices = @transform_1, window_bounds = array<i64: 72, 16, 16>}, {transform_indices = @transform_2, window_bounds = array<i64: 72, 2, 16>}]} {
    %c0 = arith.constant 0 : index
    %c0_0 = arith.constant 0 : index
    %c0_1 = arith.constant 0 : index
    %0 = vector.load %arg1[%c0, %c0_0, %c0_1] : memref<72x2x16xf32, #tpu.memory_space<vmem>>, vector<72x2x16xf32>
    %c0_2 = arith.constant 0 : index
    %c0_3 = arith.constant 0 : index
    %c0_4 = arith.constant 0 : index
    %1 = vector.load %arg2[%c0_2, %c0_3, %c0_4] : memref<72x16x16xf32, #tpu.memory_space<vmem>>, vector<72x16x16xf32>
    "tpu.trace_start"() <{level = 10 : i32, message = "mbc,mco->mbo"}> : () -> ()
    %cst = arith.constant dense<0.000000e+00> : vector<72x2x16xf32>
    %2 = tpu.matmul %0, %1, %cst {dimension_numbers = #tpu.dot_dimension_numbers<[2], [1], [1], [2], [0, 0, 0, 1, 1, 2], [0], [0]>} : vector<72x2x16xf32>, vector<72x16x16xf32>, vector<72x2x16xf32> -> vector<72x2x16xf32>
    "tpu.trace_stop"() : () -> ()
    %c0_5 = arith.constant 0 : index
    %c0_6 = arith.constant 0 : index
    %c0_7 = arith.constant 0 : index
    %3 = vector.load %arg3[%c0_5, %c0_6, %c0_7] : memref<72x2x16xf32, #tpu.memory_space<vmem>>, vector<72x2x16xf32>
    tpu.vector_store %arg3[%c0_5, %c0_6, %c0_7], %2 {strides = array<i32>} : memref<72x2x16xf32, #tpu.memory_space<vmem>>, vector<72x2x16xf32>,
    return
  }
  func.func @transform_0(%arg0: i32) -> (i32, i32, i32) {
    %c0_i32 = arith.constant 0 : i32
    %c0_i32_0 = arith.constant 0 : i32
    %c0_i32_1 = arith.constant 0 : i32
    return %arg0, %c0_i32, %c0_i32_0 : i32, i32, i32
  }
  func.func @transform_1(%arg0: i32) -> (i32, i32, i32) {
    %c0_i32 = arith.constant 0 : i32
    %c0_i32_0 = arith.constant 0 : i32
    %c0_i32_1 = arith.constant 0 : i32
    return %arg0, %c0_i32, %c0_i32_0 : i32, i32, i32
  }
  func.func @transform_2(%arg0: i32) -> (i32, i32, i32) {
    %c0_i32 = arith.constant 0 : i32
    %c0_i32_0 = arith.constant 0 : i32
    %c0_i32_1 = arith.constant 0 : i32
    return %arg0, %c0_i32, %c0_i32_0 : i32, i32, i32
  }
}

</mosaic_0001>

<llo_original>
// kernel: tpu_custom_call.1
$region0: #{tpu_custom_call.1}
  #allocation0 [shape = 'u32[]', space=smem, size = 0x4, offset = 0x4, fixed_abs, tag = 'smem constant byte address 0x4 - core index']
  #allocation1 [shape = 'u32[144,128]{1,0:T(1,128)}', space=vmem, size = 0x12000, scoped, tag = 'internal scratch']
  %s0 = inlined_call_operand.vmem [shape: f32[72,2,16], index: 0, kind: input, shape index: {}]
  %s1 = inlined_call_operand.vmem [shape: f32[72,16,16], index: 1, kind: input, shape index: {}]
  %s2 = inlined_call_operand.vmem [shape: f32[72,2,16], index: 2, kind: output, shape index: {}]
  %s3 = sld [smem:[#allocation0]]
  $region18: #{tpu_custom_call.1} parent=0
    _
  %s5 = ssub.s32 1, %s3
  %s6 = scalar_select 0, %s5, %s3
  // Predicated region
  $region2: #{tpu_custom_call.1} parent=0 // pred_check
    _
  $region3: #{tpu_custom_call.1} parent=0 // pred_check_branch
    %8 = sbr.rel (0) target = $region5
  $region4: #{tpu_custom_call.1} parent=0 // pred_region
    _
  $region5: #{tpu_custom_call.1} parent=0 // pred_fallthru
    _
  // Predicated region
  $region6: #{tpu_custom_call.1} parent=0 // pred_check
    _
  $region7: #{tpu_custom_call.1} parent=0 // pred_check_branch
    %10 = sbr.rel (0) target = $region9
  $region8: #{tpu_custom_call.1} parent=0 // pred_region
    _
  $region9: #{tpu_custom_call.1} parent=0 // pred_fallthru
    _
  %v11 = vld [vmem:[%s0] sm:$0x3]
  %v12 = vld [vmem:[%s0 + $0x2] sm:$0x3]
  %v13 = vld [vmem:[%s0 + $0x4] sm:$0x3]
  %v14 = vld [vmem:[%s0 + $0x6] sm:$0x3]
  %v15 = vld [vmem:[%s0 + $0x8] sm:$0x3]
  %v16 = vld [vmem:[%s0 + $0xa] sm:$0x3]
  %v17 = vld [vmem:[%s0 + $0xc] sm:$0x3]
  %v18 = vld [vmem:[%s0 + $0xe] sm:$0x3]
  %v19 = vld [vmem:[%s0 + $0x10] sm:$0x3]
  %v20 = vld [vmem:[%s0 + $0x12] sm:$0x3]
  %v21 = vld [vmem:[%s0 + $0x14] sm:$0x3]
  %v22 = vld [vmem:[%s0 + $0x16] sm:$0x3]
  %v23 = vld [vmem:[%s0 + $0x18] sm:$0x3]
  %v24 = vld [vmem:[%s0 + $0x1a] sm:$0x3]
  %v25 = vld [vmem:[%s0 + $0x1c] sm:$0x3]
  %v26 = vld [vmem:[%s0 + $0x1e] sm:$0x3]
  %v27 = vld [vmem:[%s0 + $0x20] sm:$0x3]
  %v28 = vld [vmem:[%s0 + $0x22] sm:$0x3]
  %v29 = vld [vmem:[%s0 + $0x24] sm:$0x3]
  %v30 = vld [vmem:[%s0 + $0x26] sm:$0x3]
  %v31 = vld [vmem:[%s0 + $0x28] sm:$0x3]
  %v32 = vld [vmem:[%s0 + $0x2a] sm:$0x3]
  %v33 = vld [vmem:[%s0 + $0x2c] sm:$0x3]
  %v34 = vld [vmem:[%s0 + $0x2e] sm:$0x3]
  %v35 = vld [vmem:[%s0 + $0x30] sm:$0x3]
  %v36 = vld [vmem:[%s0 + $0x32] sm:$0x3]
  %v37 = vld [vmem:[%s0 + $0x34] sm:$0x3]
  %v38 = vld [vmem:[%s0 + $0x36] sm:$0x3]
  %v39 = vld [vmem:[%s0 + $0x38] sm:$0x3]
  %v40 = vld [vmem:[%s0 + $0x3a] sm:$0x3]
  %v41 = vld [vmem:[%s0 + $0x3c] sm:$0x3]
  %v42 = vld [vmem:[%s0 + $0x3e] sm:$0x3]
  %v43 = vld [vmem:[%s0 + $0x40] sm:$0x3]
  %v44 = vld [vmem:[%s0 + $0x42] sm:$0x3]
  %v45 = vld [vmem:[%s0 + $0x44] sm:$0x3]
  %v46 = vld [vmem:[%s0 + $0x46] sm:$0x3]
  %v47 = vld [vmem:[%s0 + $0x48] sm:$0x3]
  %v48 = vld [vmem:[%s0 + $0x4a] sm:$0x3]
  %v49 = vld [vmem:[%s0 + $0x4c] sm:$0x3]
  %v50 = vld [vmem:[%s0 + $0x4e] sm:$0x3]
  %v51 = vld [vmem:[%s0 + $0x50] sm:$0x3]
  %v52 = vld [vmem:[%s0 + $0x52] sm:$0x3]
  %v53 = vld [vmem:[%s0 + $0x54] sm:$0x3]
  %v54 = vld [vmem:[%s0 + $0x56] sm:$0x3]
  %v55 = vld [vmem:[%s0 + $0x58] sm:$0x3]
  %v56 = vld [vmem:[%s0 + $0x5a] sm:$0x3]
  %v57 = vld [vmem:[%s0 + $0x5c] sm:$0x3]
  %v58 = vld [vmem:[%s0 + $0x5e] sm:$0x3]
  %v59 = vld [vmem:[%s0 + $0x60] sm:$0x3]
  %v60 = vld [vmem:[%s0 + $0x62] sm:$0x3]
  %v61 = vld [vmem:[%s0 + $0x64] sm:$0x3]
  %v62 = vld [vmem:[%s0 + $0x66] sm:$0x3]
  %v63 = vld [vmem:[%s0 + $0x68] sm:$0x3]
  %v64 = vld [vmem:[%s0 + $0x6a] sm:$0x3]
  %v65 = vld [vmem:[%s0 + $0x6c] sm:$0x3]
  %v66 = vld [vmem:[%s0 + $0x6e] sm:$0x3]
  %v67 = vld [vmem:[%s0 + $0x70] sm:$0x3]
  %v68 = vld [vmem:[%s0 + $0x72] sm:$0x3]
  %v69 = vld [vmem:[%s0 + $0x74] sm:$0x3]
  %v70 = vld [vmem:[%s0 + $0x76] sm:$0x3]
  %v71 = vld [vmem:[%s0 + $0x78] sm:$0x3]
  %v72 = vld [vmem:[%s0 + $0x7a] sm:$0x3]
  %v73 = vld [vmem:[%s0 + $0x7c] sm:$0x3]
  %v74 = vld [vmem:[%s0 + $0x7e] sm:$0x3]
  %v75 = vld [vmem:[%s0 + $0x80] sm:$0x3]
  %v76 = vld [vmem:[%s0 + $0x82] sm:$0x3]
  %v77 = vld [vmem:[%s0 + $0x84] sm:$0x3]
  %v78 = vld [vmem:[%s0 + $0x86] sm:$0x3]
  %v79 = vld [vmem:[%s0 + $0x88] sm:$0x3]
  %v80 = vld [vmem:[%s0 + $0x8a] sm:$0x3]
  %v81 = vld [vmem:[%s0 + $0x8c] sm:$0x3]
  %v82 = vld [vmem:[%s0 + $0x8e] sm:$0x3]
  %v83 = vld [vmem:[%s1] sm:$0xff]
  %v84 = vld [vmem:[%s1 + $0x8] sm:$0xff]
  %v85 = vld [vmem:[%s1 + $0x10] sm:$0xff]
  %v86 = vld [vmem:[%s1 + $0x18] sm:$0xff]
  %v87 = vld [vmem:[%s1 + $0x20] sm:$0xff]
  %v88 = vld [vmem:[%s1 + $0x28] sm:$0xff]
  %v89 = vld [vmem:[%s1 + $0x30] sm:$0xff]
  %v90 = vld [vmem:[%s1 + $0x38] sm:$0xff]
  %v91 = vld [vmem:[%s1 + $0x40] sm:$0xff]
  %v92 = vld [vmem:[%s1 + $0x48] sm:$0xff]
  %v93 = vld [vmem:[%s1 + $0x50] sm:$0xff]
  %v94 = vld [vmem:[%s1 + $0x58] sm:$0xff]
  %v95 = vld [vmem:[%s1 + $0x60] sm:$0xff]
  %v96 = vld [vmem:[%s1 + $0x68] sm:$0xff]
  %v97 = vld [vmem:[%s1 + $0x70] sm:$0xff]
  %v98 = vld [vmem:[%s1 + $0x78] sm:$0xff]
  %v99 = vld [vmem:[%s1 + $0x80] sm:$0xff]
  %v100 = vld [vmem:[%s1 + $0x88] sm:$0xff]
  %v101 = vld [vmem:[%s1 + $0x90] sm:$0xff]
  %v102 = vld [vmem:[%s1 + $0x98] sm:$0xff]
  %v103 = vld [vmem:[%s1 + $0xa0] sm:$0xff]
  %v104 = vld [vmem:[%s1 + $0xa8] sm:$0xff]
  %v105 = vld [vmem:[%s1 + $0xb0] sm:$0xff]
  %v106 = vld [vmem:[%s1 + $0xb8] sm:$0xff]
  %v107 = vld [vmem:[%s1 + $0xc0] sm:$0xff]
  %v108 = vld [vmem:[%s1 + $0xc8] sm:$0xff]
  %v109 = vld [vmem:[%s1 + $0xd0] sm:$0xff]
  %v110 = vld [vmem:[%s1 + $0xd8] sm:$0xff]
  %v111 = vld [vmem:[%s1 + $0xe0] sm:$0xff]
  %v112 = vld [vmem:[%s1 + $0xe8] sm:$0xff]
  %v113 = vld [vmem:[%s1 + $0xf0] sm:$0xff]
  %v114 = vld [vmem:[%s1 + $0xf8] sm:$0xff]
  %v115 = vld [vmem:[%s1 + $0x100] sm:$0xff]
  %v116 = vld [vmem:[%s1 + $0x108] sm:$0xff]
  %v117 = vld [vmem:[%s1 + $0x110] sm:$0xff]
  %v118 = vld [vmem:[%s1 + $0x118] sm:$0xff]
  %v119 = vld [vmem:[%s1 + $0x120] sm:$0xff]
  %v120 = vld [vmem:[%s1 + $0x128] sm:$0xff]
  %v121 = vld [vmem:[%s1 + $0x130] sm:$0xff]
  %v122 = vld [vmem:[%s1 + $0x138] sm:$0xff]
  %v123 = vld [vmem:[%s1 + $0x140] sm:$0xff]
  %v124 = vld [vmem:[%s1 + $0x148] sm:$0xff]
  %v125 = vld [vmem:[%s1 + $0x150] sm:$0xff]
  %v126 = vld [vmem:[%s1 + $0x158] sm:$0xff]
  %v127 = vld [vmem:[%s1 + $0x160] sm:$0xff]
  %v128 = vld [vmem:[%s1 + $0x168] sm:$0xff]
  %v129 = vld [vmem:[%s1 + $0x170] sm:$0xff]
  %v130 = vld [vmem:[%s1 + $0x178] sm:$0xff]
  %v131 = vld [vmem:[%s1 + $0x180] sm:$0xff]
  %v132 = vld [vmem:[%s1 + $0x188] sm:$0xff]
  %v133 = vld [vmem:[%s1 + $0x190] sm:$0xff]
  %v134 = vld [vmem:[%s1 + $0x198] sm:$0xff]
  %v135 = vld [vmem:[%s1 + $0x1a0] sm:$0xff]
  %v136 = vld [vmem:[%s1 + $0x1a8] sm:$0xff]
  %v137 = vld [vmem:[%s1 + $0x1b0] sm:$0xff]
  %v138 = vld [vmem:[%s1 + $0x1b8] sm:$0xff]
  %v139 = vld [vmem:[%s1 + $0x1c0] sm:$0xff]
  %v140 = vld [vmem:[%s1 + $0x1c8] sm:$0xff]
  %v141 = vld [vmem:[%s1 + $0x1d0] sm:$0xff]
  %v142 = vld [vmem:[%s1 + $0x1d8] sm:$0xff]
  %v143 = vld [vmem:[%s1 + $0x1e0] sm:$0xff]
  %v144 = vld [vmem:[%s1 + $0x1e8] sm:$0xff]
  %v145 = vld [vmem:[%s1 + $0x1f0] sm:$0xff]
  %v146 = vld [vmem:[%s1 + $0x1f8] sm:$0xff]
  %v147 = vld [vmem:[%s1 + $0x200] sm:$0xff]
  %v148 = vld [vmem:[%s1 + $0x208] sm:$0xff]
  %v149 = vld [vmem:[%s1 + $0x210] sm:$0xff]
  %v150 = vld [vmem:[%s1 + $0x218] sm:$0xff]
  %v151 = vld [vmem:[%s1 + $0x220] sm:$0xff]
  %v152 = vld [vmem:[%s1 + $0x228] sm:$0xff]
  %v153 = vld [vmem:[%s1 + $0x230] sm:$0xff]
  %v154 = vld [vmem:[%s1 + $0x238] sm:$0xff]
  %v155 = vld [vmem:[%s1 + $0x240] sm:$0xff]
  %v156 = vld [vmem:[%s1 + $0x248] sm:$0xff]
  %v157 = vld [vmem:[%s1 + $0x250] sm:$0xff]
  %v158 = vld [vmem:[%s1 + $0x258] sm:$0xff]
  %v159 = vld [vmem:[%s1 + $0x260] sm:$0xff]
  %v160 = vld [vmem:[%s1 + $0x268] sm:$0xff]
  %v161 = vld [vmem:[%s1 + $0x270] sm:$0xff]
  %v162 = vld [vmem:[%s1 + $0x278] sm:$0xff]
  %v163 = vld [vmem:[%s1 + $0x280] sm:$0xff]
  %v164 = vld [vmem:[%s1 + $0x288] sm:$0xff]
  %v165 = vld [vmem:[%s1 + $0x290] sm:$0xff]
  %v166 = vld [vmem:[%s1 + $0x298] sm:$0xff]
  %v167 = vld [vmem:[%s1 + $0x2a0] sm:$0xff]
  %v168 = vld [vmem:[%s1 + $0x2a8] sm:$0xff]
  %v169 = vld [vmem:[%s1 + $0x2b0] sm:$0xff]
  %v170 = vld [vmem:[%s1 + $0x2b8] sm:$0xff]
  %v171 = vld [vmem:[%s1 + $0x2c0] sm:$0xff]
  %v172 = vld [vmem:[%s1 + $0x2c8] sm:$0xff]
  %v173 = vld [vmem:[%s1 + $0x2d0] sm:$0xff]
  %v174 = vld [vmem:[%s1 + $0x2d8] sm:$0xff]
  %v175 = vld [vmem:[%s1 + $0x2e0] sm:$0xff]
  %v176 = vld [vmem:[%s1 + $0x2e8] sm:$0xff]
  %v177 = vld [vmem:[%s1 + $0x2f0] sm:$0xff]
  %v178 = vld [vmem:[%s1 + $0x2f8] sm:$0xff]
  %v179 = vld [vmem:[%s1 + $0x300] sm:$0xff]
  %v180 = vld [vmem:[%s1 + $0x308] sm:$0xff]
  %v181 = vld [vmem:[%s1 + $0x310] sm:$0xff]
  %v182 = vld [vmem:[%s1 + $0x318] sm:$0xff]
  %v183 = vld [vmem:[%s1 + $0x320] sm:$0xff]
  %v184 = vld [vmem:[%s1 + $0x328] sm:$0xff]
  %v185 = vld [vmem:[%s1 + $0x330] sm:$0xff]
  %v186 = vld [vmem:[%s1 + $0x338] sm:$0xff]
  %v187 = vld [vmem:[%s1 + $0x340] sm:$0xff]
  %v188 = vld [vmem:[%s1 + $0x348] sm:$0xff]
  %v189 = vld [vmem:[%s1 + $0x350] sm:$0xff]
  %v190 = vld [vmem:[%s1 + $0x358] sm:$0xff]
  %v191 = vld [vmem:[%s1 + $0x360] sm:$0xff]
  %v192 = vld [vmem:[%s1 + $0x368] sm:$0xff]
  %v193 = vld [vmem:[%s1 + $0x370] sm:$0xff]
  %v194 = vld [vmem:[%s1 + $0x378] sm:$0xff]
  %v195 = vld [vmem:[%s1 + $0x380] sm:$0xff]
  %v196 = vld [vmem:[%s1 + $0x388] sm:$0xff]
  %v197 = vld [vmem:[%s1 + $0x390] sm:$0xff]
  %v198 = vld [vmem:[%s1 + $0x398] sm:$0xff]
  %v199 = vld [vmem:[%s1 + $0x3a0] sm:$0xff]
  %v200 = vld [vmem:[%s1 + $0x3a8] sm:$0xff]
  %v201 = vld [vmem:[%s1 + $0x3b0] sm:$0xff]
  %v202 = vld [vmem:[%s1 + $0x3b8] sm:$0xff]
  %v203 = vld [vmem:[%s1 + $0x3c0] sm:$0xff]
  %v204 = vld [vmem:[%s1 + $0x3c8] sm:$0xff]
  %v205 = vld [vmem:[%s1 + $0x3d0] sm:$0xff]
  %v206 = vld [vmem:[%s1 + $0x3d8] sm:$0xff]
  %v207 = vld [vmem:[%s1 + $0x3e0] sm:$0xff]
  %v208 = vld [vmem:[%s1 + $0x3e8] sm:$0xff]
  %v209 = vld [vmem:[%s1 + $0x3f0] sm:$0xff]
  %v210 = vld [vmem:[%s1 + $0x3f8] sm:$0xff]
  %v211 = vld [vmem:[%s1 + $0x400] sm:$0xff]
  %v212 = vld [vmem:[%s1 + $0x408] sm:$0xff]
  %v213 = vld [vmem:[%s1 + $0x410] sm:$0xff]
  %v214 = vld [vmem:[%s1 + $0x418] sm:$0xff]
  %v215 = vld [vmem:[%s1 + $0x420] sm:$0xff]
  %v216 = vld [vmem:[%s1 + $0x428] sm:$0xff]
  %v217 = vld [vmem:[%s1 + $0x430] sm:$0xff]
  %v218 = vld [vmem:[%s1 + $0x438] sm:$0xff]
  %v219 = vld [vmem:[%s1 + $0x440] sm:$0xff]
  %v220 = vld [vmem:[%s1 + $0x448] sm:$0xff]
  %v221 = vld [vmem:[%s1 + $0x450] sm:$0xff]
  %v222 = vld [vmem:[%s1 + $0x458] sm:$0xff]
  %v223 = vld [vmem:[%s1 + $0x460] sm:$0xff]
  %v224 = vld [vmem:[%s1 + $0x468] sm:$0xff]
  %v225 = vld [vmem:[%s1 + $0x470] sm:$0xff]
  %v226 = vld [vmem:[%s1 + $0x478] sm:$0xff]
  %vm227 = vcmask 130048
  %v229 = vsel %vm227, %v11, 0
  %231 = vmatprep.subr.mxu0 0.0
  %232 = vmatpush1.msra.mxu0 0.0
  %233 = vmatprep.subr.mxu0 0.0
  %234 = vmatpush1.msra.mxu0 0.0
  %235 = vmatprep.subr.mxu0 0.0
  %236 = vmatpush1.msra.mxu0 0.0
  %237 = vmatprep.subr.mxu0 0.0
  %238 = vmatpush1.msra.mxu0 0.0
  %239 = vmatprep.subr.mxu0 0.0
  %240 = vmatpush1.msra.mxu0 0.0
  %241 = vmatprep.subr.mxu0 0.0
  %242 = vmatpush1.msra.mxu0 0.0
  %243 = vmatprep.subr.mxu0 0.0
  %244 = vmatpush1.msra.mxu0 0.0
  %245 = vmatprep.subr.mxu0 0.0
  %246 = vmatpush1.msra.mxu0 0.0
  %247 = vmatprep.subr.mxu0 0.0
  %248 = vmatpush1.msra.mxu0 0.0
  %249 = vmatprep.subr.mxu0 0.0
  %250 = vmatpush1.msra.mxu0 0.0
  %251 = vmatprep.subr.mxu0 0.0
  %252 = vmatpush1.msra.mxu0 0.0
  %253 = vmatprep.subr.mxu0 0.0
  %254 = vmatpush1.msra.mxu0 0.0
  %255 = vmatprep.subr.mxu0 0.0
  %256 = vmatpush1.msra.mxu0 0.0
  %257 = vmatprep.subr.mxu0 0.0
  %258 = vmatpush1.msra.mxu0 0.0
  %259 = vmatprep.subr.mxu0 0.0
  %260 = vmatpush1.msra.mxu0 %v84
  %261 = vmatprep.subr.mxu0 0.0
  %262 = vmatpush1.msra.mxu0 %v83
  %263 = vmatprep.subr.mxu0 0.0
  %264 = vmatpush2.msra.mxu0 0.0
  %265 = vmatprep.subr.mxu0 0.0
  %266 = vmatpush2.msra.mxu0 0.0
  %267 = vmatprep.subr.mxu0 0.0
  %268 = vmatpush2.msra.mxu0 0.0
  %269 = vmatprep.subr.mxu0 0.0
  %270 = vmatpush2.msra.mxu0 0.0
  %271 = vmatprep.subr.mxu0 0.0
  %272 = vmatpush2.msra.mxu0 0.0
  %273 = vmatprep.subr.mxu0 0.0
  %274 = vmatpush2.msra.mxu0 0.0
  %275 = vmatprep.subr.mxu0 0.0
  %276 = vmatpush2.msra.mxu0 0.0
  %277 = vmatprep.subr.mxu0 0.0
  %278 = vmatpush2.msra.mxu0 0.0
  %279 = vmatprep.subr.mxu0 0.0
  %280 = vmatpush2.msra.mxu0 0.0
  %281 = vmatprep.subr.mxu0 0.0
  %282 = vmatpush2.msra.mxu0 0.0
  %283 = vmatprep.subr.mxu0 0.0
  %284 = vmatpush2.msra.mxu0 0.0
  %285 = vmatprep.subr.mxu0 0.0
  %286 = vmatpush2.msra.mxu0 0.0
  %287 = vmatprep.subr.mxu0 0.0
  %288 = vmatpush2.msra.mxu0 0.0
  %289 = vmatprep.subr.mxu0 0.0
  %290 = vmatpush2.msra.mxu0 0.0
  %291 = vmatprep.subr.mxu0 0.0
  %292 = vmatpush2.msra.mxu0 0.0
  %293 = vmatprep.subr.mxu0 0.0
  %294 = vmatpush2.msra.mxu0 0.0
  %295 = vmatprep.mubr.f32.mxu0 0.0
  %296 = vmatmul.mubr.f32.gmra.mxu0 %v229
  %v297 = vpop.f32.mrf.mxu0
  %v298 = vadd.f32 0.0, %v297
  %v299 = vpop.f32.mrf.mxu0
  %300 = vdwg.mxu0
  %v302 = vsel %vm227, %v12, 0
  %304 = vmatprep.subr.mxu0 0.0
  %305 = vmatpush1.msra.mxu0 0.0
  %306 = vmatprep.subr.mxu0 0.0
  %307 = vmatpush1.msra.mxu0 0.0
  %308 = vmatprep.subr.mxu0 0.0
  %309 = vmatpush1.msra.mxu0 0.0
  %310 = vmatprep.subr.mxu0 0.0
  %311 = vmatpush1.msra.mxu0 0.0
  %312 = vmatprep.subr.mxu0 0.0
  %313 = vmatpush1.msra.mxu0 0.0
  %314 = vmatprep.subr.mxu0 0.0
  %315 = vmatpush1.msra.mxu0 0.0
  %316 = vmatprep.subr.mxu0 0.0
  %317 = vmatpush1.msra.mxu0 0.0
  %318 = vmatprep.subr.mxu0 0.0
  %319 = vmatpush1.msra.mxu0 0.0
  %320 = vmatprep.subr.mxu0 0.0
  %321 = vmatpush1.msra.mxu0 0.0
  %322 = vmatprep.subr.mxu0 0.0
  %323 = vmatpush1.msra.mxu0 0.0
  %324 = vmatprep.subr.mxu0 0.0
  %325 = vmatpush1.msra.mxu0 0.0
  %326 = vmatprep.subr.mxu0 0.0
  %327 = vmatpush1.msra.mxu0 0.0
  %328 = vmatprep.subr.mxu0 0.0
  %329 = vmatpush1.msra.mxu0 0.0
  %330 = vmatprep.subr.mxu0 0.0
  %331 = vmatpush1.msra.mxu0 0.0
  %332 = vmatprep.subr.mxu0 0.0
  %333 = vmatpush1.msra.mxu0 %v86
  %334 = vmatprep.subr.mxu0 0.0
  %335 = vmatpush1.msra.mxu0 %v85
  %336 = vmatprep.subr.mxu0 0.0
  %337 = vmatpush2.msra.mxu0 0.0
  %338 = vmatprep.subr.mxu0 0.0
  %339 = vmatpush2.msra.mxu0 0.0
  %340 = vmatprep.subr.mxu0 0.0
  %341 = vmatpush2.msra.mxu0 0.0
  %342 = vmatprep.subr.mxu0 0.0
  %343 = vmatpush2.msra.mxu0 0.0
  %344 = vmatprep.subr.mxu0 0.0
  %345 = vmatpush2.msra.mxu0 0.0
  %346 = vmatprep.subr.mxu0 0.0
  %347 = vmatpush2.msra.mxu0 0.0
  %348 = vmatprep.subr.mxu0 0.0
  %349 = vmatpush2.msra.mxu0 0.0
  %350 = vmatprep.subr.mxu0 0.0
  %351 = vmatpush2.msra.mxu0 0.0
  %352 = vmatprep.subr.mxu0 0.0
  %353 = vmatpush2.msra.mxu0 0.0
  %354 = vmatprep.subr.mxu0 0.0
  %355 = vmatpush2.msra.mxu0 0.0
  %356 = vmatprep.subr.mxu0 0.0
  %357 = vmatpush2.msra.mxu0 0.0
  %358 = vmatprep.subr.mxu0 0.0
  %359 = vmatpush2.msra.mxu0 0.0
  %360 = vmatprep.subr.mxu0 0.0
  %361 = vmatpush2.msra.mxu0 0.0
  %362 = vmatprep.subr.mxu0 0.0
  %363 = vmatpush2.msra.mxu0 0.0
  %364 = vmatprep.subr.mxu0 0.0
  %365 = vmatpush2.msra.mxu0 0.0
  %366 = vmatprep.subr.mxu0 0.0
  %367 = vmatpush2.msra.mxu0 0.0
  %368 = vmatprep.mubr.f32.mxu0 0.0
  %369 = vmatmul.mubr.f32.gmra.mxu0 %v302
  %v370 = vpop.f32.mrf.mxu0
  %v371 = vadd.f32 0.0, %v370
  %v372 = vpop.f32.mrf.mxu0
  %373 = vdwg.mxu0
  %v375 = vsel %vm227, %v13, 0
  %377 = vmatprep.subr.mxu0 0.0
  %378 = vmatpush1.msra.mxu0 0.0
  %379 = vmatprep.subr.mxu0 0.0
  %380 = vmatpush1.msra.mxu0 0.0
  %381 = vmatprep.subr.mxu0 0.0
  %382 = vmatpush1.msra.mxu0 0.0
  %383 = vmatprep.subr.mxu0 0.0
  %384 = vmatpush1.msra.mxu0 0.0
  %385 = vmatprep.subr.mxu0 0.0
  %386 = vmatpush1.msra.mxu0 0.0
  %387 = vmatprep.subr.mxu0 0.0
  %388 = vmatpush1.msra.mxu0 0.0
  %389 = vmatprep.subr.mxu0 0.0
  %390 = vmatpush1.msra.mxu0 0.0
  %391 = vmatprep.subr.mxu0 0.0
  %392 = vmatpush1.msra.mxu0 0.0
  %393 = vmatprep.subr.mxu0 0.0
  %394 = vmatpush1.msra.mxu0 0.0
  %395 = vmatprep.subr.mxu0 0.0
  %396 = vmatpush1.msra.mxu0 0.0
  %397 = vmatprep.subr.mxu0 0.0
  %398 = vmatpush1.msra.mxu0 0.0
  %399 = vmatprep.subr.mxu0 0.0
  %400 = vmatpush1.msra.mxu0 0.0
  %401 = vmatprep.subr.mxu0 0.0
  %402 = vmatpush1.msra.mxu0 0.0
  %403 = vmatprep.subr.mxu0 0.0
  %404 = vmatpush1.msra.mxu0 0.0
  %405 = vmatprep.subr.mxu0 0.0
  %406 = vmatpush1.msra.mxu0 %v88
  %407 = vmatprep.subr.mxu0 0.0
  %408 = vmatpush1.msra.mxu0 %v87
  %409 = vmatprep.subr.mxu0 0.0
  %410 = vmatpush2.msra.mxu0 0.0
  %411 = vmatprep.subr.mxu0 0.0
  %412 = vmatpush2.msra.mxu0 0.0
  %413 = vmatprep.subr.mxu0 0.0
  %414 = vmatpush2.msra.mxu0 0.0
  %415 = vmatprep.subr.mxu0 0.0
  %416 = vmatpush2.msra.mxu0 0.0
  %417 = vmatprep.subr.mxu0 0.0
  %418 = vmatpush2.msra.mxu0 0.0
  %419 = vmatprep.subr.mxu0 0.0
  %420 = vmatpush2.msra.mxu0 0.0
  %421 = vmatprep.subr.mxu0 0.0
  %422 = vmatpush2.msra.mxu0 0.0
  %423 = vmatprep.subr.mxu0 0.0
  %424 = vmatpush2.msra.mxu0 0.0
  %425 = vmatprep.subr.mxu0 0.0
  %426 = vmatpush2.msra.mxu0 0.0
  %427 = vmatprep.subr.mxu0 0.0
  %428 = vmatpush2.msra.mxu0 0.0
  %429 = vmatprep.subr.mxu0 0.0
  %430 = vmatpush2.msra.mxu0 0.0
  %431 = vmatprep.subr.mxu0 0.0
  %432 = vmatpush2.msra.mxu0 0.0
  %433 = vmatprep.subr.mxu0 0.0
  %434 = vmatpush2.msra.mxu0 0.0
  %435 = vmatprep.subr.mxu0 0.0
  %436 = vmatpush2.msra.mxu0 0.0
  %437 = vmatprep.subr.mxu0 0.0
  %438 = vmatpush2.msra.mxu0 0.0
  %439 = vmatprep.subr.mxu0 0.0
  %440 = vmatpush2.msra.mxu0 0.0
  %441 = vmatprep.mubr.f32.mxu0 0.0
  %442 = vmatmul.mubr.f32.gmra.mxu0 %v375
  %v443 = vpop.f32.mrf.mxu0
  %v444 = vadd.f32 0.0, %v443
  %v445 = vpop.f32.mrf.mxu0
  %446 = vdwg.mxu0
  %v448 = vsel %vm227, %v14, 0
  %450 = vmatprep.subr.mxu0 0.0
  %451 = vmatpush1.msra.mxu0 0.0
  %452 = vmatprep.subr.mxu0 0.0
  %453 = vmatpush1.msra.mxu0 0.0
  %454 = vmatprep.subr.mxu0 0.0
  %455 = vmatpush1.msra.mxu0 0.0
  %456 = vmatprep.subr.mxu0 0.0
  %457 = vmatpush1.msra.mxu0 0.0
  %458 = vmatprep.subr.mxu0 0.0
  %459 = vmatpush1.msra.mxu0 0.0
  %460 = vmatprep.subr.mxu0 0.0
  %461 = vmatpush1.msra.mxu0 0.0
  %462 = vmatprep.subr.mxu0 0.0
  %463 = vmatpush1.msra.mxu0 0.0
  %464 = vmatprep.subr.mxu0 0.0
  %465 = vmatpush1.msra.mxu0 0.0
  %466 = vmatprep.subr.mxu0 0.0
  %467 = vmatpush1.msra.mxu0 0.0
  %468 = vmatprep.subr.mxu0 0.0
  %469 = vmatpush1.msra.mxu0 0.0
  %470 = vmatprep.subr.mxu0 0.0
  %471 = vmatpush1.msra.mxu0 0.0
  %472 = vmatprep.subr.mxu0 0.0
  %473 = vmatpush1.msra.mxu0 0.0
  %474 = vmatprep.subr.mxu0 0.0
  %475 = vmatpush1.msra.mxu0 0.0
  %476 = vmatprep.subr.mxu0 0.0
  %477 = vmatpush1.msra.mxu0 0.0
  %478 = vmatprep.subr.mxu0 0.0
  %479 = vmatpush1.msra.mxu0 %v90
  %480 = vmatprep.subr.mxu0 0.0
  %481 = vmatpush1.msra.mxu0 %v89
  %482 = vmatprep.subr.mxu0 0.0
  %483 = vmatpush2.msra.mxu0 0.0
  %484 = vmatprep.subr.mxu0 0.0
  %485 = vmatpush2.msra.mxu0 0.0
  %486 = vmatprep.subr.mxu0 0.0
  %487 = vmatpush2.msra.mxu0 0.0
  %488 = vmatprep.subr.mxu0 0.0
  %489 = vmatpush2.msra.mxu0 0.0
  %490 = vmatprep.subr.mxu0 0.0
  %491 = vmatpush2.msra.mxu0 0.0
  %492 = vmatprep.subr.mxu0 0.0
  %493 = vmatpush2.msra.mxu0 0.0
  %494 = vmatprep.subr.mxu0 0.0
  %495 = vmatpush2.msra.mxu0 0.0
  %496 = vmatprep.subr.mxu0 0.0
  %497 = vmatpush2.msra.mxu0 0.0
  %498 = vmatprep.subr.mxu0 0.0
  %499 = vmatpush2.msra.mxu0 0.0
  %500 = vmatprep.subr.mxu0 0.0
  %501 = vmatpush2.msra.mxu0 0.0
  %502 = vmatprep.subr.mxu0 0.0
  %503 = vmatpush2.msra.mxu0 0.0
  %504 = vmatprep.subr.mxu0 0.0
  %505 = vmatpush2.msra.mxu0 0.0
  %506 = vmatprep.subr.mxu0 0.0
  %507 = vmatpush2.msra.mxu0 0.0
  %508 = vmatprep.subr.mxu0 0.0
  %509 = vmatpush2.msra.mxu0 0.0
  %510 = vmatprep.subr.mxu0 0.0
  %511 = vmatpush2.msra.mxu0 0.0
  %512 = vmatprep.subr.mxu0 0.0
  %513 = vmatpush2.msra.mxu0 0.0
  %514 = vmatprep.mubr.f32.mxu0 0.0
  %515 = vmatmul.mubr.f32.gmra.mxu0 %v448
  %v516 = vpop.f32.mrf.mxu0
  %v517 = vadd.f32 0.0, %v516
  %v518 = vpop.f32.mrf.mxu0
  %519 = vdwg.mxu0
  %v521 = vsel %vm227, %v15, 0
  %523 = vmatprep.subr.mxu0 0.0
  %524 = vmatpush1.msra.mxu0 0.0
  %525 = vmatprep.subr.mxu0 0.0
  %526 = vmatpush1.msra.mxu0 0.0
  %527 = vmatprep.subr.mxu0 0.0
  %528 = vmatpush1.msra.mxu0 0.0
  %529 = vmatprep.subr.mxu0 0.0
  %530 = vmatpush1.msra.mxu0 0.0
  %531 = vmatprep.subr.mxu0 0.0
  %532 = vmatpush1.msra.mxu0 0.0
  %533 = vmatprep.subr.mxu0 0.0
  %534 = vmatpush1.msra.mxu0 0.0
  %535 = vmatprep.subr.mxu0 0.0
  %536 = vmatpush1.msra.mxu0 0.0
  %537 = vmatprep.subr.mxu0 0.0
  %538 = vmatpush1.msra.mxu0 0.0
  %539 = vmatprep.subr.mxu0 0.0
  %540 = vmatpush1.msra.mxu0 0.0
  %541 = vmatprep.subr.mxu0 0.0
  %542 = vmatpush1.msra.mxu0 0.0
  %543 = vmatprep.subr.mxu0 0.0
  %544 = vmatpush1.msra.mxu0 0.0
  %545 = vmatprep.subr.mxu0 0.0
  %546 = vmatpush1.msra.mxu0 0.0
  %547 = vmatprep.subr.mxu0 0.0
  %548 = vmatpush1.msra.mxu0 0.0
  %549 = vmatprep.subr.mxu0 0.0
  %550 = vmatpush1.msra.mxu0 0.0
  %551 = vmatprep.subr.mxu0 0.0
  %552 = vmatpush1.msra.mxu0 %v92
  %553 = vmatprep.subr.mxu0 0.0
  %554 = vmatpush1.msra.mxu0 %v91
  %555 = vmatprep.subr.mxu0 0.0
  %556 = vmatpush2.msra.mxu0 0.0
  %557 = vmatprep.subr.mxu0 0.0
  %558 = vmatpush2.msra.mxu0 0.0
  %559 = vmatprep.subr.mxu0 0.0
  %560 = vmatpush2.msra.mxu0 0.0
  %561 = vmatprep.subr.mxu0 0.0
  %562 = vmatpush2.msra.mxu0 0.0
  %563 = vmatprep.subr.mxu0 0.0
  %564 = vmatpush2.msra.mxu0 0.0
  %565 = vmatprep.subr.mxu0 0.0
  %566 = vmatpush2.msra.mxu0 0.0
  %567 = vmatprep.subr.mxu0 0.0
  %568 = vmatpush2.msra.mxu0 0.0
  %569 = vmatprep.subr.mxu0 0.0
  %570 = vmatpush2.msra.mxu0 0.0
  %571 = vmatprep.subr.mxu0 0.0
  %572 = vmatpush2.msra.mxu0 0.0
  %573 = vmatprep.subr.mxu0 0.0
  %574 = vmatpush2.msra.mxu0 0.0
  %575 = vmatprep.subr.mxu0 0.0
  %576 = vmatpush2.msra.mxu0 0.0
  %577 = vmatprep.subr.mxu0 0.0
  %578 = vmatpush2.msra.mxu0 0.0
  %579 = vmatprep.subr.mxu0 0.0
  %580 = vmatpush2.msra.mxu0 0.0
  %581 = vmatprep.subr.mxu0 0.0
  %582 = vmatpush2.msra.mxu0 0.0
  %583 = vmatprep.subr.mxu0 0.0
  %584 = vmatpush2.msra.mxu0 0.0
  %585 = vmatprep.subr.mxu0 0.0
  %586 = vmatpush2.msra.mxu0 0.0
  %587 = vmatprep.mubr.f32.mxu0 0.0
  %588 = vmatmul.mubr.f32.gmra.mxu0 %v521
  %v589 = vpop.f32.mrf.mxu0
  %v590 = vadd.f32 0.0, %v589
  %v591 = vpop.f32.mrf.mxu0
  %592 = vdwg.mxu0
  %v594 = vsel %vm227, %v16, 0
  %596 = vmatprep.subr.mxu0 0.0
  %597 = vmatpush1.msra.mxu0 0.0
  %598 = vmatprep.subr.mxu0 0.0
  %599 = vmatpush1.msra.mxu0 0.0
  %600 = vmatprep.subr.mxu0 0.0
  %601 = vmatpush1.msra.mxu0 0.0
  %602 = vmatprep.subr.mxu0 0.0
  %603 = vmatpush1.msra.mxu0 0.0
  %604 = vmatprep.subr.mxu0 0.0
  %605 = vmatpush1.msra.mxu0 0.0
  %606 = vmatprep.subr.mxu0 0.0
  %607 = vmatpush1.msra.mxu0 0.0
  %608 = vmatprep.subr.mxu0 0.0
  %609 = vmatpush1.msra.mxu0 0.0
  %610 = vmatprep.subr.mxu0 0.0
  %611 = vmatpush1.msra.mxu0 0.0
  %612 = vmatprep.subr.mxu0 0.0
  %613 = vmatpush1.msra.mxu0 0.0
  %614 = vmatprep.subr.mxu0 0.0
  %615 = vmatpush1.msra.mxu0 0.0
  %616 = vmatprep.subr.mxu0 0.0
  %617 = vmatpush1.msra.mxu0 0.0
  %618 = vmatprep.subr.mxu0 0.0
  %619 = vmatpush1.msra.mxu0 0.0
  %620 = vmatprep.subr.mxu0 0.0
  %621 = vmatpush1.msra.mxu0 0.0
  %622 = vmatprep.subr.mxu0 0.0
  %623 = vmatpush1.msra.mxu0 0.0
  %624 = vmatprep.subr.mxu0 0.0
  %625 = vmatpush1.msra.mxu0 %v94
  %626 = vmatprep.subr.mxu0 0.0
  %627 = vmatpush1.msra.mxu0 %v93
  %628 = vmatprep.subr.mxu0 0.0
  %629 = vmatpush2.msra.mxu0 0.0
  %630 = vmatprep.subr.mxu0 0.0
  %631 = vmatpush2.msra.mxu0 0.0
  %632 = vmatprep.subr.mxu0 0.0
  %633 = vmatpush2.msra.mxu0 0.0
  %634 = vmatprep.subr.mxu0 0.0
  %635 = vmatpush2.msra.mxu0 0.0
  %636 = vmatprep.subr.mxu0 0.0
  %637 = vmatpush2.msra.mxu0 0.0
  %638 = vmatprep.subr.mxu0 0.0
  %639 = vmatpush2.msra.mxu0 0.0
  %640 = vmatprep.subr.mxu0 0.0
  %641 = vmatpush2.msra.mxu0 0.0
  %642 = vmatprep.subr.mxu0 0.0
  %643 = vmatpush2.msra.mxu0 0.0
  %644 = vmatprep.subr.mxu0 0.0
  %645 = vmatpush2.msra.mxu0 0.0
  %646 = vmatprep.subr.mxu0 0.0
  %647 = vmatpush2.msra.mxu0 0.0
  %648 = vmatprep.subr.mxu0 0.0
  %649 = vmatpush2.msra.mxu0 0.0
  %650 = vmatprep.subr.mxu0 0.0
  %651 = vmatpush2.msra.mxu0 0.0
  %652 = vmatprep.subr.mxu0 0.0
  %653 = vmatpush2.msra.mxu0 0.0
  %654 = vmatprep.subr.mxu0 0.0
  %655 = vmatpush2.msra.mxu0 0.0
  %656 = vmatprep.subr.mxu0 0.0
  %657 = vmatpush2.msra.mxu0 0.0
  %658 = vmatprep.subr.mxu0 0.0
  %659 = vmatpush2.msra.mxu0 0.0
  %660 = vmatprep.mubr.f32.mxu0 0.0
  %661 = vmatmul.mubr.f32.gmra.mxu0 %v594
  %v662 = vpop.f32.mrf.mxu0
  %v663 = vadd.f32 0.0, %v662
  %v664 = vpop.f32.mrf.mxu0
  %665 = vdwg.mxu0
  %v667 = vsel %vm227, %v17, 0
  %669 = vmatprep.subr.mxu0 0.0
  %670 = vmatpush1.msra.mxu0 0.0
  %671 = vmatprep.subr.mxu0 0.0
  %672 = vmatpush1.msra.mxu0 0.0
  %673 = vmatprep.subr.mxu0 0.0
  %674 = vmatpush1.msra.mxu0 0.0
  %675 = vmatprep.subr.mxu0 0.0
  %676 = vmatpush1.msra.mxu0 0.0
  %677 = vmatprep.subr.mxu0 0.0
  %678 = vmatpush1.msra.mxu0 0.0
  %679 = vmatprep.subr.mxu0 0.0
  %680 = vmatpush1.msra.mxu0 0.0
  %681 = vmatprep.subr.mxu0 0.0
  %682 = vmatpush1.msra.mxu0 0.0
  %683 = vmatprep.subr.mxu0 0.0
  %684 = vmatpush1.msra.mxu0 0.0
  %685 = vmatprep.subr.mxu0 0.0
  %686 = vmatpush1.msra.mxu0 0.0
  %687 = vmatprep.subr.mxu0 0.0
  %688 = vmatpush1.msra.mxu0 0.0
  %689 = vmatprep.subr.mxu0 0.0
  %690 = vmatpush1.msra.mxu0 0.0
  %691 = vmatprep.subr.mxu0 0.0
  %692 = vmatpush1.msra.mxu0 0.0
  %693 = vmatprep.subr.mxu0 0.0
  %694 = vmatpush1.msra.mxu0 0.0
  %695 = vmatprep.subr.mxu0 0.0
  %696 = vmatpush1.msra.mxu0 0.0
  %697 = vmatprep.subr.mxu0 0.0
  %698 = vmatpush1.msra.mxu0 %v96
  %699 = vmatprep.subr.mxu0 0.0
  %700 = vmatpush1.msra.mxu0 %v95
  %701 = vmatprep.subr.mxu0 0.0
  %702 = vmatpush2.msra.mxu0 0.0
  %703 = vmatprep.subr.mxu0 0.0
  %704 = vmatpush2.msra.mxu0 0.0
  %705 = vmatprep.subr.mxu0 0.0
  %706 = vmatpush2.msra.mxu0 0.0
  %707 = vmatprep.subr.mxu0 0.0
  %708 = vmatpush2.msra.mxu0 0.0
  %709 = vmatprep.subr.mxu0 0.0
  %710 = vmatpush2.msra.mxu0 0.0
  %711 = vmatprep.subr.mxu0 0.0
  %712 = vmatpush2.msra.mxu0 0.0
  %713 = vmatprep.subr.mxu0 0.0
  %714 = vmatpush2.msra.mxu0 0.0
  %715 = vmatprep.subr.mxu0 0.0
  %716 = vmatpush2.msra.mxu0 0.0
  %717 = vmatprep.subr.mxu0 0.0
  %718 = vmatpush2.msra.mxu0 0.0
  %719 = vmatprep.subr.mxu0 0.0
  %720 = vmatpush2.msra.mxu0 0.0
  %721 = vmatprep.subr.mxu0 0.0
  %722 = vmatpush2.msra.mxu0 0.0
  %723 = vmatprep.subr.mxu0 0.0
  %724 = vmatpush2.msra.mxu0 0.0
  %725 = vmatprep.subr.mxu0 0.0
  %726 = vmatpush2.msra.mxu0 0.0
  %727 = vmatprep.subr.mxu0 0.0
  %728 = vmatpush2.msra.mxu0 0.0
  %729 = vmatprep.subr.mxu0 0.0
  %730 = vmatpush2.msra.mxu0 0.0
  %731 = vmatprep.subr.mxu0 0.0
  %732 = vmatpush2.msra.mxu0 0.0
  %733 = vmatprep.mubr.f32.mxu0 0.0
  %734 = vmatmul.mubr.f32.gmra.mxu0 %v667
  %v735 = vpop.f32.mrf.mxu0
  %v736 = vadd.f32 0.0, %v735
  %v737 = vpop.f32.mrf.mxu0
  %738 = vdwg.mxu0
  %v740 = vsel %vm227, %v18, 0
  %742 = vmatprep.subr.mxu0 0.0
  %743 = vmatpush1.msra.mxu0 0.0
  %744 = vmatprep.subr.mxu0 0.0
  %745 = vmatpush1.msra.mxu0 0.0
  %746 = vmatprep.subr.mxu0 0.0
  %747 = vmatpush1.msra.mxu0 0.0
  %748 = vmatprep.subr.mxu0 0.0
  %749 = vmatpush1.msra.mxu0 0.0
  %750 = vmatprep.subr.mxu0 0.0
  %751 = vmatpush1.msra.mxu0 0.0
  %752 = vmatprep.subr.mxu0 0.0
  %753 = vmatpush1.msra.mxu0 0.0
  %754 = vmatprep.subr.mxu0 0.0
  %755 = vmatpush1.msra.mxu0 0.0
  %756 = vmatprep.subr.mxu0 0.0
  %757 = vmatpush1.msra.mxu0 0.0
  %758 = vmatprep.subr.mxu0 0.0
  %759 = vmatpush1.msra.mxu0 0.0
  %760 = vmatprep.subr.mxu0 0.0
  %761 = vmatpush1.msra.mxu0 0.0
  %762 = vmatprep.subr.mxu0 0.0
  %763 = vmatpush1.msra.mxu0 0.0
  %764 = vmatprep.subr.mxu0 0.0
  %765 = vmatpush1.msra.mxu0 0.0
  %766 = vmatprep.subr.mxu0 0.0
  %767 = vmatpush1.msra.mxu0 0.0
  %768 = vmatprep.subr.mxu0 0.0
  %769 = vmatpush1.msra.mxu0 0.0
  %770 = vmatprep.subr.mxu0 0.0
  %771 = vmatpush1.msra.mxu0 %v98
  %772 = vmatprep.subr.mxu0 0.0
  %773 = vmatpush1.msra.mxu0 %v97
  %774 = vmatprep.subr.mxu0 0.0
  %775 = vmatpush2.msra.mxu0 0.0
  %776 = vmatprep.subr.mxu0 0.0
  %777 = vmatpush2.msra.mxu0 0.0
  %778 = vmatprep.subr.mxu0 0.0
  %779 = vmatpush2.msra.mxu0 0.0
  %780 = vmatprep.subr.mxu0 0.0
  %781 = vmatpush2.msra.mxu0 0.0
  %782 = vmatprep.subr.mxu0 0.0
  %783 = vmatpush2.msra.mxu0 0.0
  %784 = vmatprep.subr.mxu0 0.0
  %785 = vmatpush2.msra.mxu0 0.0
  %786 = vmatprep.subr.mxu0 0.0
  %787 = vmatpush2.msra.mxu0 0.0
  %788 = vmatprep.subr.mxu0 0.0
  %789 = vmatpush2.msra.mxu0 0.0
  %790 = vmatprep.subr.mxu0 0.0
  %791 = vmatpush2.msra.mxu0 0.0
  %792 = vmatprep.subr.mxu0 0.0
  %793 = vmatpush2.msra.mxu0 0.0
  %794 = vmatprep.subr.mxu0 0.0
  %795 = vmatpush2.msra.mxu0 0.0
  %796 = vmatprep.subr.mxu0 0.0
  %797 = vmatpush2.msra.mxu0 0.0
  %798 = vmatprep.subr.mxu0 0.0
  %799 = vmatpush2.msra.mxu0 0.0
  %800 = vmatprep.subr.mxu0 0.0
  %801 = vmatpush2.msra.mxu0 0.0
  %802 = vmatprep.subr.mxu0 0.0
  %803 = vmatpush2.msra.mxu0 0.0
  %804 = vmatprep.subr.mxu0 0.0
  %805 = vmatpush2.msra.mxu0 0.0
  %806 = vmatprep.mubr.f32.mxu0 0.0
  %807 = vmatmul.mubr.f32.gmra.mxu0 %v740
  %v808 = vpop.f32.mrf.mxu0
  %v809 = vadd.f32 0.0, %v808
  %v810 = vpop.f32.mrf.mxu0
  %811 = vdwg.mxu0
  %v813 = vsel %vm227, %v19, 0
  %815 = vmatprep.subr.mxu0 0.0
  %816 = vmatpush1.msra.mxu0 0.0
  %817 = vmatprep.subr.mxu0 0.0
  %818 = vmatpush1.msra.mxu0 0.0
  %819 = vmatprep.subr.mxu0 0.0
  %820 = vmatpush1.msra.mxu0 0.0
  %821 = vmatprep.subr.mxu0 0.0
  %822 = vmatpush1.msra.mxu0 0.0
  %823 = vmatprep.subr.mxu0 0.0
  %824 = vmatpush1.msra.mxu0 0.0
  %825 = vmatprep.subr.mxu0 0.0
  %826 = vmatpush1.msra.mxu0 0.0
  %827 = vmatprep.subr.mxu0 0.0
  %828 = vmatpush1.msra.mxu0 0.0
  %829 = vmatprep.subr.mxu0 0.0
  %830 = vmatpush1.msra.mxu0 0.0
  %831 = vmatprep.subr.mxu0 0.0
  %832 = vmatpush1.msra.mxu0 0.0
  %833 = vmatprep.subr.mxu0 0.0
  %834 = vmatpush1.msra.mxu0 0.0
  %835 = vmatprep.subr.mxu0 0.0
  %836 = vmatpush1.msra.mxu0 0.0
  %837 = vmatprep.subr.mxu0 0.0
  %838 = vmatpush1.msra.mxu0 0.0
  %839 = vmatprep.subr.mxu0 0.0
  %840 = vmatpush1.msra.mxu0 0.0
  %841 = vmatprep.subr.mxu0 0.0
  %842 = vmatpush1.msra.mxu0 0.0
  %843 = vmatprep.subr.mxu0 0.0
  %844 = vmatpush1.msra.mxu0 %v100
  %845 = vmatprep.subr.mxu0 0.0
  %846 = vmatpush1.msra.mxu0 %v99
  %847 = vmatprep.subr.mxu0 0.0
  %848 = vmatpush2.msra.mxu0 0.0
  %849 = vmatprep.subr.mxu0 0.0
  %850 = vmatpush2.msra.mxu0 0.0
  %851 = vmatprep.subr.mxu0 0.0
  %852 = vmatpush2.msra.mxu0 0.0
  %853 = vmatprep.subr.mxu0 0.0
  %854 = vmatpush2.msra.mxu0 0.0
  %855 = vmatprep.subr.mxu0 0.0
  %856 = vmatpush2.msra.mxu0 0.0
  %857 = vmatprep.subr.mxu0 0.0
  %858 = vmatpush2.msra.mxu0 0.0
  %859 = vmatprep.subr.mxu0 0.0
  %860 = vmatpush2.msra.mxu0 0.0
  %861 = vmatprep.subr.mxu0 0.0
  %862 = vmatpush2.msra.mxu0 0.0
  %863 = vmatprep.subr.mxu0 0.0
  %864 = vmatpush2.msra.mxu0 0.0
  %865 = vmatprep.subr.mxu0 0.0
  %866 = vmatpush2.msra.mxu0 0.0
  %867 = vmatprep.subr.mxu0 0.0
  %868 = vmatpush2.msra.mxu0 0.0
  %869 = vmatprep.subr.mxu0 0.0
  %870 = vmatpush2.msra.mxu0 0.0
  %871 = vmatprep.subr.mxu0 0.0
  %872 = vmatpush2.msra.mxu0 0.0
  %873 = vmatprep.subr.mxu0 0.0
  %874 = vmatpush2.msra.mxu0 0.0
  %875 = vmatprep.subr.mxu0 0.0
  %876 = vmatpush2.msra.mxu0 0.0
  %877 = vmatprep.subr.mxu0 0.0
  %878 = vmatpush2.msra.mxu0 0.0
  %879 = vmatprep.mubr.f32.mxu0 0.0
  %880 = vmatmul.mubr.f32.gmra.mxu0 %v813
  %v881 = vpop.f32.mrf.mxu0
  %v882 = vadd.f32 0.0, %v881
  %v883 = vpop.f32.mrf.mxu0
  %884 = vdwg.mxu0
  %v886 = vsel %vm227, %v20, 0
  %888 = vmatprep.subr.mxu0 0.0
  %889 = vmatpush1.msra.mxu0 0.0
  %890 = vmatprep.subr.mxu0 0.0
  %891 = vmatpush1.msra.mxu0 0.0
  %892 = vmatprep.subr.mxu0 0.0
  %893 = vmatpush1.msra.mxu0 0.0
  %894 = vmatprep.subr.mxu0 0.0
  %895 = vmatpush1.msra.mxu0 0.0
  %896 = vmatprep.subr.mxu0 0.0
  %897 = vmatpush1.msra.mxu0 0.0
  %898 = vmatprep.subr.mxu0 0.0
  %899 = vmatpush1.msra.mxu0 0.0
  %900 = vmatprep.subr.mxu0 0.0
  %901 = vmatpush1.msra.mxu0 0.0
  %902 = vmatprep.subr.mxu0 0.0
  %903 = vmatpush1.msra.mxu0 0.0
  %904 = vmatprep.subr.mxu0 0.0
  %905 = vmatpush1.msra.mxu0 0.0
  %906 = vmatprep.subr.mxu0 0.0
  %907 = vmatpush1.msra.mxu0 0.0
  %908 = vmatprep.subr.mxu0 0.0
  %909 = vmatpush1.msra.mxu0 0.0
  %910 = vmatprep.subr.mxu0 0.0
  %911 = vmatpush1.msra.mxu0 0.0
  %912 = vmatprep.subr.mxu0 0.0
  %913 = vmatpush1.msra.mxu0 0.0
  %914 = vmatprep.subr.mxu0 0.0
  %915 = vmatpush1.msra.mxu0 0.0
  %916 = vmatprep.subr.mxu0 0.0
  %917 = vmatpush1.msra.mxu0 %v102
  %918 = vmatprep.subr.mxu0 0.0
  %919 = vmatpush1.msra.mxu0 %v101
  %920 = vmatprep.subr.mxu0 0.0
  %921 = vmatpush2.msra.mxu0 0.0
  %922 = vmatprep.subr.mxu0 0.0
  %923 = vmatpush2.msra.mxu0 0.0
  %924 = vmatprep.subr.mxu0 0.0
  %925 = vmatpush2.msra.mxu0 0.0
  %926 = vmatprep.subr.mxu0 0.0
  %927 = vmatpush2.msra.mxu0 0.0
  %928 = vmatprep.subr.mxu0 0.0
  %929 = vmatpush2.msra.mxu0 0.0
  %930 = vmatprep.subr.mxu0 0.0
  %931 = vmatpush2.msra.mxu0 0.0
  %932 = vmatprep.subr.mxu0 0.0
  %933 = vmatpush2.msra.mxu0 0.0
  %934 = vmatprep.subr.mxu0 0.0
  %935 = vmatpush2.msra.mxu0 0.0
  %936 = vmatprep.subr.mxu0 0.0
  %937 = vmatpush2.msra.mxu0 0.0
  %938 = vmatprep.subr.mxu0 0.0
  %939 = vmatpush2.msra.mxu0 0.0
  %940 = vmatprep.subr.mxu0 0.0
  %941 = vmatpush2.msra.mxu0 0.0
  %942 = vmatprep.subr.mxu0 0.0
  %943 = vmatpush2.msra.mxu0 0.0
  %944 = vmatprep.subr.mxu0 0.0
  %945 = vmatpush2.msra.mxu0 0.0
  %946 = vmatprep.subr.mxu0 0.0
  %947 = vmatpush2.msra.mxu0 0.0
  %948 = vmatprep.subr.mxu0 0.0
  %949 = vmatpush2.msra.mxu0 0.0
  %950 = vmatprep.subr.mxu0 0.0
  %951 = vmatpush2.msra.mxu0 0.0
  %952 = vmatprep.mubr.f32.mxu0 0.0
  %953 = vmatmul.mubr.f32.gmra.mxu0 %v886
  %v954 = vpop.f32.mrf.mxu0
  %v955 = vadd.f32 0.0, %v954
  %v956 = vpop.f32.mrf.mxu0
  %957 = vdwg.mxu0
  %v959 = vsel %vm227, %v21, 0
  %961 = vmatprep.subr.mxu0 0.0
  %962 = vmatpush1.msra.mxu0 0.0
  %963 = vmatprep.subr.mxu0 0.0
  %964 = vmatpush1.msra.mxu0 0.0
  %965 = vmatprep.subr.mxu0 0.0
  %966 = vmatpush1.msra.mxu0 0.0
  %967 = vmatprep.subr.mxu0 0.0
  %968 = vmatpush1.msra.mxu0 0.0
  %969 = vmatprep.subr.mxu0 0.0
  %970 = vmatpush1.msra.mxu0 0.0
  %971 = vmatprep.subr.mxu0 0.0
  %972 = vmatpush1.msra.mxu0 0.0
  %973 = vmatprep.subr.mxu0 0.0
  %974 = vmatpush1.msra.mxu0 0.0
  %975 = vmatprep.subr.mxu0 0.0
  %976 = vmatpush1.msra.mxu0 0.0
  %977 = vmatprep.subr.mxu0 0.0
  %978 = vmatpush1.msra.mxu0 0.0
  %979 = vmatprep.subr.mxu0 0.0
  %980 = vmatpush1.msra.mxu0 0.0
  %981 = vmatprep.subr.mxu0 0.0
  %982 = vmatpush1.msra.mxu0 0.0
  %983 = vmatprep.subr.mxu0 0.0
  %984 = vmatpush1.msra.mxu0 0.0
  %985 = vmatprep.subr.mxu0 0.0
  %986 = vmatpush1.msra.mxu0 0.0
  %987 = vmatprep.subr.mxu0 0.0
  %988 = vmatpush1.msra.mxu0 0.0
  %989 = vmatprep.subr.mxu0 0.0
  %990 = vmatpush1.msra.mxu0 %v104
  %991 = vmatprep.subr.mxu0 0.0
  %992 = vmatpush1.msra.mxu0 %v103
  %993 = vmatprep.subr.mxu0 0.0
  %994 = vmatpush2.msra.mxu0 0.0
  %995 = vmatprep.subr.mxu0 0.0
  %996 = vmatpush2.msra.mxu0 0.0
  %997 = vmatprep.subr.mxu0 0.0
  %998 = vmatpush2.msra.mxu0 0.0
  %999 = vmatprep.subr.mxu0 0.0
  %1000 = vmatpush2.msra.mxu0 0.0
  %1001 = vmatprep.subr.mxu0 0.0
  %1002 = vmatpush2.msra.mxu0 0.0
  %1003 = vmatprep.subr.mxu0 0.0
  %1004 = vmatpush2.msra.mxu0 0.0
  %1005 = vmatprep.subr.mxu0 0.0
  %1006 = vmatpush2.msra.mxu0 0.0
  %1007 = vmatprep.subr.mxu0 0.0
  %1008 = vmatpush2.msra.mxu0 0.0
  %1009 = vmatprep.subr.mxu0 0.0
  %1010 = vmatpush2.msra.mxu0 0.0
  %1011 = vmatprep.subr.mxu0 0.0
  %1012 = vmatpush2.msra.mxu0 0.0
  %1013 = vmatprep.subr.mxu0 0.0
  %1014 = vmatpush2.msra.mxu0 0.0
  %1015 = vmatprep.subr.mxu0 0.0
  %1016 = vmatpush2.msra.mxu0 0.0
  %1017 = vmatprep.subr.mxu0 0.0
  %1018 = vmatpush2.msra.mxu0 0.0
  %1019 = vmatprep.subr.mxu0 0.0
  %1020 = vmatpush2.msra.mxu0 0.0
  %1021 = vmatprep.subr.mxu0 0.0
  %1022 = vmatpush2.msra.mxu0 0.0
  %1023 = vmatprep.subr.mxu0 0.0
  %1024 = vmatpush2.msra.mxu0 0.0
  %1025 = vmatprep.mubr.f32.mxu0 0.0
  %1026 = vmatmul.mubr.f32.gmra.mxu0 %v959
  %v1027 = vpop.f32.mrf.mxu0
  %v1028 = vadd.f32 0.0, %v1027
  %v1029 = vpop.f32.mrf.mxu0
  %1030 = vdwg.mxu0
  %v1032 = vsel %vm227, %v22, 0
  %1034 = vmatprep.subr.mxu0 0.0
  %1035 = vmatpush1.msra.mxu0 0.0
  %1036 = vmatprep.subr.mxu0 0.0
  %1037 = vmatpush1.msra.mxu0 0.0
  %1038 = vmatprep.subr.mxu0 0.0
  %1039 = vmatpush1.msra.mxu0 0.0
  %1040 = vmatprep.subr.mxu0 0.0
  %1041 = vmatpush1.msra.mxu0 0.0
  %1042 = vmatprep.subr.mxu0 0.0
  %1043 = vmatpush1.msra.mxu0 0.0
  %1044 = vmatprep.subr.mxu0 0.0
  %1045 = vmatpush1.msra.mxu0 0.0
  %1046 = vmatprep.subr.mxu0 0.0
  %1047 = vmatpush1.msra.mxu0 0.0
  %1048 = vmatprep.subr.mxu0 0.0
  %1049 = vmatpush1.msra.mxu0 0.0
  %1050 = vmatprep.subr.mxu0 0.0
  %1051 = vmatpush1.msra.mxu0 0.0
  %1052 = vmatprep.subr.mxu0 0.0
  %1053 = vmatpush1.msra.mxu0 0.0
  %1054 = vmatprep.subr.mxu0 0.0
  %1055 = vmatpush1.msra.mxu0 0.0
  %1056 = vmatprep.subr.mxu0 0.0
  %1057 = vmatpush1.msra.mxu0 0.0
  %1058 = vmatprep.subr.mxu0 0.0
  %1059 = vmatpush1.msra.mxu0 0.0
  %1060 = vmatprep.subr.mxu0 0.0
  %1061 = vmatpush1.msra.mxu0 0.0
  %1062 = vmatprep.subr.mxu0 0.0
  %1063 = vmatpush1.msra.mxu0 %v106
  %1064 = vmatprep.subr.mxu0 0.0
  %1065 = vmatpush1.msra.mxu0 %v105
  %1066 = vmatprep.subr.mxu0 0.0
  %1067 = vmatpush2.msra.mxu0 0.0
  %1068 = vmatprep.subr.mxu0 0.0
  %1069 = vmatpush2.msra.mxu0 0.0
  %1070 = vmatprep.subr.mxu0 0.0
  %1071 = vmatpush2.msra.mxu0 0.0
  %1072 = vmatprep.subr.mxu0 0.0
  %1073 = vmatpush2.msra.mxu0 0.0
  %1074 = vmatprep.subr.mxu0 0.0
  %1075 = vmatpush2.msra.mxu0 0.0
  %1076 = vmatprep.subr.mxu0 0.0
  %1077 = vmatpush2.msra.mxu0 0.0
  %1078 = vmatprep.subr.mxu0 0.0
  %1079 = vmatpush2.msra.mxu0 0.0
  %1080 = vmatprep.subr.mxu0 0.0
  %1081 = vmatpush2.msra.mxu0 0.0
  %1082 = vmatprep.subr.mxu0 0.0
  %1083 = vmatpush2.msra.mxu0 0.0
  %1084 = vmatprep.subr.mxu0 0.0
  %1085 = vmatpush2.msra.mxu0 0.0
  %1086 = vmatprep.subr.mxu0 0.0
  %1087 = vmatpush2.msra.mxu0 0.0
  %1088 = vmatprep.subr.mxu0 0.0
  %1089 = vmatpush2.msra.mxu0 0.0
  %1090 = vmatprep.subr.mxu0 0.0
  %1091 = vmatpush2.msra.mxu0 0.0
  %1092 = vmatprep.subr.mxu0 0.0
  %1093 = vmatpush2.msra.mxu0 0.0
  %1094 = vmatprep.subr.mxu0 0.0
  %1095 = vmatpush2.msra.mxu0 0.0
  %1096 = vmatprep.subr.mxu0 0.0
  %1097 = vmatpush2.msra.mxu0 0.0
  %1098 = vmatprep.mubr.f32.mxu0 0.0
  %1099 = vmatmul.mubr.f32.gmra.mxu0 %v1032
  %v1100 = vpop.f32.mrf.mxu0
  %v1101 = vadd.f32 0.0, %v1100
  %v1102 = vpop.f32.mrf.mxu0
  %1103 = vdwg.mxu0
  %v1105 = vsel %vm227, %v23, 0
  %1107 = vmatprep.subr.mxu0 0.0
  %1108 = vmatpush1.msra.mxu0 0.0
  %1109 = vmatprep.subr.mxu0 0.0
  %1110 = vmatpush1.msra.mxu0 0.0
  %1111 = vmatprep.subr.mxu0 0.0
  %1112 = vmatpush1.msra.mxu0 0.0
  %1113 = vmatprep.subr.mxu0 0.0
  %1114 = vmatpush1.msra.mxu0 0.0
  %1115 = vmatprep.subr.mxu0 0.0
  %1116 = vmatpush1.msra.mxu0 0.0
  %1117 = vmatprep.subr.mxu0 0.0
  %1118 = vmatpush1.msra.mxu0 0.0
  %1119 = vmatprep.subr.mxu0 0.0
  %1120 = vmatpush1.msra.mxu0 0.0
  %1121 = vmatprep.subr.mxu0 0.0
  %1122 = vmatpush1.msra.mxu0 0.0
  %1123 = vmatprep.subr.mxu0 0.0
  %1124 = vmatpush1.msra.mxu0 0.0
  %1125 = vmatprep.subr.mxu0 0.0
  %1126 = vmatpush1.msra.mxu0 0.0
  %1127 = vmatprep.subr.mxu0 0.0
  %1128 = vmatpush1.msra.mxu0 0.0
  %1129 = vmatprep.subr.mxu0 0.0
  %1130 = vmatpush1.msra.mxu0 0.0
  %1131 = vmatprep.subr.mxu0 0.0
  %1132 = vmatpush1.msra.mxu0 0.0
  %1133 = vmatprep.subr.mxu0 0.0
  %1134 = vmatpush1.msra.mxu0 0.0
  %1135 = vmatprep.subr.mxu0 0.0
  %1136 = vmatpush1.msra.mxu0 %v108
  %1137 = vmatprep.subr.mxu0 0.0
  %1138 = vmatpush1.msra.mxu0 %v107
  %1139 = vmatprep.subr.mxu0 0.0
  %1140 = vmatpush2.msra.mxu0 0.0
  %1141 = vmatprep.subr.mxu0 0.0
  %1142 = vmatpush2.msra.mxu0 0.0
  %1143 = vmatprep.subr.mxu0 0.0
  %1144 = vmatpush2.msra.mxu0 0.0
  %1145 = vmatprep.subr.mxu0 0.0
  %1146 = vmatpush2.msra.mxu0 0.0
  %1147 = vmatprep.subr.mxu0 0.0
  %1148 = vmatpush2.msra.mxu0 0.0
  %1149 = vmatprep.subr.mxu0 0.0
  %1150 = vmatpush2.msra.mxu0 0.0
  %1151 = vmatprep.subr.mxu0 0.0
  %1152 = vmatpush2.msra.mxu0 0.0
  %1153 = vmatprep.subr.mxu0 0.0
  %1154 = vmatpush2.msra.mxu0 0.0
  %1155 = vmatprep.subr.mxu0 0.0
  %1156 = vmatpush2.msra.mxu0 0.0
  %1157 = vmatprep.subr.mxu0 0.0
  %1158 = vmatpush2.msra.mxu0 0.0
  %1159 = vmatprep.subr.mxu0 0.0
  %1160 = vmatpush2.msra.mxu0 0.0
  %1161 = vmatprep.subr.mxu0 0.0
  %1162 = vmatpush2.msra.mxu0 0.0
  %1163 = vmatprep.subr.mxu0 0.0
  %1164 = vmatpush2.msra.mxu0 0.0
  %1165 = vmatprep.subr.mxu0 0.0
  %1166 = vmatpush2.msra.mxu0 0.0
  %1167 = vmatprep.subr.mxu0 0.0
  %1168 = vmatpush2.msra.mxu0 0.0
  %1169 = vmatprep.subr.mxu0 0.0
  %1170 = vmatpush2.msra.mxu0 0.0
  %1171 = vmatprep.mubr.f32.mxu0 0.0
  %1172 = vmatmul.mubr.f32.gmra.mxu0 %v1105
  %v1173 = vpop.f32.mrf.mxu0
  %v1174 = vadd.f32 0.0, %v1173
  %v1175 = vpop.f32.mrf.mxu0
  %1176 = vdwg.mxu0
  %v1178 = vsel %vm227, %v24, 0
  %1180 = vmatprep.subr.mxu0 0.0
  %1181 = vmatpush1.msra.mxu0 0.0
  %1182 = vmatprep.subr.mxu0 0.0
  %1183 = vmatpush1.msra.mxu0 0.0
  %1184 = vmatprep.subr.mxu0 0.0
  %1185 = vmatpush1.msra.mxu0 0.0
  %1186 = vmatprep.subr.mxu0 0.0
  %1187 = vmatpush1.msra.mxu0 0.0
  %1188 = vmatprep.subr.mxu0 0.0
  %1189 = vmatpush1.msra.mxu0 0.0
  %1190 = vmatprep.subr.mxu0 0.0
  %1191 = vmatpush1.msra.mxu0 0.0
  %1192 = vmatprep.subr.mxu0 0.0
  %1193 = vmatpush1.msra.mxu0 0.0
  %1194 = vmatprep.subr.mxu0 0.0
  %1195 = vmatpush1.msra.mxu0 0.0
  %1196 = vmatprep.subr.mxu0 0.0
  %1197 = vmatpush1.msra.mxu0 0.0
  %1198 = vmatprep.subr.mxu0 0.0
  %1199 = vmatpush1.msra.mxu0 0.0
  %1200 = vmatprep.subr.mxu0 0.0
  %1201 = vmatpush1.msra.mxu0 0.0
  %1202 = vmatprep.subr.mxu0 0.0
  %1203 = vmatpush1.msra.mxu0 0.0
  %1204 = vmatprep.subr.mxu0 0.0
  %1205 = vmatpush1.msra.mxu0 0.0
  %1206 = vmatprep.subr.mxu0 0.0
  %1207 = vmatpush1.msra.mxu0 0.0
  %1208 = vmatprep.subr.mxu0 0.0
  %1209 = vmatpush1.msra.mxu0 %v110
  %1210 = vmatprep.subr.mxu0 0.0
  %1211 = vmatpush1.msra.mxu0 %v109
  %1212 = vmatprep.subr.mxu0 0.0
  %1213 = vmatpush2.msra.mxu0 0.0
  %1214 = vmatprep.subr.mxu0 0.0
  %1215 = vmatpush2.msra.mxu0 0.0
  %1216 = vmatprep.subr.mxu0 0.0
  %1217 = vmatpush2.msra.mxu0 0.0
  %1218 = vmatprep.subr.mxu0 0.0
  %1219 = vmatpush2.msra.mxu0 0.0
  %1220 = vmatprep.subr.mxu0 0.0
  %1221 = vmatpush2.msra.mxu0 0.0
  %1222 = vmatprep.subr.mxu0 0.0
  %1223 = vmatpush2.msra.mxu0 0.0
  %1224 = vmatprep.subr.mxu0 0.0
  %1225 = vmatpush2.msra.mxu0 0.0
  %1226 = vmatprep.subr.mxu0 0.0
  %1227 = vmatpush2.msra.mxu0 0.0
  %1228 = vmatprep.subr.mxu0 0.0
  %1229 = vmatpush2.msra.mxu0 0.0
  %1230 = vmatprep.subr.mxu0 0.0
  %1231 = vmatpush2.msra.mxu0 0.0
  %1232 = vmatprep.subr.mxu0 0.0
  %1233 = vmatpush2.msra.mxu0 0.0
  %1234 = vmatprep.subr.mxu0 0.0
  %1235 = vmatpush2.msra.mxu0 0.0
  %1236 = vmatprep.subr.mxu0 0.0
  %1237 = vmatpush2.msra.mxu0 0.0
  %1238 = vmatprep.subr.mxu0 0.0
  %1239 = vmatpush2.msra.mxu0 0.0
  %1240 = vmatprep.subr.mxu0 0.0
  %1241 = vmatpush2.msra.mxu0 0.0
  %1242 = vmatprep.subr.mxu0 0.0
  %1243 = vmatpush2.msra.mxu0 0.0
  %1244 = vmatprep.mubr.f32.mxu0 0.0
  %1245 = vmatmul.mubr.f32.gmra.mxu0 %v1178
  %v1246 = vpop.f32.mrf.mxu0
  %v1247 = vadd.f32 0.0, %v1246
  %v1248 = vpop.f32.mrf.mxu0
  %1249 = vdwg.mxu0
  %v1251 = vsel %vm227, %v25, 0
  %1253 = vmatprep.subr.mxu0 0.0
  %1254 = vmatpush1.msra.mxu0 0.0
  %1255 = vmatprep.subr.mxu0 0.0
  %1256 = vmatpush1.msra.mxu0 0.0
  %1257 = vmatprep.subr.mxu0 0.0
  %1258 = vmatpush1.msra.mxu0 0.0
  %1259 = vmatprep.subr.mxu0 0.0
  %1260 = vmatpush1.msra.mxu0 0.0
  %1261 = vmatprep.subr.mxu0 0.0
  %1262 = vmatpush1.msra.mxu0 0.0
  %1263 = vmatprep.subr.mxu0 0.0
  %1264 = vmatpush1.msra.mxu0 0.0
  %1265 = vmatprep.subr.mxu0 0.0
  %1266 = vmatpush1.msra.mxu0 0.0
  %1267 = vmatprep.subr.mxu0 0.0
  %1268 = vmatpush1.msra.mxu0 0.0
  %1269 = vmatprep.subr.mxu0 0.0
  %1270 = vmatpush1.msra.mxu0 0.0
  %1271 = vmatprep.subr.mxu0 0.0
  %1272 = vmatpush1.msra.mxu0 0.0
  %1273 = vmatprep.subr.mxu0 0.0
  %1274 = vmatpush1.msra.mxu0 0.0
  %1275 = vmatprep.subr.mxu0 0.0
  %1276 = vmatpush1.msra.mxu0 0.0
  %1277 = vmatprep.subr.mxu0 0.0
  %1278 = vmatpush1.msra.mxu0 0.0
  %1279 = vmatprep.subr.mxu0 0.0
  %1280 = vmatpush1.msra.mxu0 0.0
  %1281 = vmatprep.subr.mxu0 0.0
  %1282 = vmatpush1.msra.mxu0 %v112
  %1283 = vmatprep.subr.mxu0 0.0
  %1284 = vmatpush1.msra.mxu0 %v111
  %1285 = vmatprep.subr.mxu0 0.0
  %1286 = vmatpush2.msra.mxu0 0.0
  %1287 = vmatprep.subr.mxu0 0.0
  %1288 = vmatpush2.msra.mxu0 0.0
  %1289 = vmatprep.subr.mxu0 0.0
  %1290 = vmatpush2.msra.mxu0 0.0
  %1291 = vmatprep.subr.mxu0 0.0
  %1292 = vmatpush2.msra.mxu0 0.0
  %1293 = vmatprep.subr.mxu0 0.0
  %1294 = vmatpush2.msra.mxu0 0.0
  %1295 = vmatprep.subr.mxu0 0.0
  %1296 = vmatpush2.msra.mxu0 0.0
  %1297 = vmatprep.subr.mxu0 0.0
  %1298 = vmatpush2.msra.mxu0 0.0
  %1299 = vmatprep.subr.mxu0 0.0
  %1300 = vmatpush2.msra.mxu0 0.0
  %1301 = vmatprep.subr.mxu0 0.0
  %1302 = vmatpush2.msra.mxu0 0.0
  %1303 = vmatprep.subr.mxu0 0.0
  %1304 = vmatpush2.msra.mxu0 0.0
  %1305 = vmatprep.subr.mxu0 0.0
  %1306 = vmatpush2.msra.mxu0 0.0
  %1307 = vmatprep.subr.mxu0 0.0
  %1308 = vmatpush2.msra.mxu0 0.0
  %1309 = vmatprep.subr.mxu0 0.0
  %1310 = vmatpush2.msra.mxu0 0.0
  %1311 = vmatprep.subr.mxu0 0.0
  %1312 = vmatpush2.msra.mxu0 0.0
  %1313 = vmatprep.subr.mxu0 0.0
  %1314 = vmatpush2.msra.mxu0 0.0
  %1315 = vmatprep.subr.mxu0 0.0
  %1316 = vmatpush2.msra.mxu0 0.0
  %1317 = vmatprep.mubr.f32.mxu0 0.0
  %1318 = vmatmul.mubr.f32.gmra.mxu0 %v1251
  %v1319 = vpop.f32.mrf.mxu0
  %v1320 = vadd.f32 0.0, %v1319
  %v1321 = vpop.f32.mrf.mxu0
  %1322 = vdwg.mxu0
  %v1324 = vsel %vm227, %v26, 0
  %1326 = vmatprep.subr.mxu0 0.0
  %1327 = vmatpush1.msra.mxu0 0.0
  %1328 = vmatprep.subr.mxu0 0.0
  %1329 = vmatpush1.msra.mxu0 0.0
  %1330 = vmatprep.subr.mxu0 0.0
  %1331 = vmatpush1.msra.mxu0 0.0
  %1332 = vmatprep.subr.mxu0 0.0
  %1333 = vmatpush1.msra.mxu0 0.0
  %1334 = vmatprep.subr.mxu0 0.0
  %1335 = vmatpush1.msra.mxu0 0.0
  %1336 = vmatprep.subr.mxu0 0.0
  %1337 = vmatpush1.msra.mxu0 0.0
  %1338 = vmatprep.subr.mxu0 0.0
  %1339 = vmatpush1.msra.mxu0 0.0
  %1340 = vmatprep.subr.mxu0 0.0
  %1341 = vmatpush1.msra.mxu0 0.0
  %1342 = vmatprep.subr.mxu0 0.0
  %1343 = vmatpush1.msra.mxu0 0.0
  %1344 = vmatprep.subr.mxu0 0.0
  %1345 = vmatpush1.msra.mxu0 0.0
  %1346 = vmatprep.subr.mxu0 0.0
  %1347 = vmatpush1.msra.mxu0 0.0
  %1348 = vmatprep.subr.mxu0 0.0
  %1349 = vmatpush1.msra.mxu0 0.0
  %1350 = vmatprep.subr.mxu0 0.0
  %1351 = vmatpush1.msra.mxu0 0.0
  %1352 = vmatprep.subr.mxu0 0.0
  %1353 = vmatpush1.msra.mxu0 0.0
  %1354 = vmatprep.subr.mxu0 0.0
  %1355 = vmatpush1.msra.mxu0 %v114
  %1356 = vmatprep.subr.mxu0 0.0
  %1357 = vmatpush1.msra.mxu0 %v113
  %1358 = vmatprep.subr.mxu0 0.0
  %1359 = vmatpush2.msra.mxu0 0.0
  %1360 = vmatprep.subr.mxu0 0.0
  %1361 = vmatpush2.msra.mxu0 0.0
  %1362 = vmatprep.subr.mxu0 0.0
  %1363 = vmatpush2.msra.mxu0 0.0
  %1364 = vmatprep.subr.mxu0 0.0
  %1365 = vmatpush2.msra.mxu0 0.0
  %1366 = vmatprep.subr.mxu0 0.0
  %1367 = vmatpush2.msra.mxu0 0.0
  %1368 = vmatprep.subr.mxu0 0.0
  %1369 = vmatpush2.msra.mxu0 0.0
  %1370 = vmatprep.subr.mxu0 0.0
  %1371 = vmatpush2.msra.mxu0 0.0
  %1372 = vmatprep.subr.mxu0 0.0
  %1373 = vmatpush2.msra.mxu0 0.0
  %1374 = vmatprep.subr.mxu0 0.0
  %1375 = vmatpush2.msra.mxu0 0.0
  %1376 = vmatprep.subr.mxu0 0.0
  %1377 = vmatpush2.msra.mxu0 0.0
  %1378 = vmatprep.subr.mxu0 0.0
  %1379 = vmatpush2.msra.mxu0 0.0
  %1380 = vmatprep.subr.mxu0 0.0
  %1381 = vmatpush2.msra.mxu0 0.0
  %1382 = vmatprep.subr.mxu0 0.0
  %1383 = vmatpush2.msra.mxu0 0.0
  %1384 = vmatprep.subr.mxu0 0.0
  %1385 = vmatpush2.msra.mxu0 0.0
  %1386 = vmatprep.subr.mxu0 0.0
  %1387 = vmatpush2.msra.mxu0 0.0
  %1388 = vmatprep.subr.mxu0 0.0
  %1389 = vmatpush2.msra.mxu0 0.0
  %1390 = vmatprep.mubr.f32.mxu0 0.0
  %1391 = vmatmul.mubr.f32.gmra.mxu0 %v1324
  %v1392 = vpop.f32.mrf.mxu0
  %v1393 = vadd.f32 0.0, %v1392
  %v1394 = vpop.f32.mrf.mxu0
  %1395 = vdwg.mxu0
  %v1397 = vsel %vm227, %v27, 0
  %1399 = vmatprep.subr.mxu0 0.0
  %1400 = vmatpush1.msra.mxu0 0.0
  %1401 = vmatprep.subr.mxu0 0.0
  %1402 = vmatpush1.msra.mxu0 0.0
  %1403 = vmatprep.subr.mxu0 0.0
  %1404 = vmatpush1.msra.mxu0 0.0
  %1405 = vmatprep.subr.mxu0 0.0
  %1406 = vmatpush1.msra.mxu0 0.0
  %1407 = vmatprep.subr.mxu0 0.0
  %1408 = vmatpush1.msra.mxu0 0.0
  %1409 = vmatprep.subr.mxu0 0.0
  %1410 = vmatpush1.msra.mxu0 0.0
  %1411 = vmatprep.subr.mxu0 0.0
  %1412 = vmatpush1.msra.mxu0 0.0
  %1413 = vmatprep.subr.mxu0 0.0
  %1414 = vmatpush1.msra.mxu0 0.0
  %1415 = vmatprep.subr.mxu0 0.0
  %1416 = vmatpush1.msra.mxu0 0.0
  %1417 = vmatprep.subr.mxu0 0.0
  %1418 = vmatpush1.msra.mxu0 0.0
  %1419 = vmatprep.subr.mxu0 0.0
  %1420 = vmatpush1.msra.mxu0 0.0
  %1421 = vmatprep.subr.mxu0 0.0
  %1422 = vmatpush1.msra.mxu0 0.0
  %1423 = vmatprep.subr.mxu0 0.0
  %1424 = vmatpush1.msra.mxu0 0.0
  %1425 = vmatprep.subr.mxu0 0.0
  %1426 = vmatpush1.msra.mxu0 0.0
  %1427 = vmatprep.subr.mxu0 0.0
  %1428 = vmatpush1.msra.mxu0 %v116
  %1429 = vmatprep.subr.mxu0 0.0
  %1430 = vmatpush1.msra.mxu0 %v115
  %1431 = vmatprep.subr.mxu0 0.0
  %1432 = vmatpush2.msra.mxu0 0.0
  %1433 = vmatprep.subr.mxu0 0.0
  %1434 = vmatpush2.msra.mxu0 0.0
  %1435 = vmatprep.subr.mxu0 0.0
  %1436 = vmatpush2.msra.mxu0 0.0
  %1437 = vmatprep.subr.mxu0 0.0
  %1438 = vmatpush2.msra.mxu0 0.0
  %1439 = vmatprep.subr.mxu0 0.0
  %1440 = vmatpush2.msra.mxu0 0.0
  %1441 = vmatprep.subr.mxu0 0.0
  %1442 = vmatpush2.msra.mxu0 0.0
  %1443 = vmatprep.subr.mxu0 0.0
  %1444 = vmatpush2.msra.mxu0 0.0
  %1445 = vmatprep.subr.mxu0 0.0
  %1446 = vmatpush2.msra.mxu0 0.0
  %1447 = vmatprep.subr.mxu0 0.0
  %1448 = vmatpush2.msra.mxu0 0.0
  %1449 = vmatprep.subr.mxu0 0.0
  %1450 = vmatpush2.msra.mxu0 0.0
  %1451 = vmatprep.subr.mxu0 0.0
  %1452 = vmatpush2.msra.mxu0 0.0
  %1453 = vmatprep.subr.mxu0 0.0
  %1454 = vmatpush2.msra.mxu0 0.0
  %1455 = vmatprep.subr.mxu0 0.0
  %1456 = vmatpush2.msra.mxu0 0.0
  %1457 = vmatprep.subr.mxu0 0.0
  %1458 = vmatpush2.msra.mxu0 0.0
  %1459 = vmatprep.subr.mxu0 0.0
  %1460 = vmatpush2.msra.mxu0 0.0
  %1461 = vmatprep.subr.mxu0 0.0
  %1462 = vmatpush2.msra.mxu0 0.0
  %1463 = vmatprep.mubr.f32.mxu0 0.0
  %1464 = vmatmul.mubr.f32.gmra.mxu0 %v1397
  %v1465 = vpop.f32.mrf.mxu0
  %v1466 = vadd.f32 0.0, %v1465
  %v1467 = vpop.f32.mrf.mxu0
  %1468 = vdwg.mxu0
  %v1470 = vsel %vm227, %v28, 0
  %1472 = vmatprep.subr.mxu0 0.0
  %1473 = vmatpush1.msra.mxu0 0.0
  %1474 = vmatprep.subr.mxu0 0.0
  %1475 = vmatpush1.msra.mxu0 0.0
  %1476 = vmatprep.subr.mxu0 0.0
  %1477 = vmatpush1.msra.mxu0 0.0
  %1478 = vmatprep.subr.mxu0 0.0
  %1479 = vmatpush1.msra.mxu0 0.0
  %1480 = vmatprep.subr.mxu0 0.0
  %1481 = vmatpush1.msra.mxu0 0.0
  %1482 = vmatprep.subr.mxu0 0.0
  %1483 = vmatpush1.msra.mxu0 0.0
  %1484 = vmatprep.subr.mxu0 0.0
  %1485 = vmatpush1.msra.mxu0 0.0
  %1486 = vmatprep.subr.mxu0 0.0
  %1487 = vmatpush1.msra.mxu0 0.0
  %1488 = vmatprep.subr.mxu0 0.0
  %1489 = vmatpush1.msra.mxu0 0.0
  %1490 = vmatprep.subr.mxu0 0.0
  %1491 = vmatpush1.msra.mxu0 0.0
  %1492 = vmatprep.subr.mxu0 0.0
  %1493 = vmatpush1.msra.mxu0 0.0
  %1494 = vmatprep.subr.mxu0 0.0
  %1495 = vmatpush1.msra.mxu0 0.0
  %1496 = vmatprep.subr.mxu0 0.0
  %1497 = vmatpush1.msra.mxu0 0.0
  %1498 = vmatprep.subr.mxu0 0.0
  %1499 = vmatpush1.msra.mxu0 0.0
  %1500 = vmatprep.subr.mxu0 0.0
  %1501 = vmatpush1.msra.mxu0 %v118
  %1502 = vmatprep.subr.mxu0 0.0
  %1503 = vmatpush1.msra.mxu0 %v117
  %1504 = vmatprep.subr.mxu0 0.0
  %1505 = vmatpush2.msra.mxu0 0.0
  %1506 = vmatprep.subr.mxu0 0.0
  %1507 = vmatpush2.msra.mxu0 0.0
  %1508 = vmatprep.subr.mxu0 0.0
  %1509 = vmatpush2.msra.mxu0 0.0
  %1510 = vmatprep.subr.mxu0 0.0
  %1511 = vmatpush2.msra.mxu0 0.0
  %1512 = vmatprep.subr.mxu0 0.0
  %1513 = vmatpush2.msra.mxu0 0.0
  %1514 = vmatprep.subr.mxu0 0.0
  %1515 = vmatpush2.msra.mxu0 0.0
  %1516 = vmatprep.subr.mxu0 0.0
  %1517 = vmatpush2.msra.mxu0 0.0
  %1518 = vmatprep.subr.mxu0 0.0
  %1519 = vmatpush2.msra.mxu0 0.0
  %1520 = vmatprep.subr.mxu0 0.0
  %1521 = vmatpush2.msra.mxu0 0.0
  %1522 = vmatprep.subr.mxu0 0.0
  %1523 = vmatpush2.msra.mxu0 0.0
  %1524 = vmatprep.subr.mxu0 0.0
  %1525 = vmatpush2.msra.mxu0 0.0
  %1526 = vmatprep.subr.mxu0 0.0
  %1527 = vmatpush2.msra.mxu0 0.0
  %1528 = vmatprep.subr.mxu0 0.0
  %1529 = vmatpush2.msra.mxu0 0.0
  %1530 = vmatprep.subr.mxu0 0.0
  %1531 = vmatpush2.msra.mxu0 0.0
  %1532 = vmatprep.subr.mxu0 0.0
  %1533 = vmatpush2.msra.mxu0 0.0
  %1534 = vmatprep.subr.mxu0 0.0
  %1535 = vmatpush2.msra.mxu0 0.0
  %1536 = vmatprep.mubr.f32.mxu0 0.0
  %1537 = vmatmul.mubr.f32.gmra.mxu0 %v1470
  %v1538 = vpop.f32.mrf.mxu0
  %v1539 = vadd.f32 0.0, %v1538
  %v1540 = vpop.f32.mrf.mxu0
  %1541 = vdwg.mxu0
  %v1543 = vsel %vm227, %v29, 0
  %1545 = vmatprep.subr.mxu0 0.0
  %1546 = vmatpush1.msra.mxu0 0.0
  %1547 = vmatprep.subr.mxu0 0.0
  %1548 = vmatpush1.msra.mxu0 0.0
  %1549 = vmatprep.subr.mxu0 0.0
  %1550 = vmatpush1.msra.mxu0 0.0
  %1551 = vmatprep.subr.mxu0 0.0
  %1552 = vmatpush1.msra.mxu0 0.0
  %1553 = vmatprep.subr.mxu0 0.0
  %1554 = vmatpush1.msra.mxu0 0.0
  %1555 = vmatprep.subr.mxu0 0.0
  %1556 = vmatpush1.msra.mxu0 0.0
  %1557 = vmatprep.subr.mxu0 0.0
  %1558 = vmatpush1.msra.mxu0 0.0
  %1559 = vmatprep.subr.mxu0 0.0
  %1560 = vmatpush1.msra.mxu0 0.0
  %1561 = vmatprep.subr.mxu0 0.0
  %1562 = vmatpush1.msra.mxu0 0.0
  %1563 = vmatprep.subr.mxu0 0.0
  %1564 = vmatpush1.msra.mxu0 0.0
  %1565 = vmatprep.subr.mxu0 0.0
  %1566 = vmatpush1.msra.mxu0 0.0
  %1567 = vmatprep.subr.mxu0 0.0
  %1568 = vmatpush1.msra.mxu0 0.0
  %1569 = vmatprep.subr.mxu0 0.0
  %1570 = vmatpush1.msra.mxu0 0.0
  %1571 = vmatprep.subr.mxu0 0.0
  %1572 = vmatpush1.msra.mxu0 0.0
  %1573 = vmatprep.subr.mxu0 0.0
  %1574 = vmatpush1.msra.mxu0 %v120
  %1575 = vmatprep.subr.mxu0 0.0
  %1576 = vmatpush1.msra.mxu0 %v119
  %1577 = vmatprep.subr.mxu0 0.0
  %1578 = vmatpush2.msra.mxu0 0.0
  %1579 = vmatprep.subr.mxu0 0.0
  %1580 = vmatpush2.msra.mxu0 0.0
  %1581 = vmatprep.subr.mxu0 0.0
  %1582 = vmatpush2.msra.mxu0 0.0
  %1583 = vmatprep.subr.mxu0 0.0
  %1584 = vmatpush2.msra.mxu0 0.0
  %1585 = vmatprep.subr.mxu0 0.0
  %1586 = vmatpush2.msra.mxu0 0.0
  %1587 = vmatprep.subr.mxu0 0.0
  %1588 = vmatpush2.msra.mxu0 0.0
  %1589 = vmatprep.subr.mxu0 0.0
  %1590 = vmatpush2.msra.mxu0 0.0
  %1591 = vmatprep.subr.mxu0 0.0
  %1592 = vmatpush2.msra.mxu0 0.0
  %1593 = vmatprep.subr.mxu0 0.0
  %1594 = vmatpush2.msra.mxu0 0.0
  %1595 = vmatprep.subr.mxu0 0.0
  %1596 = vmatpush2.msra.mxu0 0.0
  %1597 = vmatprep.subr.mxu0 0.0
  %1598 = vmatpush2.msra.mxu0 0.0
  %1599 = vmatprep.subr.mxu0 0.0
  %1600 = vmatpush2.msra.mxu0 0.0
  %1601 = vmatprep.subr.mxu0 0.0
  %1602 = vmatpush2.msra.mxu0 0.0
  %1603 = vmatprep.subr.mxu0 0.0
  %1604 = vmatpush2.msra.mxu0 0.0
  %1605 = vmatprep.subr.mxu0 0.0
  %1606 = vmatpush2.msra.mxu0 0.0
  %1607 = vmatprep.subr.mxu0 0.0
  %1608 = vmatpush2.msra.mxu0 0.0
  %1609 = vmatprep.mubr.f32.mxu0 0.0
  %1610 = vmatmul.mubr.f32.gmra.mxu0 %v1543
  %v1611 = vpop.f32.mrf.mxu0
  %v1612 = vadd.f32 0.0, %v1611
  %v1613 = vpop.f32.mrf.mxu0
  %1614 = vdwg.mxu0
  %v1616 = vsel %vm227, %v30, 0
  %1618 = vmatprep.subr.mxu0 0.0
  %1619 = vmatpush1.msra.mxu0 0.0
  %1620 = vmatprep.subr.mxu0 0.0
  %1621 = vmatpush1.msra.mxu0 0.0
  %1622 = vmatprep.subr.mxu0 0.0
  %1623 = vmatpush1.msra.mxu0 0.0
  %1624 = vmatprep.subr.mxu0 0.0
  %1625 = vmatpush1.msra.mxu0 0.0
  %1626 = vmatprep.subr.mxu0 0.0
  %1627 = vmatpush1.msra.mxu0 0.0
  %1628 = vmatprep.subr.mxu0 0.0
  %1629 = vmatpush1.msra.mxu0 0.0
  %1630 = vmatprep.subr.mxu0 0.0
  %1631 = vmatpush1.msra.mxu0 0.0
  %1632 = vmatprep.subr.mxu0 0.0
  %1633 = vmatpush1.msra.mxu0 0.0
  %1634 = vmatprep.subr.mxu0 0.0
  %1635 = vmatpush1.msra.mxu0 0.0
  %1636 = vmatprep.subr.mxu0 0.0
  %1637 = vmatpush1.msra.mxu0 0.0
  %1638 = vmatprep.subr.mxu0 0.0
  %1639 = vmatpush1.msra.mxu0 0.0
  %1640 = vmatprep.subr.mxu0 0.0
  %1641 = vmatpush1.msra.mxu0 0.0
  %1642 = vmatprep.subr.mxu0 0.0
  %1643 = vmatpush1.msra.mxu0 0.0
  %1644 = vmatprep.subr.mxu0 0.0
  %1645 = vmatpush1.msra.mxu0 0.0
  %1646 = vmatprep.subr.mxu0 0.0
  %1647 = vmatpush1.msra.mxu0 %v122
  %1648 = vmatprep.subr.mxu0 0.0
  %1649 = vmatpush1.msra.mxu0 %v121
  %1650 = vmatprep.subr.mxu0 0.0
  %1651 = vmatpush2.msra.mxu0 0.0
  %1652 = vmatprep.subr.mxu0 0.0
  %1653 = vmatpush2.msra.mxu0 0.0
  %1654 = vmatprep.subr.mxu0 0.0
  %1655 = vmatpush2.msra.mxu0 0.0
  %1656 = vmatprep.subr.mxu0 0.0
  %1657 = vmatpush2.msra.mxu0 0.0
  %1658 = vmatprep.subr.mxu0 0.0
  %1659 = vmatpush2.msra.mxu0 0.0
  %1660 = vmatprep.subr.mxu0 0.0
  %1661 = vmatpush2.msra.mxu0 0.0
  %1662 = vmatprep.subr.mxu0 0.0
  %1663 = vmatpush2.msra.mxu0 0.0
  %1664 = vmatprep.subr.mxu0 0.0
  %1665 = vmatpush2.msra.mxu0 0.0
  %1666 = vmatprep.subr.mxu0 0.0
  %1667 = vmatpush2.msra.mxu0 0.0
  %1668 = vmatprep.subr.mxu0 0.0
  %1669 = vmatpush2.msra.mxu0 0.0
  %1670 = vmatprep.subr.mxu0 0.0
  %1671 = vmatpush2.msra.mxu0 0.0
  %1672 = vmatprep.subr.mxu0 0.0
  %1673 = vmatpush2.msra.mxu0 0.0
  %1674 = vmatprep.subr.mxu0 0.0
  %1675 = vmatpush2.msra.mxu0 0.0
  %1676 = vmatprep.subr.mxu0 0.0
  %1677 = vmatpush2.msra.mxu0 0.0
  %1678 = vmatprep.subr.mxu0 0.0
  %1679 = vmatpush2.msra.mxu0 0.0
  %1680 = vmatprep.subr.mxu0 0.0
  %1681 = vmatpush2.msra.mxu0 0.0
  %1682 = vmatprep.mubr.f32.mxu0 0.0
  %1683 = vmatmul.mubr.f32.gmra.mxu0 %v1616
  %v1684 = vpop.f32.mrf.mxu0
  %v1685 = vadd.f32 0.0, %v1684
  %v1686 = vpop.f32.mrf.mxu0
  %1687 = vdwg.mxu0
  %v1689 = vsel %vm227, %v31, 0
  %1691 = vmatprep.subr.mxu0 0.0
  %1692 = vmatpush1.msra.mxu0 0.0
  %1693 = vmatprep.subr.mxu0 0.0
  %1694 = vmatpush1.msra.mxu0 0.0
  %1695 = vmatprep.subr.mxu0 0.0
  %1696 = vmatpush1.msra.mxu0 0.0
  %1697 = vmatprep.subr.mxu0 0.0
  %1698 = vmatpush1.msra.mxu0 0.0
  %1699 = vmatprep.subr.mxu0 0.0
  %1700 = vmatpush1.msra.mxu0 0.0
  %1701 = vmatprep.subr.mxu0 0.0
  %1702 = vmatpush1.msra.mxu0 0.0
  %1703 = vmatprep.subr.mxu0 0.0
  %1704 = vmatpush1.msra.mxu0 0.0
  %1705 = vmatprep.subr.mxu0 0.0
  %1706 = vmatpush1.msra.mxu0 0.0
  %1707 = vmatprep.subr.mxu0 0.0
  %1708 = vmatpush1.msra.mxu0 0.0
  %1709 = vmatprep.subr.mxu0 0.0
  %1710 = vmatpush1.msra.mxu0 0.0
  %1711 = vmatprep.subr.mxu0 0.0
  %1712 = vmatpush1.msra.mxu0 0.0
  %1713 = vmatprep.subr.mxu0 0.0
  %1714 = vmatpush1.msra.mxu0 0.0
  %1715 = vmatprep.subr.mxu0 0.0
  %1716 = vmatpush1.msra.mxu0 0.0
  %1717 = vmatprep.subr.mxu0 0.0
  %1718 = vmatpush1.msra.mxu0 0.0
  %1719 = vmatprep.subr.mxu0 0.0
  %1720 = vmatpush1.msra.mxu0 %v124
  %1721 = vmatprep.subr.mxu0 0.0
  %1722 = vmatpush1.msra.mxu0 %v123
  %1723 = vmatprep.subr.mxu0 0.0
  %1724 = vmatpush2.msra.mxu0 0.0
  %1725 = vmatprep.subr.mxu0 0.0
  %1726 = vmatpush2.msra.mxu0 0.0
  %1727 = vmatprep.subr.mxu0 0.0
  %1728 = vmatpush2.msra.mxu0 0.0
  %1729 = vmatprep.subr.mxu0 0.0
  %1730 = vmatpush2.msra.mxu0 0.0
  %1731 = vmatprep.subr.mxu0 0.0
  %1732 = vmatpush2.msra.mxu0 0.0
  %1733 = vmatprep.subr.mxu0 0.0
  %1734 = vmatpush2.msra.mxu0 0.0
  %1735 = vmatprep.subr.mxu0 0.0
  %1736 = vmatpush2.msra.mxu0 0.0
  %1737 = vmatprep.subr.mxu0 0.0
  %1738 = vmatpush2.msra.mxu0 0.0
  %1739 = vmatprep.subr.mxu0 0.0
  %1740 = vmatpush2.msra.mxu0 0.0
  %1741 = vmatprep.subr.mxu0 0.0
  %1742 = vmatpush2.msra.mxu0 0.0
  %1743 = vmatprep.subr.mxu0 0.0
  %1744 = vmatpush2.msra.mxu0 0.0
  %1745 = vmatprep.subr.mxu0 0.0
  %1746 = vmatpush2.msra.mxu0 0.0
  %1747 = vmatprep.subr.mxu0 0.0
  %1748 = vmatpush2.msra.mxu0 0.0
  %1749 = vmatprep.subr.mxu0 0.0
  %1750 = vmatpush2.msra.mxu0 0.0
  %1751 = vmatprep.subr.mxu0 0.0
  %1752 = vmatpush2.msra.mxu0 0.0
  %1753 = vmatprep.subr.mxu0 0.0
  %1754 = vmatpush2.msra.mxu0 0.0
  %1755 = vmatprep.mubr.f32.mxu0 0.0
  %1756 = vmatmul.mubr.f32.gmra.mxu0 %v1689
  %v1757 = vpop.f32.mrf.mxu0
  %v1758 = vadd.f32 0.0, %v1757
  %v1759 = vpop.f32.mrf.mxu0
  %1760 = vdwg.mxu0
  %v1762 = vsel %vm227, %v32, 0
  %1764 = vmatprep.subr.mxu0 0.0
  %1765 = vmatpush1.msra.mxu0 0.0
  %1766 = vmatprep.subr.mxu0 0.0
  %1767 = vmatpush1.msra.mxu0 0.0
  %1768 = vmatprep.subr.mxu0 0.0
  %1769 = vmatpush1.msra.mxu0 0.0
  %1770 = vmatprep.subr.mxu0 0.0
  %1771 = vmatpush1.msra.mxu0 0.0
  %1772 = vmatprep.subr.mxu0 0.0
  %1773 = vmatpush1.msra.mxu0 0.0
  %1774 = vmatprep.subr.mxu0 0.0
  %1775 = vmatpush1.msra.mxu0 0.0
  %1776 = vmatprep.subr.mxu0 0.0
  %1777 = vmatpush1.msra.mxu0 0.0
  %1778 = vmatprep.subr.mxu0 0.0
  %1779 = vmatpush1.msra.mxu0 0.0
  %1780 = vmatprep.subr.mxu0 0.0
  %1781 = vmatpush1.msra.mxu0 0.0
  %1782 = vmatprep.subr.mxu0 0.0
  %1783 = vmatpush1.msra.mxu0 0.0
  %1784 = vmatprep.subr.mxu0 0.0
  %1785 = vmatpush1.msra.mxu0 0.0
  %1786 = vmatprep.subr.mxu0 0.0
  %1787 = vmatpush1.msra.mxu0 0.0
  %1788 = vmatprep.subr.mxu0 0.0
  %1789 = vmatpush1.msra.mxu0 0.0
  %1790 = vmatprep.subr.mxu0 0.0
  %1791 = vmatpush1.msra.mxu0 0.0
  %1792 = vmatprep.subr.mxu0 0.0
  %1793 = vmatpush1.msra.mxu0 %v126
  %1794 = vmatprep.subr.mxu0 0.0
  %1795 = vmatpush1.msra.mxu0 %v125
  %1796 = vmatprep.subr.mxu0 0.0
  %1797 = vmatpush2.msra.mxu0 0.0
  %1798 = vmatprep.subr.mxu0 0.0
  %1799 = vmatpush2.msra.mxu0 0.0
  %1800 = vmatprep.subr.mxu0 0.0
  %1801 = vmatpush2.msra.mxu0 0.0
  %1802 = vmatprep.subr.mxu0 0.0
  %1803 = vmatpush2.msra.mxu0 0.0
  %1804 = vmatprep.subr.mxu0 0.0
  %1805 = vmatpush2.msra.mxu0 0.0
  %1806 = vmatprep.subr.mxu0 0.0
  %1807 = vmatpush2.msra.mxu0 0.0
  %1808 = vmatprep.subr.mxu0 0.0
  %1809 = vmatpush2.msra.mxu0 0.0
  %1810 = vmatprep.subr.mxu0 0.0
  %1811 = vmatpush2.msra.mxu0 0.0
  %1812 = vmatprep.subr.mxu0 0.0
  %1813 = vmatpush2.msra.mxu0 0.0
  %1814 = vmatprep.subr.mxu0 0.0
  %1815 = vmatpush2.msra.mxu0 0.0
  %1816 = vmatprep.subr.mxu0 0.0
  %1817 = vmatpush2.msra.mxu0 0.0
  %1818 = vmatprep.subr.mxu0 0.0
  %1819 = vmatpush2.msra.mxu0 0.0
  %1820 = vmatprep.subr.mxu0 0.0
  %1821 = vmatpush2.msra.mxu0 0.0
  %1822 = vmatprep.subr.mxu0 0.0
  %1823 = vmatpush2.msra.mxu0 0.0
  %1824 = vmatprep.subr.mxu0 0.0
  %1825 = vmatpush2.msra.mxu0 0.0
  %1826 = vmatprep.subr.mxu0 0.0
  %1827 = vmatpush2.msra.mxu0 0.0
  %1828 = vmatprep.mubr.f32.mxu0 0.0
  %1829 = vmatmul.mubr.f32.gmra.mxu0 %v1762
  %v1830 = vpop.f32.mrf.mxu0
  %v1831 = vadd.f32 0.0, %v1830
  %v1832 = vpop.f32.mrf.mxu0
  %1833 = vdwg.mxu0
  %v1835 = vsel %vm227, %v33, 0
  %1837 = vmatprep.subr.mxu0 0.0
  %1838 = vmatpush1.msra.mxu0 0.0
  %1839 = vmatprep.subr.mxu0 0.0
  %1840 = vmatpush1.msra.mxu0 0.0
  %1841 = vmatprep.subr.mxu0 0.0
  %1842 = vmatpush1.msra.mxu0 0.0
  %1843 = vmatprep.subr.mxu0 0.0
  %1844 = vmatpush1.msra.mxu0 0.0
  %1845 = vmatprep.subr.mxu0 0.0
  %1846 = vmatpush1.msra.mxu0 0.0
  %1847 = vmatprep.subr.mxu0 0.0
  %1848 = vmatpush1.msra.mxu0 0.0
  %1849 = vmatprep.subr.mxu0 0.0
  %1850 = vmatpush1.msra.mxu0 0.0
  %1851 = vmatprep.subr.mxu0 0.0
  %1852 = vmatpush1.msra.mxu0 0.0
  %1853 = vmatprep.subr.mxu0 0.0
  %1854 = vmatpush1.msra.mxu0 0.0
  %1855 = vmatprep.subr.mxu0 0.0
  %1856 = vmatpush1.msra.mxu0 0.0
  %1857 = vmatprep.subr.mxu0 0.0
  %1858 = vmatpush1.msra.mxu0 0.0
  %1859 = vmatprep.subr.mxu0 0.0
  %1860 = vmatpush1.msra.mxu0 0.0
  %1861 = vmatprep.subr.mxu0 0.0
  %1862 = vmatpush1.msra.mxu0 0.0
  %1863 = vmatprep.subr.mxu0 0.0
  %1864 = vmatpush1.msra.mxu0 0.0
  %1865 = vmatprep.subr.mxu0 0.0
  %1866 = vmatpush1.msra.mxu0 %v128
  %1867 = vmatprep.subr.mxu0 0.0
  %1868 = vmatpush1.msra.mxu0 %v127
  %1869 = vmatprep.subr.mxu0 0.0
  %1870 = vmatpush2.msra.mxu0 0.0
  %1871 = vmatprep.subr.mxu0 0.0
  %1872 = vmatpush2.msra.mxu0 0.0
  %1873 = vmatprep.subr.mxu0 0.0
  %1874 = vmatpush2.msra.mxu0 0.0
  %1875 = vmatprep.subr.mxu0 0.0
  %1876 = vmatpush2.msra.mxu0 0.0
  %1877 = vmatprep.subr.mxu0 0.0
  %1878 = vmatpush2.msra.mxu0 0.0
  %1879 = vmatprep.subr.mxu0 0.0
  %1880 = vmatpush2.msra.mxu0 0.0
  %1881 = vmatprep.subr.mxu0 0.0
  %1882 = vmatpush2.msra.mxu0 0.0
  %1883 = vmatprep.subr.mxu0 0.0
  %1884 = vmatpush2.msra.mxu0 0.0
  %1885 = vmatprep.subr.mxu0 0.0
  %1886 = vmatpush2.msra.mxu0 0.0
  %1887 = vmatprep.subr.mxu0 0.0
  %1888 = vmatpush2.msra.mxu0 0.0
  %1889 = vmatprep.subr.mxu0 0.0
  %1890 = vmatpush2.msra.mxu0 0.0
  %1891 = vmatprep.subr.mxu0 0.0
  %1892 = vmatpush2.msra.mxu0 0.0
  %1893 = vmatprep.subr.mxu0 0.0
  %1894 = vmatpush2.msra.mxu0 0.0
  %1895 = vmatprep.subr.mxu0 0.0
  %1896 = vmatpush2.msra.mxu0 0.0
  %1897 = vmatprep.subr.mxu0 0.0
  %1898 = vmatpush2.msra.mxu0 0.0
  %1899 = vmatprep.subr.mxu0 0.0
  %1900 = vmatpush2.msra.mxu0 0.0
  %1901 = vmatprep.mubr.f32.mxu0 0.0
  %1902 = vmatmul.mubr.f32.gmra.mxu0 %v1835
  %v1903 = vpop.f32.mrf.mxu0
  %v1904 = vadd.f32 0.0, %v1903
  %v1905 = vpop.f32.mrf.mxu0
  %1906 = vdwg.mxu0
  %v1908 = vsel %vm227, %v34, 0
  %1910 = vmatprep.subr.mxu0 0.0
  %1911 = vmatpush1.msra.mxu0 0.0
  %1912 = vmatprep.subr.mxu0 0.0
  %1913 = vmatpush1.msra.mxu0 0.0
  %1914 = vmatprep.subr.mxu0 0.0
  %1915 = vmatpush1.msra.mxu0 0.0
  %1916 = vmatprep.subr.mxu0 0.0
  %1917 = vmatpush1.msra.mxu0 0.0
  %1918 = vmatprep.subr.mxu0 0.0
  %1919 = vmatpush1.msra.mxu0 0.0
  %1920 = vmatprep.subr.mxu0 0.0
  %1921 = vmatpush1.msra.mxu0 0.0
  %1922 = vmatprep.subr.mxu0 0.0
  %1923 = vmatpush1.msra.mxu0 0.0
  %1924 = vmatprep.subr.mxu0 0.0
  %1925 = vmatpush1.msra.mxu0 0.0
  %1926 = vmatprep.subr.mxu0 0.0
  %1927 = vmatpush1.msra.mxu0 0.0
  %1928 = vmatprep.subr.mxu0 0.0
  %1929 = vmatpush1.msra.mxu0 0.0
  %1930 = vmatprep.subr.mxu0 0.0
  %1931 = vmatpush1.msra.mxu0 0.0
  %1932 = vmatprep.subr.mxu0 0.0
  %1933 = vmatpush1.msra.mxu0 0.0
  %1934 = vmatprep.subr.mxu0 0.0
  %1935 = vmatpush1.msra.mxu0 0.0
  %1936 = vmatprep.subr.mxu0 0.0
  %1937 = vmatpush1.msra.mxu0 0.0
  %1938 = vmatprep.subr.mxu0 0.0
  %1939 = vmatpush1.msra.mxu0 %v130
  %1940 = vmatprep.subr.mxu0 0.0
  %1941 = vmatpush1.msra.mxu0 %v129
  %1942 = vmatprep.subr.mxu0 0.0
  %1943 = vmatpush2.msra.mxu0 0.0
  %1944 = vmatprep.subr.mxu0 0.0
  %1945 = vmatpush2.msra.mxu0 0.0
  %1946 = vmatprep.subr.mxu0 0.0
  %1947 = vmatpush2.msra.mxu0 0.0
  %1948 = vmatprep.subr.mxu0 0.0
  %1949 = vmatpush2.msra.mxu0 0.0
  %1950 = vmatprep.subr.mxu0 0.0
  %1951 = vmatpush2.msra.mxu0 0.0
  %1952 = vmatprep.subr.mxu0 0.0
  %1953 = vmatpush2.msra.mxu0 0.0
  %1954 = vmatprep.subr.mxu0 0.0
  %1955 = vmatpush2.msra.mxu0 0.0
  %1956 = vmatprep.subr.mxu0 0.0
  %1957 = vmatpush2.msra.mxu0 0.0
  %1958 = vmatprep.subr.mxu0 0.0
  %1959 = vmatpush2.msra.mxu0 0.0
  %1960 = vmatprep.subr.mxu0 0.0
  %1961 = vmatpush2.msra.mxu0 0.0
  %1962 = vmatprep.subr.mxu0 0.0
  %1963 = vmatpush2.msra.mxu0 0.0
  %1964 = vmatprep.subr.mxu0 0.0
  %1965 = vmatpush2.msra.mxu0 0.0
  %1966 = vmatprep.subr.mxu0 0.0
  %1967 = vmatpush2.msra.mxu0 0.0
  %1968 = vmatprep.subr.mxu0 0.0
  %1969 = vmatpush2.msra.mxu0 0.0
  %1970 = vmatprep.subr.mxu0 0.0
  %1971 = vmatpush2.msra.mxu0 0.0
  %1972 = vmatprep.subr.mxu0 0.0
  %1973 = vmatpush2.msra.mxu0 0.0
  %1974 = vmatprep.mubr.f32.mxu0 0.0
  %1975 = vmatmul.mubr.f32.gmra.mxu0 %v1908
  %v1976 = vpop.f32.mrf.mxu0
  %v1977 = vadd.f32 0.0, %v1976
  %v1978 = vpop.f32.mrf.mxu0
  %1979 = vdwg.mxu0
  %v1981 = vsel %vm227, %v35, 0
  %1983 = vmatprep.subr.mxu0 0.0
  %1984 = vmatpush1.msra.mxu0 0.0
  %1985 = vmatprep.subr.mxu0 0.0
  %1986 = vmatpush1.msra.mxu0 0.0
  %1987 = vmatprep.subr.mxu0 0.0
  %1988 = vmatpush1.msra.mxu0 0.0
  %1989 = vmatprep.subr.mxu0 0.0
  %1990 = vmatpush1.msra.mxu0 0.0
  %1991 = vmatprep.subr.mxu0 0.0
  %1992 = vmatpush1.msra.mxu0 0.0
  %1993 = vmatprep.subr.mxu0 0.0
  %1994 = vmatpush1.msra.mxu0 0.0
  %1995 = vmatprep.subr.mxu0 0.0
  %1996 = vmatpush1.msra.mxu0 0.0
  %1997 = vmatprep.subr.mxu0 0.0
  %1998 = vmatpush1.msra.mxu0 0.0
  %1999 = vmatprep.subr.mxu0 0.0
  %2000 = vmatpush1.msra.mxu0 0.0
  %2001 = vmatprep.subr.mxu0 0.0
  %2002 = vmatpush1.msra.mxu0 0.0
  %2003 = vmatprep.subr.mxu0 0.0
  %2004 = vmatpush1.msra.mxu0 0.0
  %2005 = vmatprep.subr.mxu0 0.0
  %2006 = vmatpush1.msra.mxu0 0.0
  %2007 = vmatprep.subr.mxu0 0.0
  %2008 = vmatpush1.msra.mxu0 0.0
  %2009 = vmatprep.subr.mxu0 0.0
  %2010 = vmatpush1.msra.mxu0 0.0
  %2011 = vmatprep.subr.mxu0 0.0
  %2012 = vmatpush1.msra.mxu0 %v132
  %2013 = vmatprep.subr.mxu0 0.0
  %2014 = vmatpush1.msra.mxu0 %v131
  %2015 = vmatprep.subr.mxu0 0.0
  %2016 = vmatpush2.msra.mxu0 0.0
  %2017 = vmatprep.subr.mxu0 0.0
  %2018 = vmatpush2.msra.mxu0 0.0
  %2019 = vmatprep.subr.mxu0 0.0
  %2020 = vmatpush2.msra.mxu0 0.0
  %2021 = vmatprep.subr.mxu0 0.0
  %2022 = vmatpush2.msra.mxu0 0.0
  %2023 = vmatprep.subr.mxu0 0.0
  %2024 = vmatpush2.msra.mxu0 0.0
  %2025 = vmatprep.subr.mxu0 0.0
  %2026 = vmatpush2.msra.mxu0 0.0
  %2027 = vmatprep.subr.mxu0 0.0
  %2028 = vmatpush2.msra.mxu0 0.0
  %2029 = vmatprep.subr.mxu0 0.0
  %2030 = vmatpush2.msra.mxu0 0.0
  %2031 = vmatprep.subr.mxu0 0.0
  %2032 = vmatpush2.msra.mxu0 0.0
  %2033 = vmatprep.subr.mxu0 0.0
  %2034 = vmatpush2.msra.mxu0 0.0
  %2035 = vmatprep.subr.mxu0 0.0
  %2036 = vmatpush2.msra.mxu0 0.0
  %2037 = vmatprep.subr.mxu0 0.0
  %2038 = vmatpush2.msra.mxu0 0.0
  %2039 = vmatprep.subr.mxu0 0.0
  %2040 = vmatpush2.msra.mxu0 0.0
  %2041 = vmatprep.subr.mxu0 0.0
  %2042 = vmatpush2.msra.mxu0 0.0
  %2043 = vmatprep.subr.mxu0 0.0
  %2044 = vmatpush2.msra.mxu0 0.0
  %2045 = vmatprep.subr.mxu0 0.0
  %2046 = vmatpush2.msra.mxu0 0.0
  %2047 = vmatprep.mubr.f32.mxu0 0.0
  %2048 = vmatmul.mubr.f32.gmra.mxu0 %v1981
  %v2049 = vpop.f32.mrf.mxu0
  %v2050 = vadd.f32 0.0, %v2049
  %v2051 = vpop.f32.mrf.mxu0
  %2052 = vdwg.mxu0
  %v2054 = vsel %vm227, %v36, 0
  %2056 = vmatprep.subr.mxu0 0.0
  %2057 = vmatpush1.msra.mxu0 0.0
  %2058 = vmatprep.subr.mxu0 0.0
  %2059 = vmatpush1.msra.mxu0 0.0
  %2060 = vmatprep.subr.mxu0 0.0
  %2061 = vmatpush1.msra.mxu0 0.0
  %2062 = vmatprep.subr.mxu0 0.0
  %2063 = vmatpush1.msra.mxu0 0.0
  %2064 = vmatprep.subr.mxu0 0.0
  %2065 = vmatpush1.msra.mxu0 0.0
  %2066 = vmatprep.subr.mxu0 0.0
  %2067 = vmatpush1.msra.mxu0 0.0
  %2068 = vmatprep.subr.mxu0 0.0
  %2069 = vmatpush1.msra.mxu0 0.0
  %2070 = vmatprep.subr.mxu0 0.0
  %2071 = vmatpush1.msra.mxu0 0.0
  %2072 = vmatprep.subr.mxu0 0.0
  %2073 = vmatpush1.msra.mxu0 0.0
  %2074 = vmatprep.subr.mxu0 0.0
  %2075 = vmatpush1.msra.mxu0 0.0
  %2076 = vmatprep.subr.mxu0 0.0
  %2077 = vmatpush1.msra.mxu0 0.0
  %2078 = vmatprep.subr.mxu0 0.0
  %2079 = vmatpush1.msra.mxu0 0.0
  %2080 = vmatprep.subr.mxu0 0.0
  %2081 = vmatpush1.msra.mxu0 0.0
  %2082 = vmatprep.subr.mxu0 0.0
  %2083 = vmatpush1.msra.mxu0 0.0
  %2084 = vmatprep.subr.mxu0 0.0
  %2085 = vmatpush1.msra.mxu0 %v134
  %2086 = vmatprep.subr.mxu0 0.0
  %2087 = vmatpush1.msra.mxu0 %v133
  %2088 = vmatprep.subr.mxu0 0.0
  %2089 = vmatpush2.msra.mxu0 0.0
  %2090 = vmatprep.subr.mxu0 0.0
  %2091 = vmatpush2.msra.mxu0 0.0
  %2092 = vmatprep.subr.mxu0 0.0
  %2093 = vmatpush2.msra.mxu0 0.0
  %2094 = vmatprep.subr.mxu0 0.0
  %2095 = vmatpush2.msra.mxu0 0.0
  %2096 = vmatprep.subr.mxu0 0.0
  %2097 = vmatpush2.msra.mxu0 0.0
  %2098 = vmatprep.subr.mxu0 0.0
  %2099 = vmatpush2.msra.mxu0 0.0
  %2100 = vmatprep.subr.mxu0 0.0
  %2101 = vmatpush2.msra.mxu0 0.0
  %2102 = vmatprep.subr.mxu0 0.0
  %2103 = vmatpush2.msra.mxu0 0.0
  %2104 = vmatprep.subr.mxu0 0.0
  %2105 = vmatpush2.msra.mxu0 0.0
  %2106 = vmatprep.subr.mxu0 0.0
  %2107 = vmatpush2.msra.mxu0 0.0
  %2108 = vmatprep.subr.mxu0 0.0
  %2109 = vmatpush2.msra.mxu0 0.0
  %2110 = vmatprep.subr.mxu0 0.0
  %2111 = vmatpush2.msra.mxu0 0.0
  %2112 = vmatprep.subr.mxu0 0.0
  %2113 = vmatpush2.msra.mxu0 0.0
  %2114 = vmatprep.subr.mxu0 0.0
  %2115 = vmatpush2.msra.mxu0 0.0
  %2116 = vmatprep.subr.mxu0 0.0
  %2117 = vmatpush2.msra.mxu0 0.0
  %2118 = vmatprep.subr.mxu0 0.0
  %2119 = vmatpush2.msra.mxu0 0.0
  %2120 = vmatprep.mubr.f32.mxu0 0.0
  %2121 = vmatmul.mubr.f32.gmra.mxu0 %v2054
  %v2122 = vpop.f32.mrf.mxu0
  %v2123 = vadd.f32 0.0, %v2122
  %v2124 = vpop.f32.mrf.mxu0
  %2125 = vdwg.mxu0
  %v2127 = vsel %vm227, %v37, 0
  %2129 = vmatprep.subr.mxu0 0.0
  %2130 = vmatpush1.msra.mxu0 0.0
  %2131 = vmatprep.subr.mxu0 0.0
  %2132 = vmatpush1.msra.mxu0 0.0
  %2133 = vmatprep.subr.mxu0 0.0
  %2134 = vmatpush1.msra.mxu0 0.0
  %2135 = vmatprep.subr.mxu0 0.0
  %2136 = vmatpush1.msra.mxu0 0.0
  %2137 = vmatprep.subr.mxu0 0.0
  %2138 = vmatpush1.msra.mxu0 0.0
  %2139 = vmatprep.subr.mxu0 0.0
  %2140 = vmatpush1.msra.mxu0 0.0
  %2141 = vmatprep.subr.mxu0 0.0
  %2142 = vmatpush1.msra.mxu0 0.0
  %2143 = vmatprep.subr.mxu0 0.0
  %2144 = vmatpush1.msra.mxu0 0.0
  %2145 = vmatprep.subr.mxu0 0.0
  %2146 = vmatpush1.msra.mxu0 0.0
  %2147 = vmatprep.subr.mxu0 0.0
  %2148 = vmatpush1.msra.mxu0 0.0
  %2149 = vmatprep.subr.mxu0 0.0
  %2150 = vmatpush1.msra.mxu0 0.0
  %2151 = vmatprep.subr.mxu0 0.0
  %2152 = vmatpush1.msra.mxu0 0.0
  %2153 = vmatprep.subr.mxu0 0.0
  %2154 = vmatpush1.msra.mxu0 0.0
  %2155 = vmatprep.subr.mxu0 0.0
  %2156 = vmatpush1.msra.mxu0 0.0
  %2157 = vmatprep.subr.mxu0 0.0
  %2158 = vmatpush1.msra.mxu0 %v136
  %2159 = vmatprep.subr.mxu0 0.0
  %2160 = vmatpush1.msra.mxu0 %v135
  %2161 = vmatprep.subr.mxu0 0.0
  %2162 = vmatpush2.msra.mxu0 0.0
  %2163 = vmatprep.subr.mxu0 0.0
  %2164 = vmatpush2.msra.mxu0 0.0
  %2165 = vmatprep.subr.mxu0 0.0
  %2166 = vmatpush2.msra.mxu0 0.0
  %2167 = vmatprep.subr.mxu0 0.0
  %2168 = vmatpush2.msra.mxu0 0.0
  %2169 = vmatprep.subr.mxu0 0.0
  %2170 = vmatpush2.msra.mxu0 0.0
  %2171 = vmatprep.subr.mxu0 0.0
  %2172 = vmatpush2.msra.mxu0 0.0
  %2173 = vmatprep.subr.mxu0 0.0
  %2174 = vmatpush2.msra.mxu0 0.0
  %2175 = vmatprep.subr.mxu0 0.0
  %2176 = vmatpush2.msra.mxu0 0.0
  %2177 = vmatprep.subr.mxu0 0.0
  %2178 = vmatpush2.msra.mxu0 0.0
  %2179 = vmatprep.subr.mxu0 0.0
  %2180 = vmatpush2.msra.mxu0 0.0
  %2181 = vmatprep.subr.mxu0 0.0
  %2182 = vmatpush2.msra.mxu0 0.0
  %2183 = vmatprep.subr.mxu0 0.0
  %2184 = vmatpush2.msra.mxu0 0.0
  %2185 = vmatprep.subr.mxu0 0.0
  %2186 = vmatpush2.msra.mxu0 0.0
  %2187 = vmatprep.subr.mxu0 0.0
  %2188 = vmatpush2.msra.mxu0 0.0
  %2189 = vmatprep.subr.mxu0 0.0
  %2190 = vmatpush2.msra.mxu0 0.0
  %2191 = vmatprep.subr.mxu0 0.0
  %2192 = vmatpush2.msra.mxu0 0.0
  %2193 = vmatprep.mubr.f32.mxu0 0.0
  %2194 = vmatmul.mubr.f32.gmra.mxu0 %v2127
  %v2195 = vpop.f32.mrf.mxu0
  %v2196 = vadd.f32 0.0, %v2195
  %v2197 = vpop.f32.mrf.mxu0
  %2198 = vdwg.mxu0
  %v2200 = vsel %vm227, %v38, 0
  %2202 = vmatprep.subr.mxu0 0.0
  %2203 = vmatpush1.msra.mxu0 0.0
  %2204 = vmatprep.subr.mxu0 0.0
  %2205 = vmatpush1.msra.mxu0 0.0
  %2206 = vmatprep.subr.mxu0 0.0
  %2207 = vmatpush1.msra.mxu0 0.0
  %2208 = vmatprep.subr.mxu0 0.0
  %2209 = vmatpush1.msra.mxu0 0.0
  %2210 = vmatprep.subr.mxu0 0.0
  %2211 = vmatpush1.msra.mxu0 0.0
  %2212 = vmatprep.subr.mxu0 0.0
  %2213 = vmatpush1.msra.mxu0 0.0
  %2214 = vmatprep.subr.mxu0 0.0
  %2215 = vmatpush1.msra.mxu0 0.0
  %2216 = vmatprep.subr.mxu0 0.0
  %2217 = vmatpush1.msra.mxu0 0.0
  %2218 = vmatprep.subr.mxu0 0.0
  %2219 = vmatpush1.msra.mxu0 0.0
  %2220 = vmatprep.subr.mxu0 0.0
  %2221 = vmatpush1.msra.mxu0 0.0
  %2222 = vmatprep.subr.mxu0 0.0
  %2223 = vmatpush1.msra.mxu0 0.0
  %2224 = vmatprep.subr.mxu0 0.0
  %2225 = vmatpush1.msra.mxu0 0.0
  %2226 = vmatprep.subr.mxu0 0.0
  %2227 = vmatpush1.msra.mxu0 0.0
  %2228 = vmatprep.subr.mxu0 0.0
  %2229 = vmatpush1.msra.mxu0 0.0
  %2230 = vmatprep.subr.mxu0 0.0
  %2231 = vmatpush1.msra.mxu0 %v138
  %2232 = vmatprep.subr.mxu0 0.0
  %2233 = vmatpush1.msra.mxu0 %v137
  %2234 = vmatprep.subr.mxu0 0.0
  %2235 = vmatpush2.msra.mxu0 0.0
  %2236 = vmatprep.subr.mxu0 0.0
  %2237 = vmatpush2.msra.mxu0 0.0
  %2238 = vmatprep.subr.mxu0 0.0
  %2239 = vmatpush2.msra.mxu0 0.0
  %2240 = vmatprep.subr.mxu0 0.0
  %2241 = vmatpush2.msra.mxu0 0.0
  %2242 = vmatprep.subr.mxu0 0.0
  %2243 = vmatpush2.msra.mxu0 0.0
  %2244 = vmatprep.subr.mxu0 0.0
  %2245 = vmatpush2.msra.mxu0 0.0
  %2246 = vmatprep.subr.mxu0 0.0
  %2247 = vmatpush2.msra.mxu0 0.0
  %2248 = vmatprep.subr.mxu0 0.0
  %2249 = vmatpush2.msra.mxu0 0.0
  %2250 = vmatprep.subr.mxu0 0.0
  %2251 = vmatpush2.msra.mxu0 0.0
  %2252 = vmatprep.subr.mxu0 0.0
  %2253 = vmatpush2.msra.mxu0 0.0
  %2254 = vmatprep.subr.mxu0 0.0
  %2255 = vmatpush2.msra.mxu0 0.0
  %2256 = vmatprep.subr.mxu0 0.0
  %2257 = vmatpush2.msra.mxu0 0.0
  %2258 = vmatprep.subr.mxu0 0.0
  %2259 = vmatpush2.msra.mxu0 0.0
  %2260 = vmatprep.subr.mxu0 0.0
  %2261 = vmatpush2.msra.mxu0 0.0
  %2262 = vmatprep.subr.mxu0 0.0
  %2263 = vmatpush2.msra.mxu0 0.0
  %2264 = vmatprep.subr.mxu0 0.0
  %2265 = vmatpush2.msra.mxu0 0.0
  %2266 = vmatprep.mubr.f32.mxu0 0.0
  %2267 = vmatmul.mubr.f32.gmra.mxu0 %v2200
  %v2268 = vpop.f32.mrf.mxu0
  %v2269 = vadd.f32 0.0, %v2268
  %v2270 = vpop.f32.mrf.mxu0
  %2271 = vdwg.mxu0
  %v2273 = vsel %vm227, %v39, 0
  %2275 = vmatprep.subr.mxu0 0.0
  %2276 = vmatpush1.msra.mxu0 0.0
  %2277 = vmatprep.subr.mxu0 0.0
  %2278 = vmatpush1.msra.mxu0 0.0
  %2279 = vmatprep.subr.mxu0 0.0
  %2280 = vmatpush1.msra.mxu0 0.0
  %2281 = vmatprep.subr.mxu0 0.0
  %2282 = vmatpush1.msra.mxu0 0.0
  %2283 = vmatprep.subr.mxu0 0.0
  %2284 = vmatpush1.msra.mxu0 0.0
  %2285 = vmatprep.subr.mxu0 0.0
  %2286 = vmatpush1.msra.mxu0 0.0
  %2287 = vmatprep.subr.mxu0 0.0
  %2288 = vmatpush1.msra.mxu0 0.0
  %2289 = vmatprep.subr.mxu0 0.0
  %2290 = vmatpush1.msra.mxu0 0.0
  %2291 = vmatprep.subr.mxu0 0.0
  %2292 = vmatpush1.msra.mxu0 0.0
  %2293 = vmatprep.subr.mxu0 0.0
  %2294 = vmatpush1.msra.mxu0 0.0
  %2295 = vmatprep.subr.mxu0 0.0
  %2296 = vmatpush1.msra.mxu0 0.0
  %2297 = vmatprep.subr.mxu0 0.0
  %2298 = vmatpush1.msra.mxu0 0.0
  %2299 = vmatprep.subr.mxu0 0.0
  %2300 = vmatpush1.msra.mxu0 0.0
  %2301 = vmatprep.subr.mxu0 0.0
  %2302 = vmatpush1.msra.mxu0 0.0
  %2303 = vmatprep.subr.mxu0 0.0
  %2304 = vmatpush1.msra.mxu0 %v140
  %2305 = vmatprep.subr.mxu0 0.0
  %2306 = vmatpush1.msra.mxu0 %v139
  %2307 = vmatprep.subr.mxu0 0.0
  %2308 = vmatpush2.msra.mxu0 0.0
  %2309 = vmatprep.subr.mxu0 0.0
  %2310 = vmatpush2.msra.mxu0 0.0
  %2311 = vmatprep.subr.mxu0 0.0
  %2312 = vmatpush2.msra.mxu0 0.0
  %2313 = vmatprep.subr.mxu0 0.0
  %2314 = vmatpush2.msra.mxu0 0.0
  %2315 = vmatprep.subr.mxu0 0.0
  %2316 = vmatpush2.msra.mxu0 0.0
  %2317 = vmatprep.subr.mxu0 0.0
  %2318 = vmatpush2.msra.mxu0 0.0
  %2319 = vmatprep.subr.mxu0 0.0
  %2320 = vmatpush2.msra.mxu0 0.0
  %2321 = vmatprep.subr.mxu0 0.0
  %2322 = vmatpush2.msra.mxu0 0.0
  %2323 = vmatprep.subr.mxu0 0.0
  %2324 = vmatpush2.msra.mxu0 0.0
  %2325 = vmatprep.subr.mxu0 0.0
  %2326 = vmatpush2.msra.mxu0 0.0
  %2327 = vmatprep.subr.mxu0 0.0
  %2328 = vmatpush2.msra.mxu0 0.0
  %2329 = vmatprep.subr.mxu0 0.0
  %2330 = vmatpush2.msra.mxu0 0.0
  %2331 = vmatprep.subr.mxu0 0.0
  %2332 = vmatpush2.msra.mxu0 0.0
  %2333 = vmatprep.subr.mxu0 0.0
  %2334 = vmatpush2.msra.mxu0 0.0
  %2335 = vmatprep.subr.mxu0 0.0
  %2336 = vmatpush2.msra.mxu0 0.0
  %2337 = vmatprep.subr.mxu0 0.0
  %2338 = vmatpush2.msra.mxu0 0.0
  %2339 = vmatprep.mubr.f32.mxu0 0.0
  %2340 = vmatmul.mubr.f32.gmra.mxu0 %v2273
  %v2341 = vpop.f32.mrf.mxu0
  %v2342 = vadd.f32 0.0, %v2341
  %v2343 = vpop.f32.mrf.mxu0
  %2344 = vdwg.mxu0
  %v2346 = vsel %vm227, %v40, 0
  %2348 = vmatprep.subr.mxu0 0.0
  %2349 = vmatpush1.msra.mxu0 0.0
  %2350 = vmatprep.subr.mxu0 0.0
  %2351 = vmatpush1.msra.mxu0 0.0
  %2352 = vmatprep.subr.mxu0 0.0
  %2353 = vmatpush1.msra.mxu0 0.0
  %2354 = vmatprep.subr.mxu0 0.0
  %2355 = vmatpush1.msra.mxu0 0.0
  %2356 = vmatprep.subr.mxu0 0.0
  %2357 = vmatpush1.msra.mxu0 0.0
  %2358 = vmatprep.subr.mxu0 0.0
  %2359 = vmatpush1.msra.mxu0 0.0
  %2360 = vmatprep.subr.mxu0 0.0
  %2361 = vmatpush1.msra.mxu0 0.0
  %2362 = vmatprep.subr.mxu0 0.0
  %2363 = vmatpush1.msra.mxu0 0.0
  %2364 = vmatprep.subr.mxu0 0.0
  %2365 = vmatpush1.msra.mxu0 0.0
  %2366 = vmatprep.subr.mxu0 0.0
  %2367 = vmatpush1.msra.mxu0 0.0
  %2368 = vmatprep.subr.mxu0 0.0
  %2369 = vmatpush1.msra.mxu0 0.0
  %2370 = vmatprep.subr.mxu0 0.0
  %2371 = vmatpush1.msra.mxu0 0.0
  %2372 = vmatprep.subr.mxu0 0.0
  %2373 = vmatpush1.msra.mxu0 0.0
  %2374 = vmatprep.subr.mxu0 0.0
  %2375 = vmatpush1.msra.mxu0 0.0
  %2376 = vmatprep.subr.mxu0 0.0
  %2377 = vmatpush1.msra.mxu0 %v142
  %2378 = vmatprep.subr.mxu0 0.0
  %2379 = vmatpush1.msra.mxu0 %v141
  %2380 = vmatprep.subr.mxu0 0.0
  %2381 = vmatpush2.msra.mxu0 0.0
  %2382 = vmatprep.subr.mxu0 0.0
  %2383 = vmatpush2.msra.mxu0 0.0
  %2384 = vmatprep.subr.mxu0 0.0
  %2385 = vmatpush2.msra.mxu0 0.0
  %2386 = vmatprep.subr.mxu0 0.0
  %2387 = vmatpush2.msra.mxu0 0.0
  %2388 = vmatprep.subr.mxu0 0.0
  %2389 = vmatpush2.msra.mxu0 0.0
  %2390 = vmatprep.subr.mxu0 0.0
  %2391 = vmatpush2.msra.mxu0 0.0
  %2392 = vmatprep.subr.mxu0 0.0
  %2393 = vmatpush2.msra.mxu0 0.0
  %2394 = vmatprep.subr.mxu0 0.0
  %2395 = vmatpush2.msra.mxu0 0.0
  %2396 = vmatprep.subr.mxu0 0.0
  %2397 = vmatpush2.msra.mxu0 0.0
  %2398 = vmatprep.subr.mxu0 0.0
  %2399 = vmatpush2.msra.mxu0 0.0
  %2400 = vmatprep.subr.mxu0 0.0
  %2401 = vmatpush2.msra.mxu0 0.0
  %2402 = vmatprep.subr.mxu0 0.0
  %2403 = vmatpush2.msra.mxu0 0.0
  %2404 = vmatprep.subr.mxu0 0.0
  %2405 = vmatpush2.msra.mxu0 0.0
  %2406 = vmatprep.subr.mxu0 0.0
  %2407 = vmatpush2.msra.mxu0 0.0
  %2408 = vmatprep.subr.mxu0 0.0
  %2409 = vmatpush2.msra.mxu0 0.0
  %2410 = vmatprep.subr.mxu0 0.0
  %2411 = vmatpush2.msra.mxu0 0.0
  %2412 = vmatprep.mubr.f32.mxu0 0.0
  %2413 = vmatmul.mubr.f32.gmra.mxu0 %v2346
  %v2414 = vpop.f32.mrf.mxu0
  %v2415 = vadd.f32 0.0, %v2414
  %v2416 = vpop.f32.mrf.mxu0
  %2417 = vdwg.mxu0
  %v2419 = vsel %vm227, %v41, 0
  %2421 = vmatprep.subr.mxu0 0.0
  %2422 = vmatpush1.msra.mxu0 0.0
  %2423 = vmatprep.subr.mxu0 0.0
  %2424 = vmatpush1.msra.mxu0 0.0
  %2425 = vmatprep.subr.mxu0 0.0
  %2426 = vmatpush1.msra.mxu0 0.0
  %2427 = vmatprep.subr.mxu0 0.0
  %2428 = vmatpush1.msra.mxu0 0.0
  %2429 = vmatprep.subr.mxu0 0.0
  %2430 = vmatpush1.msra.mxu0 0.0
  %2431 = vmatprep.subr.mxu0 0.0
  %2432 = vmatpush1.msra.mxu0 0.0
  %2433 = vmatprep.subr.mxu0 0.0
  %2434 = vmatpush1.msra.mxu0 0.0
  %2435 = vmatprep.subr.mxu0 0.0
  %2436 = vmatpush1.msra.mxu0 0.0
  %2437 = vmatprep.subr.mxu0 0.0
  %2438 = vmatpush1.msra.mxu0 0.0
  %2439 = vmatprep.subr.mxu0 0.0
  %2440 = vmatpush1.msra.mxu0 0.0
  %2441 = vmatprep.subr.mxu0 0.0
  %2442 = vmatpush1.msra.mxu0 0.0
  %2443 = vmatprep.subr.mxu0 0.0
  %2444 = vmatpush1.msra.mxu0 0.0
  %2445 = vmatprep.subr.mxu0 0.0
  %2446 = vmatpush1.msra.mxu0 0.0
  %2447 = vmatprep.subr.mxu0 0.0
  %2448 = vmatpush1.msra.mxu0 0.0
  %2449 = vmatprep.subr.mxu0 0.0
  %2450 = vmatpush1.msra.mxu0 %v144
  %2451 = vmatprep.subr.mxu0 0.0
  %2452 = vmatpush1.msra.mxu0 %v143
  %2453 = vmatprep.subr.mxu0 0.0
  %2454 = vmatpush2.msra.mxu0 0.0
  %2455 = vmatprep.subr.mxu0 0.0
  %2456 = vmatpush2.msra.mxu0 0.0
  %2457 = vmatprep.subr.mxu0 0.0
  %2458 = vmatpush2.msra.mxu0 0.0
  %2459 = vmatprep.subr.mxu0 0.0
  %2460 = vmatpush2.msra.mxu0 0.0
  %2461 = vmatprep.subr.mxu0 0.0
  %2462 = vmatpush2.msra.mxu0 0.0
  %2463 = vmatprep.subr.mxu0 0.0
  %2464 = vmatpush2.msra.mxu0 0.0
  %2465 = vmatprep.subr.mxu0 0.0
  %2466 = vmatpush2.msra.mxu0 0.0
  %2467 = vmatprep.subr.mxu0 0.0
  %2468 = vmatpush2.msra.mxu0 0.0
  %2469 = vmatprep.subr.mxu0 0.0
  %2470 = vmatpush2.msra.mxu0 0.0
  %2471 = vmatprep.subr.mxu0 0.0
  %2472 = vmatpush2.msra.mxu0 0.0
  %2473 = vmatprep.subr.mxu0 0.0
  %2474 = vmatpush2.msra.mxu0 0.0
  %2475 = vmatprep.subr.mxu0 0.0
  %2476 = vmatpush2.msra.mxu0 0.0
  %2477 = vmatprep.subr.mxu0 0.0
  %2478 = vmatpush2.msra.mxu0 0.0
  %2479 = vmatprep.subr.mxu0 0.0
  %2480 = vmatpush2.msra.mxu0 0.0
  %2481 = vmatprep.subr.mxu0 0.0
  %2482 = vmatpush2.msra.mxu0 0.0
  %2483 = vmatprep.subr.mxu0 0.0
  %2484 = vmatpush2.msra.mxu0 0.0
  %2485 = vmatprep.mubr.f32.mxu0 0.0
  %2486 = vmatmul.mubr.f32.gmra.mxu0 %v2419
  %v2487 = vpop.f32.mrf.mxu0
  %v2488 = vadd.f32 0.0, %v2487
  %v2489 = vpop.f32.mrf.mxu0
  %2490 = vdwg.mxu0
  %v2492 = vsel %vm227, %v42, 0
  %2494 = vmatprep.subr.mxu0 0.0
  %2495 = vmatpush1.msra.mxu0 0.0
  %2496 = vmatprep.subr.mxu0 0.0
  %2497 = vmatpush1.msra.mxu0 0.0
  %2498 = vmatprep.subr.mxu0 0.0
  %2499 = vmatpush1.msra.mxu0 0.0
  %2500 = vmatprep.subr.mxu0 0.0
  %2501 = vmatpush1.msra.mxu0 0.0
  %2502 = vmatprep.subr.mxu0 0.0
  %2503 = vmatpush1.msra.mxu0 0.0
  %2504 = vmatprep.subr.mxu0 0.0
  %2505 = vmatpush1.msra.mxu0 0.0
  %2506 = vmatprep.subr.mxu0 0.0
  %2507 = vmatpush1.msra.mxu0 0.0
  %2508 = vmatprep.subr.mxu0 0.0
  %2509 = vmatpush1.msra.mxu0 0.0
  %2510 = vmatprep.subr.mxu0 0.0
  %2511 = vmatpush1.msra.mxu0 0.0
  %2512 = vmatprep.subr.mxu0 0.0
  %2513 = vmatpush1.msra.mxu0 0.0
  %2514 = vmatprep.subr.mxu0 0.0
  %2515 = vmatpush1.msra.mxu0 0.0
  %2516 = vmatprep.subr.mxu0 0.0
  %2517 = vmatpush1.msra.mxu0 0.0
  %2518 = vmatprep.subr.mxu0 0.0
  %2519 = vmatpush1.msra.mxu0 0.0
  %2520 = vmatprep.subr.mxu0 0.0
  %2521 = vmatpush1.msra.mxu0 0.0
  %2522 = vmatprep.subr.mxu0 0.0
  %2523 = vmatpush1.msra.mxu0 %v146
  %2524 = vmatprep.subr.mxu0 0.0
  %2525 = vmatpush1.msra.mxu0 %v145
  %2526 = vmatprep.subr.mxu0 0.0
  %2527 = vmatpush2.msra.mxu0 0.0
  %2528 = vmatprep.subr.mxu0 0.0
  %2529 = vmatpush2.msra.mxu0 0.0
  %2530 = vmatprep.subr.mxu0 0.0
  %2531 = vmatpush2.msra.mxu0 0.0
  %2532 = vmatprep.subr.mxu0 0.0
  %2533 = vmatpush2.msra.mxu0 0.0
  %2534 = vmatprep.subr.mxu0 0.0
  %2535 = vmatpush2.msra.mxu0 0.0
  %2536 = vmatprep.subr.mxu0 0.0
  %2537 = vmatpush2.msra.mxu0 0.0
  %2538 = vmatprep.subr.mxu0 0.0
  %2539 = vmatpush2.msra.mxu0 0.0
  %2540 = vmatprep.subr.mxu0 0.0
  %2541 = vmatpush2.msra.mxu0 0.0
  %2542 = vmatprep.subr.mxu0 0.0
  %2543 = vmatpush2.msra.mxu0 0.0
  %2544 = vmatprep.subr.mxu0 0.0
  %2545 = vmatpush2.msra.mxu0 0.0
  %2546 = vmatprep.subr.mxu0 0.0
  %2547 = vmatpush2.msra.mxu0 0.0
  %2548 = vmatprep.subr.mxu0 0.0
  %2549 = vmatpush2.msra.mxu0 0.0
  %2550 = vmatprep.subr.mxu0 0.0
  %2551 = vmatpush2.msra.mxu0 0.0
  %2552 = vmatprep.subr.mxu0 0.0
  %2553 = vmatpush2.msra.mxu0 0.0
  %2554 = vmatprep.subr.mxu0 0.0
  %2555 = vmatpush2.msra.mxu0 0.0
  %2556 = vmatprep.subr.mxu0 0.0
  %2557 = vmatpush2.msra.mxu0 0.0
  %2558 = vmatprep.mubr.f32.mxu0 0.0
  %2559 = vmatmul.mubr.f32.gmra.mxu0 %v2492
  %v2560 = vpop.f32.mrf.mxu0
  %v2561 = vadd.f32 0.0, %v2560
  %v2562 = vpop.f32.mrf.mxu0
  %2563 = vdwg.mxu0
  %v2565 = vsel %vm227, %v43, 0
  %2567 = vmatprep.subr.mxu0 0.0
  %2568 = vmatpush1.msra.mxu0 0.0
  %2569 = vmatprep.subr.mxu0 0.0
  %2570 = vmatpush1.msra.mxu0 0.0
  %2571 = vmatprep.subr.mxu0 0.0
  %2572 = vmatpush1.msra.mxu0 0.0
  %2573 = vmatprep.subr.mxu0 0.0
  %2574 = vmatpush1.msra.mxu0 0.0
  %2575 = vmatprep.subr.mxu0 0.0
  %2576 = vmatpush1.msra.mxu0 0.0
  %2577 = vmatprep.subr.mxu0 0.0
  %2578 = vmatpush1.msra.mxu0 0.0
  %2579 = vmatprep.subr.mxu0 0.0
  %2580 = vmatpush1.msra.mxu0 0.0
  %2581 = vmatprep.subr.mxu0 0.0
  %2582 = vmatpush1.msra.mxu0 0.0
  %2583 = vmatprep.subr.mxu0 0.0
  %2584 = vmatpush1.msra.mxu0 0.0
  %2585 = vmatprep.subr.mxu0 0.0
  %2586 = vmatpush1.msra.mxu0 0.0
  %2587 = vmatprep.subr.mxu0 0.0
  %2588 = vmatpush1.msra.mxu0 0.0
  %2589 = vmatprep.subr.mxu0 0.0
  %2590 = vmatpush1.msra.mxu0 0.0
  %2591 = vmatprep.subr.mxu0 0.0
  %2592 = vmatpush1.msra.mxu0 0.0
  %2593 = vmatprep.subr.mxu0 0.0
  %2594 = vmatpush1.msra.mxu0 0.0
  %2595 = vmatprep.subr.mxu0 0.0
  %2596 = vmatpush1.msra.mxu0 %v148
  %2597 = vmatprep.subr.mxu0 0.0
  %2598 = vmatpush1.msra.mxu0 %v147
  %2599 = vmatprep.subr.mxu0 0.0
  %2600 = vmatpush2.msra.mxu0 0.0
  %2601 = vmatprep.subr.mxu0 0.0
  %2602 = vmatpush2.msra.mxu0 0.0
  %2603 = vmatprep.subr.mxu0 0.0
  %2604 = vmatpush2.msra.mxu0 0.0
  %2605 = vmatprep.subr.mxu0 0.0
  %2606 = vmatpush2.msra.mxu0 0.0
  %2607 = vmatprep.subr.mxu0 0.0
  %2608 = vmatpush2.msra.mxu0 0.0
  %2609 = vmatprep.subr.mxu0 0.0
  %2610 = vmatpush2.msra.mxu0 0.0
  %2611 = vmatprep.subr.mxu0 0.0
  %2612 = vmatpush2.msra.mxu0 0.0
  %2613 = vmatprep.subr.mxu0 0.0
  %2614 = vmatpush2.msra.mxu0 0.0
  %2615 = vmatprep.subr.mxu0 0.0
  %2616 = vmatpush2.msra.mxu0 0.0
  %2617 = vmatprep.subr.mxu0 0.0
  %2618 = vmatpush2.msra.mxu0 0.0
  %2619 = vmatprep.subr.mxu0 0.0
  %2620 = vmatpush2.msra.mxu0 0.0
  %2621 = vmatprep.subr.mxu0 0.0
  %2622 = vmatpush2.msra.mxu0 0.0
  %2623 = vmatprep.subr.mxu0 0.0
  %2624 = vmatpush2.msra.mxu0 0.0
  %2625 = vmatprep.subr.mxu0 0.0
  %2626 = vmatpush2.msra.mxu0 0.0
  %2627 = vmatprep.subr.mxu0 0.0
  %2628 = vmatpush2.msra.mxu0 0.0
  %2629 = vmatprep.subr.mxu0 0.0
  %2630 = vmatpush2.msra.mxu0 0.0
  %2631 = vmatprep.mubr.f32.mxu0 0.0
  %2632 = vmatmul.mubr.f32.gmra.mxu0 %v2565
  %v2633 = vpop.f32.mrf.mxu0
  %v2634 = vadd.f32 0.0, %v2633
  %v2635 = vpop.f32.mrf.mxu0
  %2636 = vdwg.mxu0
  %v2638 = vsel %vm227, %v44, 0
  %2640 = vmatprep.subr.mxu0 0.0
  %2641 = vmatpush1.msra.mxu0 0.0
  %2642 = vmatprep.subr.mxu0 0.0
  %2643 = vmatpush1.msra.mxu0 0.0
  %2644 = vmatprep.subr.mxu0 0.0
  %2645 = vmatpush1.msra.mxu0 0.0
  %2646 = vmatprep.subr.mxu0 0.0
  %2647 = vmatpush1.msra.mxu0 0.0
  %2648 = vmatprep.subr.mxu0 0.0
  %2649 = vmatpush1.msra.mxu0 0.0
  %2650 = vmatprep.subr.mxu0 0.0
  %2651 = vmatpush1.msra.mxu0 0.0
  %2652 = vmatprep.subr.mxu0 0.0
  %2653 = vmatpush1.msra.mxu0 0.0
  %2654 = vmatprep.subr.mxu0 0.0
  %2655 = vmatpush1.msra.mxu0 0.0
  %2656 = vmatprep.subr.mxu0 0.0
  %2657 = vmatpush1.msra.mxu0 0.0
  %2658 = vmatprep.subr.mxu0 0.0
  %2659 = vmatpush1.msra.mxu0 0.0
  %2660 = vmatprep.subr.mxu0 0.0
  %2661 = vmatpush1.msra.mxu0 0.0
  %2662 = vmatprep.subr.mxu0 0.0
  %2663 = vmatpush1.msra.mxu0 0.0
  %2664 = vmatprep.subr.mxu0 0.0
  %2665 = vmatpush1.msra.mxu0 0.0
  %2666 = vmatprep.subr.mxu0 0.0
  %2667 = vmatpush1.msra.mxu0 0.0
  %2668 = vmatprep.subr.mxu0 0.0
  %2669 = vmatpush1.msra.mxu0 %v150
  %2670 = vmatprep.subr.mxu0 0.0
  %2671 = vmatpush1.msra.mxu0 %v149
  %2672 = vmatprep.subr.mxu0 0.0
  %2673 = vmatpush2.msra.mxu0 0.0
  %2674 = vmatprep.subr.mxu0 0.0
  %2675 = vmatpush2.msra.mxu0 0.0
  %2676 = vmatprep.subr.mxu0 0.0
  %2677 = vmatpush2.msra.mxu0 0.0
  %2678 = vmatprep.subr.mxu0 0.0
  %2679 = vmatpush2.msra.mxu0 0.0
  %2680 = vmatprep.subr.mxu0 0.0
  %2681 = vmatpush2.msra.mxu0 0.0
  %2682 = vmatprep.subr.mxu0 0.0
  %2683 = vmatpush2.msra.mxu0 0.0
  %2684 = vmatprep.subr.mxu0 0.0
  %2685 = vmatpush2.msra.mxu0 0.0
  %2686 = vmatprep.subr.mxu0 0.0
  %2687 = vmatpush2.msra.mxu0 0.0
  %2688 = vmatprep.subr.mxu0 0.0
  %2689 = vmatpush2.msra.mxu0 0.0
  %2690 = vmatprep.subr.mxu0 0.0
  %2691 = vmatpush2.msra.mxu0 0.0
  %2692 = vmatprep.subr.mxu0 0.0
  %2693 = vmatpush2.msra.mxu0 0.0
  %2694 = vmatprep.subr.mxu0 0.0
  %2695 = vmatpush2.msra.mxu0 0.0
  %2696 = vmatprep.subr.mxu0 0.0
  %2697 = vmatpush2.msra.mxu0 0.0
  %2698 = vmatprep.subr.mxu0 0.0
  %2699 = vmatpush2.msra.mxu0 0.0
  %2700 = vmatprep.subr.mxu0 0.0
  %2701 = vmatpush2.msra.mxu0 0.0
  %2702 = vmatprep.subr.mxu0 0.0
  %2703 = vmatpush2.msra.mxu0 0.0
  %2704 = vmatprep.mubr.f32.mxu0 0.0
  %2705 = vmatmul.mubr.f32.gmra.mxu0 %v2638
  %v2706 = vpop.f32.mrf.mxu0
  %v2707 = vadd.f32 0.0, %v2706
  %v2708 = vpop.f32.mrf.mxu0
  %2709 = vdwg.mxu0
  %v2711 = vsel %vm227, %v45, 0
  %2713 = vmatprep.subr.mxu0 0.0
  %2714 = vmatpush1.msra.mxu0 0.0
  %2715 = vmatprep.subr.mxu0 0.0
  %2716 = vmatpush1.msra.mxu0 0.0
  %2717 = vmatprep.subr.mxu0 0.0
  %2718 = vmatpush1.msra.mxu0 0.0
  %2719 = vmatprep.subr.mxu0 0.0
  %2720 = vmatpush1.msra.mxu0 0.0
  %2721 = vmatprep.subr.mxu0 0.0
  %2722 = vmatpush1.msra.mxu0 0.0
  %2723 = vmatprep.subr.mxu0 0.0
  %2724 = vmatpush1.msra.mxu0 0.0
  %2725 = vmatprep.subr.mxu0 0.0
  %2726 = vmatpush1.msra.mxu0 0.0
  %2727 = vmatprep.subr.mxu0 0.0
  %2728 = vmatpush1.msra.mxu0 0.0
  %2729 = vmatprep.subr.mxu0 0.0
  %2730 = vmatpush1.msra.mxu0 0.0
  %2731 = vmatprep.subr.mxu0 0.0
  %2732 = vmatpush1.msra.mxu0 0.0
  %2733 = vmatprep.subr.mxu0 0.0
  %2734 = vmatpush1.msra.mxu0 0.0
  %2735 = vmatprep.subr.mxu0 0.0
  %2736 = vmatpush1.msra.mxu0 0.0
  %2737 = vmatprep.subr.mxu0 0.0
  %2738 = vmatpush1.msra.mxu0 0.0
  %2739 = vmatprep.subr.mxu0 0.0
  %2740 = vmatpush1.msra.mxu0 0.0
  %2741 = vmatprep.subr.mxu0 0.0
  %2742 = vmatpush1.msra.mxu0 %v152
  %2743 = vmatprep.subr.mxu0 0.0
  %2744 = vmatpush1.msra.mxu0 %v151
  %2745 = vmatprep.subr.mxu0 0.0
  %2746 = vmatpush2.msra.mxu0 0.0
  %2747 = vmatprep.subr.mxu0 0.0
  %2748 = vmatpush2.msra.mxu0 0.0
  %2749 = vmatprep.subr.mxu0 0.0
  %2750 = vmatpush2.msra.mxu0 0.0
  %2751 = vmatprep.subr.mxu0 0.0
  %2752 = vmatpush2.msra.mxu0 0.0
  %2753 = vmatprep.subr.mxu0 0.0
  %2754 = vmatpush2.msra.mxu0 0.0
  %2755 = vmatprep.subr.mxu0 0.0
  %2756 = vmatpush2.msra.mxu0 0.0
  %2757 = vmatprep.subr.mxu0 0.0
  %2758 = vmatpush2.msra.mxu0 0.0
  %2759 = vmatprep.subr.mxu0 0.0
  %2760 = vmatpush2.msra.mxu0 0.0
  %2761 = vmatprep.subr.mxu0 0.0
  %2762 = vmatpush2.msra.mxu0 0.0
  %2763 = vmatprep.subr.mxu0 0.0
  %2764 = vmatpush2.msra.mxu0 0.0
  %2765 = vmatprep.subr.mxu0 0.0
  %2766 = vmatpush2.msra.mxu0 0.0
  %2767 = vmatprep.subr.mxu0 0.0
  %2768 = vmatpush2.msra.mxu0 0.0
  %2769 = vmatprep.subr.mxu0 0.0
  %2770 = vmatpush2.msra.mxu0 0.0
  %2771 = vmatprep.subr.mxu0 0.0
  %2772 = vmatpush2.msra.mxu0 0.0
  %2773 = vmatprep.subr.mxu0 0.0
  %2774 = vmatpush2.msra.mxu0 0.0
  %2775 = vmatprep.subr.mxu0 0.0
  %2776 = vmatpush2.msra.mxu0 0.0
  %2777 = vmatprep.mubr.f32.mxu0 0.0
  %2778 = vmatmul.mubr.f32.gmra.mxu0 %v2711
  %v2779 = vpop.f32.mrf.mxu0
  %v2780 = vadd.f32 0.0, %v2779
  %v2781 = vpop.f32.mrf.mxu0
  %2782 = vdwg.mxu0
  %v2784 = vsel %vm227, %v46, 0
  %2786 = vmatprep.subr.mxu0 0.0
  %2787 = vmatpush1.msra.mxu0 0.0
  %2788 = vmatprep.subr.mxu0 0.0
  %2789 = vmatpush1.msra.mxu0 0.0
  %2790 = vmatprep.subr.mxu0 0.0
  %2791 = vmatpush1.msra.mxu0 0.0
  %2792 = vmatprep.subr.mxu0 0.0
  %2793 = vmatpush1.msra.mxu0 0.0
  %2794 = vmatprep.subr.mxu0 0.0
  %2795 = vmatpush1.msra.mxu0 0.0
  %2796 = vmatprep.subr.mxu0 0.0
  %2797 = vmatpush1.msra.mxu0 0.0
  %2798 = vmatprep.subr.mxu0 0.0
  %2799 = vmatpush1.msra.mxu0 0.0
  %2800 = vmatprep.subr.mxu0 0.0
  %2801 = vmatpush1.msra.mxu0 0.0
  %2802 = vmatprep.subr.mxu0 0.0
  %2803 = vmatpush1.msra.mxu0 0.0
  %2804 = vmatprep.subr.mxu0 0.0
  %2805 = vmatpush1.msra.mxu0 0.0
  %2806 = vmatprep.subr.mxu0 0.0
  %2807 = vmatpush1.msra.mxu0 0.0
  %2808 = vmatprep.subr.mxu0 0.0
  %2809 = vmatpush1.msra.mxu0 0.0
  %2810 = vmatprep.subr.mxu0 0.0
  %2811 = vmatpush1.msra.mxu0 0.0
  %2812 = vmatprep.subr.mxu0 0.0
  %2813 = vmatpush1.msra.mxu0 0.0
  %2814 = vmatprep.subr.mxu0 0.0
  %2815 = vmatpush1.msra.mxu0 %v154
  %2816 = vmatprep.subr.mxu0 0.0
  %2817 = vmatpush1.msra.mxu0 %v153
  %2818 = vmatprep.subr.mxu0 0.0
  %2819 = vmatpush2.msra.mxu0 0.0
  %2820 = vmatprep.subr.mxu0 0.0
  %2821 = vmatpush2.msra.mxu0 0.0
  %2822 = vmatprep.subr.mxu0 0.0
  %2823 = vmatpush2.msra.mxu0 0.0
  %2824 = vmatprep.subr.mxu0 0.0
  %2825 = vmatpush2.msra.mxu0 0.0
  %2826 = vmatprep.subr.mxu0 0.0
  %2827 = vmatpush2.msra.mxu0 0.0
  %2828 = vmatprep.subr.mxu0 0.0
  %2829 = vmatpush2.msra.mxu0 0.0
  %2830 = vmatprep.subr.mxu0 0.0
  %2831 = vmatpush2.msra.mxu0 0.0
  %2832 = vmatprep.subr.mxu0 0.0
  %2833 = vmatpush2.msra.mxu0 0.0
  %2834 = vmatprep.subr.mxu0 0.0
  %2835 = vmatpush2.msra.mxu0 0.0
  %2836 = vmatprep.subr.mxu0 0.0
  %2837 = vmatpush2.msra.mxu0 0.0
  %2838 = vmatprep.subr.mxu0 0.0
  %2839 = vmatpush2.msra.mxu0 0.0
  %2840 = vmatprep.subr.mxu0 0.0
  %2841 = vmatpush2.msra.mxu0 0.0
  %2842 = vmatprep.subr.mxu0 0.0
  %2843 = vmatpush2.msra.mxu0 0.0
  %2844 = vmatprep.subr.mxu0 0.0
  %2845 = vmatpush2.msra.mxu0 0.0
  %2846 = vmatprep.subr.mxu0 0.0
  %2847 = vmatpush2.msra.mxu0 0.0
  %2848 = vmatprep.subr.mxu0 0.0
  %2849 = vmatpush2.msra.mxu0 0.0
  %2850 = vmatprep.mubr.f32.mxu0 0.0
  %2851 = vmatmul.mubr.f32.gmra.mxu0 %v2784
  %v2852 = vpop.f32.mrf.mxu0
  %v2853 = vadd.f32 0.0, %v2852
  %v2854 = vpop.f32.mrf.mxu0
  %2855 = vdwg.mxu0
  %v2857 = vsel %vm227, %v47, 0
  %2859 = vmatprep.subr.mxu0 0.0
  %2860 = vmatpush1.msra.mxu0 0.0
  %2861 = vmatprep.subr.mxu0 0.0
  %2862 = vmatpush1.msra.mxu0 0.0
  %2863 = vmatprep.subr.mxu0 0.0
  %2864 = vmatpush1.msra.mxu0 0.0
  %2865 = vmatprep.subr.mxu0 0.0
  %2866 = vmatpush1.msra.mxu0 0.0
  %2867 = vmatprep.subr.mxu0 0.0
  %2868 = vmatpush1.msra.mxu0 0.0
  %2869 = vmatprep.subr.mxu0 0.0
  %2870 = vmatpush1.msra.mxu0 0.0
  %2871 = vmatprep.subr.mxu0 0.0
  %2872 = vmatpush1.msra.mxu0 0.0
  %2873 = vmatprep.subr.mxu0 0.0
  %2874 = vmatpush1.msra.mxu0 0.0
  %2875 = vmatprep.subr.mxu0 0.0
  %2876 = vmatpush1.msra.mxu0 0.0
  %2877 = vmatprep.subr.mxu0 0.0
  %2878 = vmatpush1.msra.mxu0 0.0
  %2879 = vmatprep.subr.mxu0 0.0
  %2880 = vmatpush1.msra.mxu0 0.0
  %2881 = vmatprep.subr.mxu0 0.0
  %2882 = vmatpush1.msra.mxu0 0.0
  %2883 = vmatprep.subr.mxu0 0.0
  %2884 = vmatpush1.msra.mxu0 0.0
  %2885 = vmatprep.subr.mxu0 0.0
  %2886 = vmatpush1.msra.mxu0 0.0
  %2887 = vmatprep.subr.mxu0 0.0
  %2888 = vmatpush1.msra.mxu0 %v156
  %2889 = vmatprep.subr.mxu0 0.0
  %2890 = vmatpush1.msra.mxu0 %v155
  %2891 = vmatprep.subr.mxu0 0.0
  %2892 = vmatpush2.msra.mxu0 0.0
  %2893 = vmatprep.subr.mxu0 0.0
  %2894 = vmatpush2.msra.mxu0 0.0
  %2895 = vmatprep.subr.mxu0 0.0
  %2896 = vmatpush2.msra.mxu0 0.0
  %2897 = vmatprep.subr.mxu0 0.0
  %2898 = vmatpush2.msra.mxu0 0.0
  %2899 = vmatprep.subr.mxu0 0.0
  %2900 = vmatpush2.msra.mxu0 0.0
  %2901 = vmatprep.subr.mxu0 0.0
  %2902 = vmatpush2.msra.mxu0 0.0
  %2903 = vmatprep.subr.mxu0 0.0
  %2904 = vmatpush2.msra.mxu0 0.0
  %2905 = vmatprep.subr.mxu0 0.0
  %2906 = vmatpush2.msra.mxu0 0.0
  %2907 = vmatprep.subr.mxu0 0.0
  %2908 = vmatpush2.msra.mxu0 0.0
  %2909 = vmatprep.subr.mxu0 0.0
  %2910 = vmatpush2.msra.mxu0 0.0
  %2911 = vmatprep.subr.mxu0 0.0
  %2912 = vmatpush2.msra.mxu0 0.0
  %2913 = vmatprep.subr.mxu0 0.0
  %2914 = vmatpush2.msra.mxu0 0.0
  %2915 = vmatprep.subr.mxu0 0.0
  %2916 = vmatpush2.msra.mxu0 0.0
  %2917 = vmatprep.subr.mxu0 0.0
  %2918 = vmatpush2.msra.mxu0 0.0
  %2919 = vmatprep.subr.mxu0 0.0
  %2920 = vmatpush2.msra.mxu0 0.0
  %2921 = vmatprep.subr.mxu0 0.0
  %2922 = vmatpush2.msra.mxu0 0.0
  %2923 = vmatprep.mubr.f32.mxu0 0.0
  %2924 = vmatmul.mubr.f32.gmra.mxu0 %v2857
  %v2925 = vpop.f32.mrf.mxu0
  %v2926 = vadd.f32 0.0, %v2925
  %v2927 = vpop.f32.mrf.mxu0
  %2928 = vdwg.mxu0
  %v2930 = vsel %vm227, %v48, 0
  %2932 = vmatprep.subr.mxu0 0.0
  %2933 = vmatpush1.msra.mxu0 0.0
  %2934 = vmatprep.subr.mxu0 0.0
  %2935 = vmatpush1.msra.mxu0 0.0
  %2936 = vmatprep.subr.mxu0 0.0
  %2937 = vmatpush1.msra.mxu0 0.0
  %2938 = vmatprep.subr.mxu0 0.0
  %2939 = vmatpush1.msra.mxu0 0.0
  %2940 = vmatprep.subr.mxu0 0.0
  %2941 = vmatpush1.msra.mxu0 0.0
  %2942 = vmatprep.subr.mxu0 0.0
  %2943 = vmatpush1.msra.mxu0 0.0
  %2944 = vmatprep.subr.mxu0 0.0
  %2945 = vmatpush1.msra.mxu0 0.0
  %2946 = vmatprep.subr.mxu0 0.0
  %2947 = vmatpush1.msra.mxu0 0.0
  %2948 = vmatprep.subr.mxu0 0.0
  %2949 = vmatpush1.msra.mxu0 0.0
  %2950 = vmatprep.subr.mxu0 0.0
  %2951 = vmatpush1.msra.mxu0 0.0
  %2952 = vmatprep.subr.mxu0 0.0
  %2953 = vmatpush1.msra.mxu0 0.0
  %2954 = vmatprep.subr.mxu0 0.0
  %2955 = vmatpush1.msra.mxu0 0.0
  %2956 = vmatprep.subr.mxu0 0.0
  %2957 = vmatpush1.msra.mxu0 0.0
  %2958 = vmatprep.subr.mxu0 0.0
  %2959 = vmatpush1.msra.mxu0 0.0
  %2960 = vmatprep.subr.mxu0 0.0
  %2961 = vmatpush1.msra.mxu0 %v158
  %2962 = vmatprep.subr.mxu0 0.0
  %2963 = vmatpush1.msra.mxu0 %v157
  %2964 = vmatprep.subr.mxu0 0.0
  %2965 = vmatpush2.msra.mxu0 0.0
  %2966 = vmatprep.subr.mxu0 0.0
  %2967 = vmatpush2.msra.mxu0 0.0
  %2968 = vmatprep.subr.mxu0 0.0
  %2969 = vmatpush2.msra.mxu0 0.0
  %2970 = vmatprep.subr.mxu0 0.0
  %2971 = vmatpush2.msra.mxu0 0.0
  %2972 = vmatprep.subr.mxu0 0.0
  %2973 = vmatpush2.msra.mxu0 0.0
  %2974 = vmatprep.subr.mxu0 0.0
  %2975 = vmatpush2.msra.mxu0 0.0
  %2976 = vmatprep.subr.mxu0 0.0
  %2977 = vmatpush2.msra.mxu0 0.0
  %2978 = vmatprep.subr.mxu0 0.0
  %2979 = vmatpush2.msra.mxu0 0.0
  %2980 = vmatprep.subr.mxu0 0.0
  %2981 = vmatpush2.msra.mxu0 0.0
  %2982 = vmatprep.subr.mxu0 0.0
  %2983 = vmatpush2.msra.mxu0 0.0
  %2984 = vmatprep.subr.mxu0 0.0
  %2985 = vmatpush2.msra.mxu0 0.0
  %2986 = vmatprep.subr.mxu0 0.0
  %2987 = vmatpush2.msra.mxu0 0.0
  %2988 = vmatprep.subr.mxu0 0.0
  %2989 = vmatpush2.msra.mxu0 0.0
  %2990 = vmatprep.subr.mxu0 0.0
  %2991 = vmatpush2.msra.mxu0 0.0
  %2992 = vmatprep.subr.mxu0 0.0
  %2993 = vmatpush2.msra.mxu0 0.0
  %2994 = vmatprep.subr.mxu0 0.0
  %2995 = vmatpush2.msra.mxu0 0.0
  %2996 = vmatprep.mubr.f32.mxu0 0.0
  %2997 = vmatmul.mubr.f32.gmra.mxu0 %v2930
  %v2998 = vpop.f32.mrf.mxu0
  %v2999 = vadd.f32 0.0, %v2998
  %v3000 = vpop.f32.mrf.mxu0
  %3001 = vdwg.mxu0
  %v3003 = vsel %vm227, %v49, 0
  %3005 = vmatprep.subr.mxu0 0.0
  %3006 = vmatpush1.msra.mxu0 0.0
  %3007 = vmatprep.subr.mxu0 0.0
  %3008 = vmatpush1.msra.mxu0 0.0
  %3009 = vmatprep.subr.mxu0 0.0
  %3010 = vmatpush1.msra.mxu0 0.0
  %3011 = vmatprep.subr.mxu0 0.0
  %3012 = vmatpush1.msra.mxu0 0.0
  %3013 = vmatprep.subr.mxu0 0.0
  %3014 = vmatpush1.msra.mxu0 0.0
  %3015 = vmatprep.subr.mxu0 0.0
  %3016 = vmatpush1.msra.mxu0 0.0
  %3017 = vmatprep.subr.mxu0 0.0
  %3018 = vmatpush1.msra.mxu0 0.0
  %3019 = vmatprep.subr.mxu0 0.0
  %3020 = vmatpush1.msra.mxu0 0.0
  %3021 = vmatprep.subr.mxu0 0.0
  %3022 = vmatpush1.msra.mxu0 0.0
  %3023 = vmatprep.subr.mxu0 0.0
  %3024 = vmatpush1.msra.mxu0 0.0
  %3025 = vmatprep.subr.mxu0 0.0
  %3026 = vmatpush1.msra.mxu0 0.0
  %3027 = vmatprep.subr.mxu0 0.0
  %3028 = vmatpush1.msra.mxu0 0.0
  %3029 = vmatprep.subr.mxu0 0.0
  %3030 = vmatpush1.msra.mxu0 0.0
  %3031 = vmatprep.subr.mxu0 0.0
  %3032 = vmatpush1.msra.mxu0 0.0
  %3033 = vmatprep.subr.mxu0 0.0
  %3034 = vmatpush1.msra.mxu0 %v160
  %3035 = vmatprep.subr.mxu0 0.0
  %3036 = vmatpush1.msra.mxu0 %v159
  %3037 = vmatprep.subr.mxu0 0.0
  %3038 = vmatpush2.msra.mxu0 0.0
  %3039 = vmatprep.subr.mxu0 0.0
  %3040 = vmatpush2.msra.mxu0 0.0
  %3041 = vmatprep.subr.mxu0 0.0
  %3042 = vmatpush2.msra.mxu0 0.0
  %3043 = vmatprep.subr.mxu0 0.0
  %3044 = vmatpush2.msra.mxu0 0.0
  %3045 = vmatprep.subr.mxu0 0.0
  %3046 = vmatpush2.msra.mxu0 0.0
  %3047 = vmatprep.subr.mxu0 0.0
  %3048 = vmatpush2.msra.mxu0 0.0
  %3049 = vmatprep.subr.mxu0 0.0
  %3050 = vmatpush2.msra.mxu0 0.0
  %3051 = vmatprep.subr.mxu0 0.0
  %3052 = vmatpush2.msra.mxu0 0.0
  %3053 = vmatprep.subr.mxu0 0.0
  %3054 = vmatpush2.msra.mxu0 0.0
  %3055 = vmatprep.subr.mxu0 0.0
  %3056 = vmatpush2.msra.mxu0 0.0
  %3057 = vmatprep.subr.mxu0 0.0
  %3058 = vmatpush2.msra.mxu0 0.0
  %3059 = vmatprep.subr.mxu0 0.0
  %3060 = vmatpush2.msra.mxu0 0.0
  %3061 = vmatprep.subr.mxu0 0.0
  %3062 = vmatpush2.msra.mxu0 0.0
  %3063 = vmatprep.subr.mxu0 0.0
  %3064 = vmatpush2.msra.mxu0 0.0
  %3065 = vmatprep.subr.mxu0 0.0
  %3066 = vmatpush2.msra.mxu0 0.0
  %3067 = vmatprep.subr.mxu0 0.0
  %3068 = vmatpush2.msra.mxu0 0.0
  %3069 = vmatprep.mubr.f32.mxu0 0.0
  %3070 = vmatmul.mubr.f32.gmra.mxu0 %v3003
  %v3071 = vpop.f32.mrf.mxu0
  %v3072 = vadd.f32 0.0, %v3071
  %v3073 = vpop.f32.mrf.mxu0
  %3074 = vdwg.mxu0
  %v3076 = vsel %vm227, %v50, 0
  %3078 = vmatprep.subr.mxu0 0.0
  %3079 = vmatpush1.msra.mxu0 0.0
  %3080 = vmatprep.subr.mxu0 0.0
  %3081 = vmatpush1.msra.mxu0 0.0
  %3082 = vmatprep.subr.mxu0 0.0
  %3083 = vmatpush1.msra.mxu0 0.0
  %3084 = vmatprep.subr.mxu0 0.0
  %3085 = vmatpush1.msra.mxu0 0.0
  %3086 = vmatprep.subr.mxu0 0.0
  %3087 = vmatpush1.msra.mxu0 0.0
  %3088 = vmatprep.subr.mxu0 0.0
  %3089 = vmatpush1.msra.mxu0 0.0
  %3090 = vmatprep.subr.mxu0 0.0
  %3091 = vmatpush1.msra.mxu0 0.0
  %3092 = vmatprep.subr.mxu0 0.0
  %3093 = vmatpush1.msra.mxu0 0.0
  %3094 = vmatprep.subr.mxu0 0.0
  %3095 = vmatpush1.msra.mxu0 0.0
  %3096 = vmatprep.subr.mxu0 0.0
  %3097 = vmatpush1.msra.mxu0 0.0
  %3098 = vmatprep.subr.mxu0 0.0
  %3099 = vmatpush1.msra.mxu0 0.0
  %3100 = vmatprep.subr.mxu0 0.0
  %3101 = vmatpush1.msra.mxu0 0.0
  %3102 = vmatprep.subr.mxu0 0.0
  %3103 = vmatpush1.msra.mxu0 0.0
  %3104 = vmatprep.subr.mxu0 0.0
  %3105 = vmatpush1.msra.mxu0 0.0
  %3106 = vmatprep.subr.mxu0 0.0
  %3107 = vmatpush1.msra.mxu0 %v162
  %3108 = vmatprep.subr.mxu0 0.0
  %3109 = vmatpush1.msra.mxu0 %v161
  %3110 = vmatprep.subr.mxu0 0.0
  %3111 = vmatpush2.msra.mxu0 0.0
  %3112 = vmatprep.subr.mxu0 0.0
  %3113 = vmatpush2.msra.mxu0 0.0
  %3114 = vmatprep.subr.mxu0 0.0
  %3115 = vmatpush2.msra.mxu0 0.0
  %3116 = vmatprep.subr.mxu0 0.0
  %3117 = vmatpush2.msra.mxu0 0.0
  %3118 = vmatprep.subr.mxu0 0.0
  %3119 = vmatpush2.msra.mxu0 0.0
  %3120 = vmatprep.subr.mxu0 0.0
  %3121 = vmatpush2.msra.mxu0 0.0
  %3122 = vmatprep.subr.mxu0 0.0
  %3123 = vmatpush2.msra.mxu0 0.0
  %3124 = vmatprep.subr.mxu0 0.0
  %3125 = vmatpush2.msra.mxu0 0.0
  %3126 = vmatprep.subr.mxu0 0.0
  %3127 = vmatpush2.msra.mxu0 0.0
  %3128 = vmatprep.subr.mxu0 0.0
  %3129 = vmatpush2.msra.mxu0 0.0
  %3130 = vmatprep.subr.mxu0 0.0
  %3131 = vmatpush2.msra.mxu0 0.0
  %3132 = vmatprep.subr.mxu0 0.0
  %3133 = vmatpush2.msra.mxu0 0.0
  %3134 = vmatprep.subr.mxu0 0.0
  %3135 = vmatpush2.msra.mxu0 0.0
  %3136 = vmatprep.subr.mxu0 0.0
  %3137 = vmatpush2.msra.mxu0 0.0
  %3138 = vmatprep.subr.mxu0 0.0
  %3139 = vmatpush2.msra.mxu0 0.0
  %3140 = vmatprep.subr.mxu0 0.0
  %3141 = vmatpush2.msra.mxu0 0.0
  %3142 = vmatprep.mubr.f32.mxu0 0.0
  %3143 = vmatmul.mubr.f32.gmra.mxu0 %v3076
  %v3144 = vpop.f32.mrf.mxu0
  %v3145 = vadd.f32 0.0, %v3144
  %v3146 = vpop.f32.mrf.mxu0
  %3147 = vdwg.mxu0
  %v3149 = vsel %vm227, %v51, 0
  %3151 = vmatprep.subr.mxu0 0.0
  %3152 = vmatpush1.msra.mxu0 0.0
  %3153 = vmatprep.subr.mxu0 0.0
  %3154 = vmatpush1.msra.mxu0 0.0
  %3155 = vmatprep.subr.mxu0 0.0
  %3156 = vmatpush1.msra.mxu0 0.0
  %3157 = vmatprep.subr.mxu0 0.0
  %3158 = vmatpush1.msra.mxu0 0.0
  %3159 = vmatprep.subr.mxu0 0.0
  %3160 = vmatpush1.msra.mxu0 0.0
  %3161 = vmatprep.subr.mxu0 0.0
  %3162 = vmatpush1.msra.mxu0 0.0
  %3163 = vmatprep.subr.mxu0 0.0
  %3164 = vmatpush1.msra.mxu0 0.0
  %3165 = vmatprep.subr.mxu0 0.0
  %3166 = vmatpush1.msra.mxu0 0.0
  %3167 = vmatprep.subr.mxu0 0.0
  %3168 = vmatpush1.msra.mxu0 0.0
  %3169 = vmatprep.subr.mxu0 0.0
  %3170 = vmatpush1.msra.mxu0 0.0
  %3171 = vmatprep.subr.mxu0 0.0
  %3172 = vmatpush1.msra.mxu0 0.0
  %3173 = vmatprep.subr.mxu0 0.0
  %3174 = vmatpush1.msra.mxu0 0.0
  %3175 = vmatprep.subr.mxu0 0.0
  %3176 = vmatpush1.msra.mxu0 0.0
  %3177 = vmatprep.subr.mxu0 0.0
  %3178 = vmatpush1.msra.mxu0 0.0
  %3179 = vmatprep.subr.mxu0 0.0
  %3180 = vmatpush1.msra.mxu0 %v164
  %3181 = vmatprep.subr.mxu0 0.0
  %3182 = vmatpush1.msra.mxu0 %v163
  %3183 = vmatprep.subr.mxu0 0.0
  %3184 = vmatpush2.msra.mxu0 0.0
  %3185 = vmatprep.subr.mxu0 0.0
  %3186 = vmatpush2.msra.mxu0 0.0
  %3187 = vmatprep.subr.mxu0 0.0
  %3188 = vmatpush2.msra.mxu0 0.0
  %3189 = vmatprep.subr.mxu0 0.0
  %3190 = vmatpush2.msra.mxu0 0.0
  %3191 = vmatprep.subr.mxu0 0.0
  %3192 = vmatpush2.msra.mxu0 0.0
  %3193 = vmatprep.subr.mxu0 0.0
  %3194 = vmatpush2.msra.mxu0 0.0
  %3195 = vmatprep.subr.mxu0 0.0
  %3196 = vmatpush2.msra.mxu0 0.0
  %3197 = vmatprep.subr.mxu0 0.0
  %3198 = vmatpush2.msra.mxu0 0.0
  %3199 = vmatprep.subr.mxu0 0.0
  %3200 = vmatpush2.msra.mxu0 0.0
  %3201 = vmatprep.subr.mxu0 0.0
  %3202 = vmatpush2.msra.mxu0 0.0
  %3203 = vmatprep.subr.mxu0 0.0
  %3204 = vmatpush2.msra.mxu0 0.0
  %3205 = vmatprep.subr.mxu0 0.0
  %3206 = vmatpush2.msra.mxu0 0.0
  %3207 = vmatprep.subr.mxu0 0.0
  %3208 = vmatpush2.msra.mxu0 0.0
  %3209 = vmatprep.subr.mxu0 0.0
  %3210 = vmatpush2.msra.mxu0 0.0
  %3211 = vmatprep.subr.mxu0 0.0
  %3212 = vmatpush2.msra.mxu0 0.0
  %3213 = vmatprep.subr.mxu0 0.0
  %3214 = vmatpush2.msra.mxu0 0.0
  %3215 = vmatprep.mubr.f32.mxu0 0.0
  %3216 = vmatmul.mubr.f32.gmra.mxu0 %v3149
  %v3217 = vpop.f32.mrf.mxu0
  %v3218 = vadd.f32 0.0, %v3217
  %v3219 = vpop.f32.mrf.mxu0
  %3220 = vdwg.mxu0
  %v3222 = vsel %vm227, %v52, 0
  %3224 = vmatprep.subr.mxu0 0.0
  %3225 = vmatpush1.msra.mxu0 0.0
  %3226 = vmatprep.subr.mxu0 0.0
  %3227 = vmatpush1.msra.mxu0 0.0
  %3228 = vmatprep.subr.mxu0 0.0
  %3229 = vmatpush1.msra.mxu0 0.0
  %3230 = vmatprep.subr.mxu0 0.0
  %3231 = vmatpush1.msra.mxu0 0.0
  %3232 = vmatprep.subr.mxu0 0.0
  %3233 = vmatpush1.msra.mxu0 0.0
  %3234 = vmatprep.subr.mxu0 0.0
  %3235 = vmatpush1.msra.mxu0 0.0
  %3236 = vmatprep.subr.mxu0 0.0
  %3237 = vmatpush1.msra.mxu0 0.0
  %3238 = vmatprep.subr.mxu0 0.0
  %3239 = vmatpush1.msra.mxu0 0.0
  %3240 = vmatprep.subr.mxu0 0.0
  %3241 = vmatpush1.msra.mxu0 0.0
  %3242 = vmatprep.subr.mxu0 0.0
  %3243 = vmatpush1.msra.mxu0 0.0
  %3244 = vmatprep.subr.mxu0 0.0
  %3245 = vmatpush1.msra.mxu0 0.0
  %3246 = vmatprep.subr.mxu0 0.0
  %3247 = vmatpush1.msra.mxu0 0.0
  %3248 = vmatprep.subr.mxu0 0.0
  %3249 = vmatpush1.msra.mxu0 0.0
  %3250 = vmatprep.subr.mxu0 0.0
  %3251 = vmatpush1.msra.mxu0 0.0
  %3252 = vmatprep.subr.mxu0 0.0
  %3253 = vmatpush1.msra.mxu0 %v166
  %3254 = vmatprep.subr.mxu0 0.0
  %3255 = vmatpush1.msra.mxu0 %v165
  %3256 = vmatprep.subr.mxu0 0.0
  %3257 = vmatpush2.msra.mxu0 0.0
  %3258 = vmatprep.subr.mxu0 0.0
  %3259 = vmatpush2.msra.mxu0 0.0
  %3260 = vmatprep.subr.mxu0 0.0
  %3261 = vmatpush2.msra.mxu0 0.0
  %3262 = vmatprep.subr.mxu0 0.0
  %3263 = vmatpush2.msra.mxu0 0.0
  %3264 = vmatprep.subr.mxu0 0.0
  %3265 = vmatpush2.msra.mxu0 0.0
  %3266 = vmatprep.subr.mxu0 0.0
  %3267 = vmatpush2.msra.mxu0 0.0
  %3268 = vmatprep.subr.mxu0 0.0
  %3269 = vmatpush2.msra.mxu0 0.0
  %3270 = vmatprep.subr.mxu0 0.0
  %3271 = vmatpush2.msra.mxu0 0.0
  %3272 = vmatprep.subr.mxu0 0.0
  %3273 = vmatpush2.msra.mxu0 0.0
  %3274 = vmatprep.subr.mxu0 0.0
  %3275 = vmatpush2.msra.mxu0 0.0
  %3276 = vmatprep.subr.mxu0 0.0
  %3277 = vmatpush2.msra.mxu0 0.0
  %3278 = vmatprep.subr.mxu0 0.0
  %3279 = vmatpush2.msra.mxu0 0.0
  %3280 = vmatprep.subr.mxu0 0.0
  %3281 = vmatpush2.msra.mxu0 0.0
  %3282 = vmatprep.subr.mxu0 0.0
  %3283 = vmatpush2.msra.mxu0 0.0
  %3284 = vmatprep.subr.mxu0 0.0
  %3285 = vmatpush2.msra.mxu0 0.0
  %3286 = vmatprep.subr.mxu0 0.0
  %3287 = vmatpush2.msra.mxu0 0.0
  %3288 = vmatprep.mubr.f32.mxu0 0.0
  %3289 = vmatmul.mubr.f32.gmra.mxu0 %v3222
  %v3290 = vpop.f32.mrf.mxu0
  %v3291 = vadd.f32 0.0, %v3290
  %v3292 = vpop.f32.mrf.mxu0
  %3293 = vdwg.mxu0
  %v3295 = vsel %vm227, %v53, 0
  %3297 = vmatprep.subr.mxu0 0.0
  %3298 = vmatpush1.msra.mxu0 0.0
  %3299 = vmatprep.subr.mxu0 0.0
  %3300 = vmatpush1.msra.mxu0 0.0
  %3301 = vmatprep.subr.mxu0 0.0
  %3302 = vmatpush1.msra.mxu0 0.0
  %3303 = vmatprep.subr.mxu0 0.0
  %3304 = vmatpush1.msra.mxu0 0.0
  %3305 = vmatprep.subr.mxu0 0.0
  %3306 = vmatpush1.msra.mxu0 0.0
  %3307 = vmatprep.subr.mxu0 0.0
  %3308 = vmatpush1.msra.mxu0 0.0
  %3309 = vmatprep.subr.mxu0 0.0
  %3310 = vmatpush1.msra.mxu0 0.0
  %3311 = vmatprep.subr.mxu0 0.0
  %3312 = vmatpush1.msra.mxu0 0.0
  %3313 = vmatprep.subr.mxu0 0.0
  %3314 = vmatpush1.msra.mxu0 0.0
  %3315 = vmatprep.subr.mxu0 0.0
  %3316 = vmatpush1.msra.mxu0 0.0
  %3317 = vmatprep.subr.mxu0 0.0
  %3318 = vmatpush1.msra.mxu0 0.0
  %3319 = vmatprep.subr.mxu0 0.0
  %3320 = vmatpush1.msra.mxu0 0.0
  %3321 = vmatprep.subr.mxu0 0.0
  %3322 = vmatpush1.msra.mxu0 0.0
  %3323 = vmatprep.subr.mxu0 0.0
  %3324 = vmatpush1.msra.mxu0 0.0
  %3325 = vmatprep.subr.mxu0 0.0
  %3326 = vmatpush1.msra.mxu0 %v168
  %3327 = vmatprep.subr.mxu0 0.0
  %3328 = vmatpush1.msra.mxu0 %v167
  %3329 = vmatprep.subr.mxu0 0.0
  %3330 = vmatpush2.msra.mxu0 0.0
  %3331 = vmatprep.subr.mxu0 0.0
  %3332 = vmatpush2.msra.mxu0 0.0
  %3333 = vmatprep.subr.mxu0 0.0
  %3334 = vmatpush2.msra.mxu0 0.0
  %3335 = vmatprep.subr.mxu0 0.0
  %3336 = vmatpush2.msra.mxu0 0.0
  %3337 = vmatprep.subr.mxu0 0.0
  %3338 = vmatpush2.msra.mxu0 0.0
  %3339 = vmatprep.subr.mxu0 0.0
  %3340 = vmatpush2.msra.mxu0 0.0
  %3341 = vmatprep.subr.mxu0 0.0
  %3342 = vmatpush2.msra.mxu0 0.0
  %3343 = vmatprep.subr.mxu0 0.0
  %3344 = vmatpush2.msra.mxu0 0.0
  %3345 = vmatprep.subr.mxu0 0.0
  %3346 = vmatpush2.msra.mxu0 0.0
  %3347 = vmatprep.subr.mxu0 0.0
  %3348 = vmatpush2.msra.mxu0 0.0
  %3349 = vmatprep.subr.mxu0 0.0
  %3350 = vmatpush2.msra.mxu0 0.0
  %3351 = vmatprep.subr.mxu0 0.0
  %3352 = vmatpush2.msra.mxu0 0.0
  %3353 = vmatprep.subr.mxu0 0.0
  %3354 = vmatpush2.msra.mxu0 0.0
  %3355 = vmatprep.subr.mxu0 0.0
  %3356 = vmatpush2.msra.mxu0 0.0
  %3357 = vmatprep.subr.mxu0 0.0
  %3358 = vmatpush2.msra.mxu0 0.0
  %3359 = vmatprep.subr.mxu0 0.0
  %3360 = vmatpush2.msra.mxu0 0.0
  %3361 = vmatprep.mubr.f32.mxu0 0.0
  %3362 = vmatmul.mubr.f32.gmra.mxu0 %v3295
  %v3363 = vpop.f32.mrf.mxu0
  %v3364 = vadd.f32 0.0, %v3363
  %v3365 = vpop.f32.mrf.mxu0
  %3366 = vdwg.mxu0
  %v3368 = vsel %vm227, %v54, 0
  %3370 = vmatprep.subr.mxu0 0.0
  %3371 = vmatpush1.msra.mxu0 0.0
  %3372 = vmatprep.subr.mxu0 0.0
  %3373 = vmatpush1.msra.mxu0 0.0
  %3374 = vmatprep.subr.mxu0 0.0
  %3375 = vmatpush1.msra.mxu0 0.0
  %3376 = vmatprep.subr.mxu0 0.0
  %3377 = vmatpush1.msra.mxu0 0.0
  %3378 = vmatprep.subr.mxu0 0.0
  %3379 = vmatpush1.msra.mxu0 0.0
  %3380 = vmatprep.subr.mxu0 0.0
  %3381 = vmatpush1.msra.mxu0 0.0
  %3382 = vmatprep.subr.mxu0 0.0
  %3383 = vmatpush1.msra.mxu0 0.0
  %3384 = vmatprep.subr.mxu0 0.0
  %3385 = vmatpush1.msra.mxu0 0.0
  %3386 = vmatprep.subr.mxu0 0.0
  %3387 = vmatpush1.msra.mxu0 0.0
  %3388 = vmatprep.subr.mxu0 0.0
  %3389 = vmatpush1.msra.mxu0 0.0
  %3390 = vmatprep.subr.mxu0 0.0
  %3391 = vmatpush1.msra.mxu0 0.0
  %3392 = vmatprep.subr.mxu0 0.0
  %3393 = vmatpush1.msra.mxu0 0.0
  %3394 = vmatprep.subr.mxu0 0.0
  %3395 = vmatpush1.msra.mxu0 0.0
  %3396 = vmatprep.subr.mxu0 0.0
  %3397 = vmatpush1.msra.mxu0 0.0
  %3398 = vmatprep.subr.mxu0 0.0
  %3399 = vmatpush1.msra.mxu0 %v170
  %3400 = vmatprep.subr.mxu0 0.0
  %3401 = vmatpush1.msra.mxu0 %v169
  %3402 = vmatprep.subr.mxu0 0.0
  %3403 = vmatpush2.msra.mxu0 0.0
  %3404 = vmatprep.subr.mxu0 0.0
  %3405 = vmatpush2.msra.mxu0 0.0
  %3406 = vmatprep.subr.mxu0 0.0
  %3407 = vmatpush2.msra.mxu0 0.0
  %3408 = vmatprep.subr.mxu0 0.0
  %3409 = vmatpush2.msra.mxu0 0.0
  %3410 = vmatprep.subr.mxu0 0.0
  %3411 = vmatpush2.msra.mxu0 0.0
  %3412 = vmatprep.subr.mxu0 0.0
  %3413 = vmatpush2.msra.mxu0 0.0
  %3414 = vmatprep.subr.mxu0 0.0
  %3415 = vmatpush2.msra.mxu0 0.0
  %3416 = vmatprep.subr.mxu0 0.0
  %3417 = vmatpush2.msra.mxu0 0.0
  %3418 = vmatprep.subr.mxu0 0.0
  %3419 = vmatpush2.msra.mxu0 0.0
  %3420 = vmatprep.subr.mxu0 0.0
  %3421 = vmatpush2.msra.mxu0 0.0
  %3422 = vmatprep.subr.mxu0 0.0
  %3423 = vmatpush2.msra.mxu0 0.0
  %3424 = vmatprep.subr.mxu0 0.0
  %3425 = vmatpush2.msra.mxu0 0.0
  %3426 = vmatprep.subr.mxu0 0.0
  %3427 = vmatpush2.msra.mxu0 0.0
  %3428 = vmatprep.subr.mxu0 0.0
  %3429 = vmatpush2.msra.mxu0 0.0
  %3430 = vmatprep.subr.mxu0 0.0
  %3431 = vmatpush2.msra.mxu0 0.0
  %3432 = vmatprep.subr.mxu0 0.0
  %3433 = vmatpush2.msra.mxu0 0.0
  %3434 = vmatprep.mubr.f32.mxu0 0.0
  %3435 = vmatmul.mubr.f32.gmra.mxu0 %v3368
  %v3436 = vpop.f32.mrf.mxu0
  %v3437 = vadd.f32 0.0, %v3436
  %v3438 = vpop.f32.mrf.mxu0
  %3439 = vdwg.mxu0
  %v3441 = vsel %vm227, %v55, 0
  %3443 = vmatprep.subr.mxu0 0.0
  %3444 = vmatpush1.msra.mxu0 0.0
  %3445 = vmatprep.subr.mxu0 0.0
  %3446 = vmatpush1.msra.mxu0 0.0
  %3447 = vmatprep.subr.mxu0 0.0
  %3448 = vmatpush1.msra.mxu0 0.0
  %3449 = vmatprep.subr.mxu0 0.0
  %3450 = vmatpush1.msra.mxu0 0.0
  %3451 = vmatprep.subr.mxu0 0.0
  %3452 = vmatpush1.msra.mxu0 0.0
  %3453 = vmatprep.subr.mxu0 0.0
  %3454 = vmatpush1.msra.mxu0 0.0
  %3455 = vmatprep.subr.mxu0 0.0
  %3456 = vmatpush1.msra.mxu0 0.0
  %3457 = vmatprep.subr.mxu0 0.0
  %3458 = vmatpush1.msra.mxu0 0.0
  %3459 = vmatprep.subr.mxu0 0.0
  %3460 = vmatpush1.msra.mxu0 0.0
  %3461 = vmatprep.subr.mxu0 0.0
  %3462 = vmatpush1.msra.mxu0 0.0
  %3463 = vmatprep.subr.mxu0 0.0
  %3464 = vmatpush1.msra.mxu0 0.0
  %3465 = vmatprep.subr.mxu0 0.0
  %3466 = vmatpush1.msra.mxu0 0.0
  %3467 = vmatprep.subr.mxu0 0.0
  %3468 = vmatpush1.msra.mxu0 0.0
  %3469 = vmatprep.subr.mxu0 0.0
  %3470 = vmatpush1.msra.mxu0 0.0
  %3471 = vmatprep.subr.mxu0 0.0
  %3472 = vmatpush1.msra.mxu0 %v172
  %3473 = vmatprep.subr.mxu0 0.0
  %3474 = vmatpush1.msra.mxu0 %v171
  %3475 = vmatprep.subr.mxu0 0.0
  %3476 = vmatpush2.msra.mxu0 0.0
  %3477 = vmatprep.subr.mxu0 0.0
  %3478 = vmatpush2.msra.mxu0 0.0
  %3479 = vmatprep.subr.mxu0 0.0
  %3480 = vmatpush2.msra.mxu0 0.0
  %3481 = vmatprep.subr.mxu0 0.0
  %3482 = vmatpush2.msra.mxu0 0.0
  %3483 = vmatprep.subr.mxu0 0.0
  %3484 = vmatpush2.msra.mxu0 0.0
  %3485 = vmatprep.subr.mxu0 0.0
  %3486 = vmatpush2.msra.mxu0 0.0
  %3487 = vmatprep.subr.mxu0 0.0
  %3488 = vmatpush2.msra.mxu0 0.0
  %3489 = vmatprep.subr.mxu0 0.0
  %3490 = vmatpush2.msra.mxu0 0.0
  %3491 = vmatprep.subr.mxu0 0.0
  %3492 = vmatpush2.msra.mxu0 0.0
  %3493 = vmatprep.subr.mxu0 0.0
  %3494 = vmatpush2.msra.mxu0 0.0
  %3495 = vmatprep.subr.mxu0 0.0
  %3496 = vmatpush2.msra.mxu0 0.0
  %3497 = vmatprep.subr.mxu0 0.0
  %3498 = vmatpush2.msra.mxu0 0.0
  %3499 = vmatprep.subr.mxu0 0.0
  %3500 = vmatpush2.msra.mxu0 0.0
  %3501 = vmatprep.subr.mxu0 0.0
  %3502 = vmatpush2.msra.mxu0 0.0
  %3503 = vmatprep.subr.mxu0 0.0
  %3504 = vmatpush2.msra.mxu0 0.0
  %3505 = vmatprep.subr.mxu0 0.0
  %3506 = vmatpush2.msra.mxu0 0.0
  %3507 = vmatprep.mubr.f32.mxu0 0.0
  %3508 = vmatmul.mubr.f32.gmra.mxu0 %v3441
  %v3509 = vpop.f32.mrf.mxu0
  %v3510 = vadd.f32 0.0, %v3509
  %v3511 = vpop.f32.mrf.mxu0
  %3512 = vdwg.mxu0
  %v3514 = vsel %vm227, %v56, 0
  %3516 = vmatprep.subr.mxu0 0.0
  %3517 = vmatpush1.msra.mxu0 0.0
  %3518 = vmatprep.subr.mxu0 0.0
  %3519 = vmatpush1.msra.mxu0 0.0
  %3520 = vmatprep.subr.mxu0 0.0
  %3521 = vmatpush1.msra.mxu0 0.0
  %3522 = vmatprep.subr.mxu0 0.0
  %3523 = vmatpush1.msra.mxu0 0.0
  %3524 = vmatprep.subr.mxu0 0.0
  %3525 = vmatpush1.msra.mxu0 0.0
  %3526 = vmatprep.subr.mxu0 0.0
  %3527 = vmatpush1.msra.mxu0 0.0
  %3528 = vmatprep.subr.mxu0 0.0
  %3529 = vmatpush1.msra.mxu0 0.0
  %3530 = vmatprep.subr.mxu0 0.0
  %3531 = vmatpush1.msra.mxu0 0.0
  %3532 = vmatprep.subr.mxu0 0.0
  %3533 = vmatpush1.msra.mxu0 0.0
  %3534 = vmatprep.subr.mxu0 0.0
  %3535 = vmatpush1.msra.mxu0 0.0
  %3536 = vmatprep.subr.mxu0 0.0
  %3537 = vmatpush1.msra.mxu0 0.0
  %3538 = vmatprep.subr.mxu0 0.0
  %3539 = vmatpush1.msra.mxu0 0.0
  %3540 = vmatprep.subr.mxu0 0.0
  %3541 = vmatpush1.msra.mxu0 0.0
  %3542 = vmatprep.subr.mxu0 0.0
  %3543 = vmatpush1.msra.mxu0 0.0
  %3544 = vmatprep.subr.mxu0 0.0
  %3545 = vmatpush1.msra.mxu0 %v174
  %3546 = vmatprep.subr.mxu0 0.0
  %3547 = vmatpush1.msra.mxu0 %v173
  %3548 = vmatprep.subr.mxu0 0.0
  %3549 = vmatpush2.msra.mxu0 0.0
  %3550 = vmatprep.subr.mxu0 0.0
  %3551 = vmatpush2.msra.mxu0 0.0
  %3552 = vmatprep.subr.mxu0 0.0
  %3553 = vmatpush2.msra.mxu0 0.0
  %3554 = vmatprep.subr.mxu0 0.0
  %3555 = vmatpush2.msra.mxu0 0.0
  %3556 = vmatprep.subr.mxu0 0.0
  %3557 = vmatpush2.msra.mxu0 0.0
  %3558 = vmatprep.subr.mxu0 0.0
  %3559 = vmatpush2.msra.mxu0 0.0
  %3560 = vmatprep.subr.mxu0 0.0
  %3561 = vmatpush2.msra.mxu0 0.0
  %3562 = vmatprep.subr.mxu0 0.0
  %3563 = vmatpush2.msra.mxu0 0.0
  %3564 = vmatprep.subr.mxu0 0.0
  %3565 = vmatpush2.msra.mxu0 0.0
  %3566 = vmatprep.subr.mxu0 0.0
  %3567 = vmatpush2.msra.mxu0 0.0
  %3568 = vmatprep.subr.mxu0 0.0
  %3569 = vmatpush2.msra.mxu0 0.0
  %3570 = vmatprep.subr.mxu0 0.0
  %3571 = vmatpush2.msra.mxu0 0.0
  %3572 = vmatprep.subr.mxu0 0.0
  %3573 = vmatpush2.msra.mxu0 0.0
  %3574 = vmatprep.subr.mxu0 0.0
  %3575 = vmatpush2.msra.mxu0 0.0
  %3576 = vmatprep.subr.mxu0 0.0
  %3577 = vmatpush2.msra.mxu0 0.0
  %3578 = vmatprep.subr.mxu0 0.0
  %3579 = vmatpush2.msra.mxu0 0.0
  %3580 = vmatprep.mubr.f32.mxu0 0.0
  %3581 = vmatmul.mubr.f32.gmra.mxu0 %v3514
  %v3582 = vpop.f32.mrf.mxu0
  %v3583 = vadd.f32 0.0, %v3582
  %v3584 = vpop.f32.mrf.mxu0
  %3585 = vdwg.mxu0
  %v3587 = vsel %vm227, %v57, 0
  %3589 = vmatprep.subr.mxu0 0.0
  %3590 = vmatpush1.msra.mxu0 0.0
  %3591 = vmatprep.subr.mxu0 0.0
  %3592 = vmatpush1.msra.mxu0 0.0
  %3593 = vmatprep.subr.mxu0 0.0
  %3594 = vmatpush1.msra.mxu0 0.0
  %3595 = vmatprep.subr.mxu0 0.0
  %3596 = vmatpush1.msra.mxu0 0.0
  %3597 = vmatprep.subr.mxu0 0.0
  %3598 = vmatpush1.msra.mxu0 0.0
  %3599 = vmatprep.subr.mxu0 0.0
  %3600 = vmatpush1.msra.mxu0 0.0
  %3601 = vmatprep.subr.mxu0 0.0
  %3602 = vmatpush1.msra.mxu0 0.0
  %3603 = vmatprep.subr.mxu0 0.0
  %3604 = vmatpush1.msra.mxu0 0.0
  %3605 = vmatprep.subr.mxu0 0.0
  %3606 = vmatpush1.msra.mxu0 0.0
  %3607 = vmatprep.subr.mxu0 0.0
  %3608 = vmatpush1.msra.mxu0 0.0
  %3609 = vmatprep.subr.mxu0 0.0
  %3610 = vmatpush1.msra.mxu0 0.0
  %3611 = vmatprep.subr.mxu0 0.0
  %3612 = vmatpush1.msra.mxu0 0.0
  %3613 = vmatprep.subr.mxu0 0.0
  %3614 = vmatpush1.msra.mxu0 0.0
  %3615 = vmatprep.subr.mxu0 0.0
  %3616 = vmatpush1.msra.mxu0 0.0
  %3617 = vmatprep.subr.mxu0 0.0
  %3618 = vmatpush1.msra.mxu0 %v176
  %3619 = vmatprep.subr.mxu0 0.0
  %3620 = vmatpush1.msra.mxu0 %v175
  %3621 = vmatprep.subr.mxu0 0.0
  %3622 = vmatpush2.msra.mxu0 0.0
  %3623 = vmatprep.subr.mxu0 0.0
  %3624 = vmatpush2.msra.mxu0 0.0
  %3625 = vmatprep.subr.mxu0 0.0
  %3626 = vmatpush2.msra.mxu0 0.0
  %3627 = vmatprep.subr.mxu0 0.0
  %3628 = vmatpush2.msra.mxu0 0.0
  %3629 = vmatprep.subr.mxu0 0.0
  %3630 = vmatpush2.msra.mxu0 0.0
  %3631 = vmatprep.subr.mxu0 0.0
  %3632 = vmatpush2.msra.mxu0 0.0
  %3633 = vmatprep.subr.mxu0 0.0
  %3634 = vmatpush2.msra.mxu0 0.0
  %3635 = vmatprep.subr.mxu0 0.0
  %3636 = vmatpush2.msra.mxu0 0.0
  %3637 = vmatprep.subr.mxu0 0.0
  %3638 = vmatpush2.msra.mxu0 0.0
  %3639 = vmatprep.subr.mxu0 0.0
  %3640 = vmatpush2.msra.mxu0 0.0
  %3641 = vmatprep.subr.mxu0 0.0
  %3642 = vmatpush2.msra.mxu0 0.0
  %3643 = vmatprep.subr.mxu0 0.0
  %3644 = vmatpush2.msra.mxu0 0.0
  %3645 = vmatprep.subr.mxu0 0.0
  %3646 = vmatpush2.msra.mxu0 0.0
  %3647 = vmatprep.subr.mxu0 0.0
  %3648 = vmatpush2.msra.mxu0 0.0
  %3649 = vmatprep.subr.mxu0 0.0
  %3650 = vmatpush2.msra.mxu0 0.0
  %3651 = vmatprep.subr.mxu0 0.0
  %3652 = vmatpush2.msra.mxu0 0.0
  %3653 = vmatprep.mubr.f32.mxu0 0.0
  %3654 = vmatmul.mubr.f32.gmra.mxu0 %v3587
  %v3655 = vpop.f32.mrf.mxu0
  %v3656 = vadd.f32 0.0, %v3655
  %v3657 = vpop.f32.mrf.mxu0
  %3658 = vdwg.mxu0
  %v3660 = vsel %vm227, %v58, 0
  %3662 = vmatprep.subr.mxu0 0.0
  %3663 = vmatpush1.msra.mxu0 0.0
  %3664 = vmatprep.subr.mxu0 0.0
  %3665 = vmatpush1.msra.mxu0 0.0
  %3666 = vmatprep.subr.mxu0 0.0
  %3667 = vmatpush1.msra.mxu0 0.0
  %3668 = vmatprep.subr.mxu0 0.0
  %3669 = vmatpush1.msra.mxu0 0.0
  %3670 = vmatprep.subr.mxu0 0.0
  %3671 = vmatpush1.msra.mxu0 0.0
  %3672 = vmatprep.subr.mxu0 0.0
  %3673 = vmatpush1.msra.mxu0 0.0
  %3674 = vmatprep.subr.mxu0 0.0
  %3675 = vmatpush1.msra.mxu0 0.0
  %3676 = vmatprep.subr.mxu0 0.0
  %3677 = vmatpush1.msra.mxu0 0.0
  %3678 = vmatprep.subr.mxu0 0.0
  %3679 = vmatpush1.msra.mxu0 0.0
  %3680 = vmatprep.subr.mxu0 0.0
  %3681 = vmatpush1.msra.mxu0 0.0
  %3682 = vmatprep.subr.mxu0 0.0
  %3683 = vmatpush1.msra.mxu0 0.0
  %3684 = vmatprep.subr.mxu0 0.0
  %3685 = vmatpush1.msra.mxu0 0.0
  %3686 = vmatprep.subr.mxu0 0.0
  %3687 = vmatpush1.msra.mxu0 0.0
  %3688 = vmatprep.subr.mxu0 0.0
  %3689 = vmatpush1.msra.mxu0 0.0
  %3690 = vmatprep.subr.mxu0 0.0
  %3691 = vmatpush1.msra.mxu0 %v178
  %3692 = vmatprep.subr.mxu0 0.0
  %3693 = vmatpush1.msra.mxu0 %v177
  %3694 = vmatprep.subr.mxu0 0.0
  %3695 = vmatpush2.msra.mxu0 0.0
  %3696 = vmatprep.subr.mxu0 0.0
  %3697 = vmatpush2.msra.mxu0 0.0
  %3698 = vmatprep.subr.mxu0 0.0
  %3699 = vmatpush2.msra.mxu0 0.0
  %3700 = vmatprep.subr.mxu0 0.0
  %3701 = vmatpush2.msra.mxu0 0.0
  %3702 = vmatprep.subr.mxu0 0.0
  %3703 = vmatpush2.msra.mxu0 0.0
  %3704 = vmatprep.subr.mxu0 0.0
  %3705 = vmatpush2.msra.mxu0 0.0
  %3706 = vmatprep.subr.mxu0 0.0
  %3707 = vmatpush2.msra.mxu0 0.0
  %3708 = vmatprep.subr.mxu0 0.0
  %3709 = vmatpush2.msra.mxu0 0.0
  %3710 = vmatprep.subr.mxu0 0.0
  %3711 = vmatpush2.msra.mxu0 0.0
  %3712 = vmatprep.subr.mxu0 0.0
  %3713 = vmatpush2.msra.mxu0 0.0
  %3714 = vmatprep.subr.mxu0 0.0
  %3715 = vmatpush2.msra.mxu0 0.0
  %3716 = vmatprep.subr.mxu0 0.0
  %3717 = vmatpush2.msra.mxu0 0.0
  %3718 = vmatprep.subr.mxu0 0.0
  %3719 = vmatpush2.msra.mxu0 0.0
  %3720 = vmatprep.subr.mxu0 0.0
  %3721 = vmatpush2.msra.mxu0 0.0
  %3722 = vmatprep.subr.mxu0 0.0
  %3723 = vmatpush2.msra.mxu0 0.0
  %3724 = vmatprep.subr.mxu0 0.0
  %3725 = vmatpush2.msra.mxu0 0.0
  %3726 = vmatprep.mubr.f32.mxu0 0.0
  %3727 = vmatmul.mubr.f32.gmra.mxu0 %v3660
  %v3728 = vpop.f32.mrf.mxu0
  %v3729 = vadd.f32 0.0, %v3728
  %v3730 = vpop.f32.mrf.mxu0
  %3731 = vdwg.mxu0
  %v3733 = vsel %vm227, %v59, 0
  %3735 = vmatprep.subr.mxu0 0.0
  %3736 = vmatpush1.msra.mxu0 0.0
  %3737 = vmatprep.subr.mxu0 0.0
  %3738 = vmatpush1.msra.mxu0 0.0
  %3739 = vmatprep.subr.mxu0 0.0
  %3740 = vmatpush1.msra.mxu0 0.0
  %3741 = vmatprep.subr.mxu0 0.0
  %3742 = vmatpush1.msra.mxu0 0.0
  %3743 = vmatprep.subr.mxu0 0.0
  %3744 = vmatpush1.msra.mxu0 0.0
  %3745 = vmatprep.subr.mxu0 0.0
  %3746 = vmatpush1.msra.mxu0 0.0
  %3747 = vmatprep.subr.mxu0 0.0
  %3748 = vmatpush1.msra.mxu0 0.0
  %3749 = vmatprep.subr.mxu0 0.0
  %3750 = vmatpush1.msra.mxu0 0.0
  %3751 = vmatprep.subr.mxu0 0.0
  %3752 = vmatpush1.msra.mxu0 0.0
  %3753 = vmatprep.subr.mxu0 0.0
  %3754 = vmatpush1.msra.mxu0 0.0
  %3755 = vmatprep.subr.mxu0 0.0
  %3756 = vmatpush1.msra.mxu0 0.0
  %3757 = vmatprep.subr.mxu0 0.0
  %3758 = vmatpush1.msra.mxu0 0.0
  %3759 = vmatprep.subr.mxu0 0.0
  %3760 = vmatpush1.msra.mxu0 0.0
  %3761 = vmatprep.subr.mxu0 0.0
  %3762 = vmatpush1.msra.mxu0 0.0
  %3763 = vmatprep.subr.mxu0 0.0
  %3764 = vmatpush1.msra.mxu0 %v180
  %3765 = vmatprep.subr.mxu0 0.0
  %3766 = vmatpush1.msra.mxu0 %v179
  %3767 = vmatprep.subr.mxu0 0.0
  %3768 = vmatpush2.msra.mxu0 0.0
  %3769 = vmatprep.subr.mxu0 0.0
  %3770 = vmatpush2.msra.mxu0 0.0
  %3771 = vmatprep.subr.mxu0 0.0
  %3772 = vmatpush2.msra.mxu0 0.0
  %3773 = vmatprep.subr.mxu0 0.0
  %3774 = vmatpush2.msra.mxu0 0.0
  %3775 = vmatprep.subr.mxu0 0.0
  %3776 = vmatpush2.msra.mxu0 0.0
  %3777 = vmatprep.subr.mxu0 0.0
  %3778 = vmatpush2.msra.mxu0 0.0
  %3779 = vmatprep.subr.mxu0 0.0
  %3780 = vmatpush2.msra.mxu0 0.0
  %3781 = vmatprep.subr.mxu0 0.0
  %3782 = vmatpush2.msra.mxu0 0.0
  %3783 = vmatprep.subr.mxu0 0.0
  %3784 = vmatpush2.msra.mxu0 0.0
  %3785 = vmatprep.subr.mxu0 0.0
  %3786 = vmatpush2.msra.mxu0 0.0
  %3787 = vmatprep.subr.mxu0 0.0
  %3788 = vmatpush2.msra.mxu0 0.0
  %3789 = vmatprep.subr.mxu0 0.0
  %3790 = vmatpush2.msra.mxu0 0.0
  %3791 = vmatprep.subr.mxu0 0.0
  %3792 = vmatpush2.msra.mxu0 0.0
  %3793 = vmatprep.subr.mxu0 0.0
  %3794 = vmatpush2.msra.mxu0 0.0
  %3795 = vmatprep.subr.mxu0 0.0
  %3796 = vmatpush2.msra.mxu0 0.0
  %3797 = vmatprep.subr.mxu0 0.0
  %3798 = vmatpush2.msra.mxu0 0.0
  %3799 = vmatprep.mubr.f32.mxu0 0.0
  %3800 = vmatmul.mubr.f32.gmra.mxu0 %v3733
  %v3801 = vpop.f32.mrf.mxu0
  %v3802 = vadd.f32 0.0, %v3801
  %v3803 = vpop.f32.mrf.mxu0
  %3804 = vdwg.mxu0
  %v3806 = vsel %vm227, %v60, 0
  %3808 = vmatprep.subr.mxu0 0.0
  %3809 = vmatpush1.msra.mxu0 0.0
  %3810 = vmatprep.subr.mxu0 0.0
  %3811 = vmatpush1.msra.mxu0 0.0
  %3812 = vmatprep.subr.mxu0 0.0
  %3813 = vmatpush1.msra.mxu0 0.0
  %3814 = vmatprep.subr.mxu0 0.0
  %3815 = vmatpush1.msra.mxu0 0.0
  %3816 = vmatprep.subr.mxu0 0.0
  %3817 = vmatpush1.msra.mxu0 0.0
  %3818 = vmatprep.subr.mxu0 0.0
  %3819 = vmatpush1.msra.mxu0 0.0
  %3820 = vmatprep.subr.mxu0 0.0
  %3821 = vmatpush1.msra.mxu0 0.0
  %3822 = vmatprep.subr.mxu0 0.0
  %3823 = vmatpush1.msra.mxu0 0.0
  %3824 = vmatprep.subr.mxu0 0.0
  %3825 = vmatpush1.msra.mxu0 0.0
  %3826 = vmatprep.subr.mxu0 0.0
  %3827 = vmatpush1.msra.mxu0 0.0
  %3828 = vmatprep.subr.mxu0 0.0
  %3829 = vmatpush1.msra.mxu0 0.0
  %3830 = vmatprep.subr.mxu0 0.0
  %3831 = vmatpush1.msra.mxu0 0.0
  %3832 = vmatprep.subr.mxu0 0.0
  %3833 = vmatpush1.msra.mxu0 0.0
  %3834 = vmatprep.subr.mxu0 0.0
  %3835 = vmatpush1.msra.mxu0 0.0
  %3836 = vmatprep.subr.mxu0 0.0
  %3837 = vmatpush1.msra.mxu0 %v182
  %3838 = vmatprep.subr.mxu0 0.0
  %3839 = vmatpush1.msra.mxu0 %v181
  %3840 = vmatprep.subr.mxu0 0.0
  %3841 = vmatpush2.msra.mxu0 0.0
  %3842 = vmatprep.subr.mxu0 0.0
  %3843 = vmatpush2.msra.mxu0 0.0
  %3844 = vmatprep.subr.mxu0 0.0
  %3845 = vmatpush2.msra.mxu0 0.0
  %3846 = vmatprep.subr.mxu0 0.0
  %3847 = vmatpush2.msra.mxu0 0.0
  %3848 = vmatprep.subr.mxu0 0.0
  %3849 = vmatpush2.msra.mxu0 0.0
  %3850 = vmatprep.subr.mxu0 0.0
  %3851 = vmatpush2.msra.mxu0 0.0
  %3852 = vmatprep.subr.mxu0 0.0
  %3853 = vmatpush2.msra.mxu0 0.0
  %3854 = vmatprep.subr.mxu0 0.0
  %3855 = vmatpush2.msra.mxu0 0.0
  %3856 = vmatprep.subr.mxu0 0.0
  %3857 = vmatpush2.msra.mxu0 0.0
  %3858 = vmatprep.subr.mxu0 0.0
  %3859 = vmatpush2.msra.mxu0 0.0
  %3860 = vmatprep.subr.mxu0 0.0
  %3861 = vmatpush2.msra.mxu0 0.0
  %3862 = vmatprep.subr.mxu0 0.0
  %3863 = vmatpush2.msra.mxu0 0.0
  %3864 = vmatprep.subr.mxu0 0.0
  %3865 = vmatpush2.msra.mxu0 0.0
  %3866 = vmatprep.subr.mxu0 0.0
  %3867 = vmatpush2.msra.mxu0 0.0
  %3868 = vmatprep.subr.mxu0 0.0
  %3869 = vmatpush2.msra.mxu0 0.0
  %3870 = vmatprep.subr.mxu0 0.0
  %3871 = vmatpush2.msra.mxu0 0.0
  %3872 = vmatprep.mubr.f32.mxu0 0.0
  %3873 = vmatmul.mubr.f32.gmra.mxu0 %v3806
  %v3874 = vpop.f32.mrf.mxu0
  %v3875 = vadd.f32 0.0, %v3874
  %v3876 = vpop.f32.mrf.mxu0
  %3877 = vdwg.mxu0
  %v3879 = vsel %vm227, %v61, 0
  %3881 = vmatprep.subr.mxu0 0.0
  %3882 = vmatpush1.msra.mxu0 0.0
  %3883 = vmatprep.subr.mxu0 0.0
  %3884 = vmatpush1.msra.mxu0 0.0
  %3885 = vmatprep.subr.mxu0 0.0
  %3886 = vmatpush1.msra.mxu0 0.0
  %3887 = vmatprep.subr.mxu0 0.0
  %3888 = vmatpush1.msra.mxu0 0.0
  %3889 = vmatprep.subr.mxu0 0.0
  %3890 = vmatpush1.msra.mxu0 0.0
  %3891 = vmatprep.subr.mxu0 0.0
  %3892 = vmatpush1.msra.mxu0 0.0
  %3893 = vmatprep.subr.mxu0 0.0
  %3894 = vmatpush1.msra.mxu0 0.0
  %3895 = vmatprep.subr.mxu0 0.0
  %3896 = vmatpush1.msra.mxu0 0.0
  %3897 = vmatprep.subr.mxu0 0.0
  %3898 = vmatpush1.msra.mxu0 0.0
  %3899 = vmatprep.subr.mxu0 0.0
  %3900 = vmatpush1.msra.mxu0 0.0
  %3901 = vmatprep.subr.mxu0 0.0
  %3902 = vmatpush1.msra.mxu0 0.0
  %3903 = vmatprep.subr.mxu0 0.0
  %3904 = vmatpush1.msra.mxu0 0.0
  %3905 = vmatprep.subr.mxu0 0.0
  %3906 = vmatpush1.msra.mxu0 0.0
  %3907 = vmatprep.subr.mxu0 0.0
  %3908 = vmatpush1.msra.mxu0 0.0
  %3909 = vmatprep.subr.mxu0 0.0
  %3910 = vmatpush1.msra.mxu0 %v184
  %3911 = vmatprep.subr.mxu0 0.0
  %3912 = vmatpush1.msra.mxu0 %v183
  %3913 = vmatprep.subr.mxu0 0.0
  %3914 = vmatpush2.msra.mxu0 0.0
  %3915 = vmatprep.subr.mxu0 0.0
  %3916 = vmatpush2.msra.mxu0 0.0
  %3917 = vmatprep.subr.mxu0 0.0
  %3918 = vmatpush2.msra.mxu0 0.0
  %3919 = vmatprep.subr.mxu0 0.0
  %3920 = vmatpush2.msra.mxu0 0.0
  %3921 = vmatprep.subr.mxu0 0.0
  %3922 = vmatpush2.msra.mxu0 0.0
  %3923 = vmatprep.subr.mxu0 0.0
  %3924 = vmatpush2.msra.mxu0 0.0
  %3925 = vmatprep.subr.mxu0 0.0
  %3926 = vmatpush2.msra.mxu0 0.0
  %3927 = vmatprep.subr.mxu0 0.0
  %3928 = vmatpush2.msra.mxu0 0.0
  %3929 = vmatprep.subr.mxu0 0.0
  %3930 = vmatpush2.msra.mxu0 0.0
  %3931 = vmatprep.subr.mxu0 0.0
  %3932 = vmatpush2.msra.mxu0 0.0
  %3933 = vmatprep.subr.mxu0 0.0
  %3934 = vmatpush2.msra.mxu0 0.0
  %3935 = vmatprep.subr.mxu0 0.0
  %3936 = vmatpush2.msra.mxu0 0.0
  %3937 = vmatprep.subr.mxu0 0.0
  %3938 = vmatpush2.msra.mxu0 0.0
  %3939 = vmatprep.subr.mxu0 0.0
  %3940 = vmatpush2.msra.mxu0 0.0
  %3941 = vmatprep.subr.mxu0 0.0
  %3942 = vmatpush2.msra.mxu0 0.0
  %3943 = vmatprep.subr.mxu0 0.0
  %3944 = vmatpush2.msra.mxu0 0.0
  %3945 = vmatprep.mubr.f32.mxu0 0.0
  %3946 = vmatmul.mubr.f32.gmra.mxu0 %v3879
  %v3947 = vpop.f32.mrf.mxu0
  %v3948 = vadd.f32 0.0, %v3947
  %v3949 = vpop.f32.mrf.mxu0
  %3950 = vdwg.mxu0
  %v3952 = vsel %vm227, %v62, 0
  %3954 = vmatprep.subr.mxu0 0.0
  %3955 = vmatpush1.msra.mxu0 0.0
  %3956 = vmatprep.subr.mxu0 0.0
  %3957 = vmatpush1.msra.mxu0 0.0
  %3958 = vmatprep.subr.mxu0 0.0
  %3959 = vmatpush1.msra.mxu0 0.0
  %3960 = vmatprep.subr.mxu0 0.0
  %3961 = vmatpush1.msra.mxu0 0.0
  %3962 = vmatprep.subr.mxu0 0.0
  %3963 = vmatpush1.msra.mxu0 0.0
  %3964 = vmatprep.subr.mxu0 0.0
  %3965 = vmatpush1.msra.mxu0 0.0
  %3966 = vmatprep.subr.mxu0 0.0
  %3967 = vmatpush1.msra.mxu0 0.0
  %3968 = vmatprep.subr.mxu0 0.0
  %3969 = vmatpush1.msra.mxu0 0.0
  %3970 = vmatprep.subr.mxu0 0.0
  %3971 = vmatpush1.msra.mxu0 0.0
  %3972 = vmatprep.subr.mxu0 0.0
  %3973 = vmatpush1.msra.mxu0 0.0
  %3974 = vmatprep.subr.mxu0 0.0
  %3975 = vmatpush1.msra.mxu0 0.0
  %3976 = vmatprep.subr.mxu0 0.0
  %3977 = vmatpush1.msra.mxu0 0.0
  %3978 = vmatprep.subr.mxu0 0.0
  %3979 = vmatpush1.msra.mxu0 0.0
  %3980 = vmatprep.subr.mxu0 0.0
  %3981 = vmatpush1.msra.mxu0 0.0
  %3982 = vmatprep.subr.mxu0 0.0
  %3983 = vmatpush1.msra.mxu0 %v186
  %3984 = vmatprep.subr.mxu0 0.0
  %3985 = vmatpush1.msra.mxu0 %v185
  %3986 = vmatprep.subr.mxu0 0.0
  %3987 = vmatpush2.msra.mxu0 0.0
  %3988 = vmatprep.subr.mxu0 0.0
  %3989 = vmatpush2.msra.mxu0 0.0
  %3990 = vmatprep.subr.mxu0 0.0
  %3991 = vmatpush2.msra.mxu0 0.0
  %3992 = vmatprep.subr.mxu0 0.0
  %3993 = vmatpush2.msra.mxu0 0.0
  %3994 = vmatprep.subr.mxu0 0.0
  %3995 = vmatpush2.msra.mxu0 0.0
  %3996 = vmatprep.subr.mxu0 0.0
  %3997 = vmatpush2.msra.mxu0 0.0
  %3998 = vmatprep.subr.mxu0 0.0
  %3999 = vmatpush2.msra.mxu0 0.0
  %4000 = vmatprep.subr.mxu0 0.0
  %4001 = vmatpush2.msra.mxu0 0.0
  %4002 = vmatprep.subr.mxu0 0.0
  %4003 = vmatpush2.msra.mxu0 0.0
  %4004 = vmatprep.subr.mxu0 0.0
  %4005 = vmatpush2.msra.mxu0 0.0
  %4006 = vmatprep.subr.mxu0 0.0
  %4007 = vmatpush2.msra.mxu0 0.0
  %4008 = vmatprep.subr.mxu0 0.0
  %4009 = vmatpush2.msra.mxu0 0.0
  %4010 = vmatprep.subr.mxu0 0.0
  %4011 = vmatpush2.msra.mxu0 0.0
  %4012 = vmatprep.subr.mxu0 0.0
  %4013 = vmatpush2.msra.mxu0 0.0
  %4014 = vmatprep.subr.mxu0 0.0
  %4015 = vmatpush2.msra.mxu0 0.0
  %4016 = vmatprep.subr.mxu0 0.0
  %4017 = vmatpush2.msra.mxu0 0.0
  %4018 = vmatprep.mubr.f32.mxu0 0.0
  %4019 = vmatmul.mubr.f32.gmra.mxu0 %v3952
  %v4020 = vpop.f32.mrf.mxu0
  %v4021 = vadd.f32 0.0, %v4020
  %v4022 = vpop.f32.mrf.mxu0
  %4023 = vdwg.mxu0
  %v4025 = vsel %vm227, %v63, 0
  %4027 = vmatprep.subr.mxu0 0.0
  %4028 = vmatpush1.msra.mxu0 0.0
  %4029 = vmatprep.subr.mxu0 0.0
  %4030 = vmatpush1.msra.mxu0 0.0
  %4031 = vmatprep.subr.mxu0 0.0
  %4032 = vmatpush1.msra.mxu0 0.0
  %4033 = vmatprep.subr.mxu0 0.0
  %4034 = vmatpush1.msra.mxu0 0.0
  %4035 = vmatprep.subr.mxu0 0.0
  %4036 = vmatpush1.msra.mxu0 0.0
  %4037 = vmatprep.subr.mxu0 0.0
  %4038 = vmatpush1.msra.mxu0 0.0
  %4039 = vmatprep.subr.mxu0 0.0
  %4040 = vmatpush1.msra.mxu0 0.0
  %4041 = vmatprep.subr.mxu0 0.0
  %4042 = vmatpush1.msra.mxu0 0.0
  %4043 = vmatprep.subr.mxu0 0.0
  %4044 = vmatpush1.msra.mxu0 0.0
  %4045 = vmatprep.subr.mxu0 0.0
  %4046 = vmatpush1.msra.mxu0 0.0
  %4047 = vmatprep.subr.mxu0 0.0
  %4048 = vmatpush1.msra.mxu0 0.0
  %4049 = vmatprep.subr.mxu0 0.0
  %4050 = vmatpush1.msra.mxu0 0.0
  %4051 = vmatprep.subr.mxu0 0.0
  %4052 = vmatpush1.msra.mxu0 0.0
  %4053 = vmatprep.subr.mxu0 0.0
  %4054 = vmatpush1.msra.mxu0 0.0
  %4055 = vmatprep.subr.mxu0 0.0
  %4056 = vmatpush1.msra.mxu0 %v188
  %4057 = vmatprep.subr.mxu0 0.0
  %4058 = vmatpush1.msra.mxu0 %v187
  %4059 = vmatprep.subr.mxu0 0.0
  %4060 = vmatpush2.msra.mxu0 0.0
  %4061 = vmatprep.subr.mxu0 0.0
  %4062 = vmatpush2.msra.mxu0 0.0
  %4063 = vmatprep.subr.mxu0 0.0
  %4064 = vmatpush2.msra.mxu0 0.0
  %4065 = vmatprep.subr.mxu0 0.0
  %4066 = vmatpush2.msra.mxu0 0.0
  %4067 = vmatprep.subr.mxu0 0.0
  %4068 = vmatpush2.msra.mxu0 0.0
  %4069 = vmatprep.subr.mxu0 0.0
  %4070 = vmatpush2.msra.mxu0 0.0
  %4071 = vmatprep.subr.mxu0 0.0
  %4072 = vmatpush2.msra.mxu0 0.0
  %4073 = vmatprep.subr.mxu0 0.0
  %4074 = vmatpush2.msra.mxu0 0.0
  %4075 = vmatprep.subr.mxu0 0.0
  %4076 = vmatpush2.msra.mxu0 0.0
  %4077 = vmatprep.subr.mxu0 0.0
  %4078 = vmatpush2.msra.mxu0 0.0
  %4079 = vmatprep.subr.mxu0 0.0
  %4080 = vmatpush2.msra.mxu0 0.0
  %4081 = vmatprep.subr.mxu0 0.0
  %4082 = vmatpush2.msra.mxu0 0.0
  %4083 = vmatprep.subr.mxu0 0.0
  %4084 = vmatpush2.msra.mxu0 0.0
  %4085 = vmatprep.subr.mxu0 0.0
  %4086 = vmatpush2.msra.mxu0 0.0
  %4087 = vmatprep.subr.mxu0 0.0
  %4088 = vmatpush2.msra.mxu0 0.0
  %4089 = vmatprep.subr.mxu0 0.0
  %4090 = vmatpush2.msra.mxu0 0.0
  %4091 = vmatprep.mubr.f32.mxu0 0.0
  %4092 = vmatmul.mubr.f32.gmra.mxu0 %v4025
  %v4093 = vpop.f32.mrf.mxu0
  %v4094 = vadd.f32 0.0, %v4093
  %v4095 = vpop.f32.mrf.mxu0
  %4096 = vdwg.mxu0
  %v4098 = vsel %vm227, %v64, 0
  %4100 = vmatprep.subr.mxu0 0.0
  %4101 = vmatpush1.msra.mxu0 0.0
  %4102 = vmatprep.subr.mxu0 0.0
  %4103 = vmatpush1.msra.mxu0 0.0
  %4104 = vmatprep.subr.mxu0 0.0
  %4105 = vmatpush1.msra.mxu0 0.0
  %4106 = vmatprep.subr.mxu0 0.0
  %4107 = vmatpush1.msra.mxu0 0.0
  %4108 = vmatprep.subr.mxu0 0.0
  %4109 = vmatpush1.msra.mxu0 0.0
  %4110 = vmatprep.subr.mxu0 0.0
  %4111 = vmatpush1.msra.mxu0 0.0
  %4112 = vmatprep.subr.mxu0 0.0
  %4113 = vmatpush1.msra.mxu0 0.0
  %4114 = vmatprep.subr.mxu0 0.0
  %4115 = vmatpush1.msra.mxu0 0.0
  %4116 = vmatprep.subr.mxu0 0.0
  %4117 = vmatpush1.msra.mxu0 0.0
  %4118 = vmatprep.subr.mxu0 0.0
  %4119 = vmatpush1.msra.mxu0 0.0
  %4120 = vmatprep.subr.mxu0 0.0
  %4121 = vmatpush1.msra.mxu0 0.0
  %4122 = vmatprep.subr.mxu0 0.0
  %4123 = vmatpush1.msra.mxu0 0.0
  %4124 = vmatprep.subr.mxu0 0.0
  %4125 = vmatpush1.msra.mxu0 0.0
  %4126 = vmatprep.subr.mxu0 0.0
  %4127 = vmatpush1.msra.mxu0 0.0
  %4128 = vmatprep.subr.mxu0 0.0
  %4129 = vmatpush1.msra.mxu0 %v190
  %4130 = vmatprep.subr.mxu0 0.0
  %4131 = vmatpush1.msra.mxu0 %v189
  %4132 = vmatprep.subr.mxu0 0.0
  %4133 = vmatpush2.msra.mxu0 0.0
  %4134 = vmatprep.subr.mxu0 0.0
  %4135 = vmatpush2.msra.mxu0 0.0
  %4136 = vmatprep.subr.mxu0 0.0
  %4137 = vmatpush2.msra.mxu0 0.0
  %4138 = vmatprep.subr.mxu0 0.0
  %4139 = vmatpush2.msra.mxu0 0.0
  %4140 = vmatprep.subr.mxu0 0.0
  %4141 = vmatpush2.msra.mxu0 0.0
  %4142 = vmatprep.subr.mxu0 0.0
  %4143 = vmatpush2.msra.mxu0 0.0
  %4144 = vmatprep.subr.mxu0 0.0
  %4145 = vmatpush2.msra.mxu0 0.0
  %4146 = vmatprep.subr.mxu0 0.0
  %4147 = vmatpush2.msra.mxu0 0.0
  %4148 = vmatprep.subr.mxu0 0.0
  %4149 = vmatpush2.msra.mxu0 0.0
  %4150 = vmatprep.subr.mxu0 0.0
  %4151 = vmatpush2.msra.mxu0 0.0
  %4152 = vmatprep.subr.mxu0 0.0
  %4153 = vmatpush2.msra.mxu0 0.0
  %4154 = vmatprep.subr.mxu0 0.0
  %4155 = vmatpush2.msra.mxu0 0.0
  %4156 = vmatprep.subr.mxu0 0.0
  %4157 = vmatpush2.msra.mxu0 0.0
  %4158 = vmatprep.subr.mxu0 0.0
  %4159 = vmatpush2.msra.mxu0 0.0
  %4160 = vmatprep.subr.mxu0 0.0
  %4161 = vmatpush2.msra.mxu0 0.0
  %4162 = vmatprep.subr.mxu0 0.0
  %4163 = vmatpush2.msra.mxu0 0.0
  %4164 = vmatprep.mubr.f32.mxu0 0.0
  %4165 = vmatmul.mubr.f32.gmra.mxu0 %v4098
  %v4166 = vpop.f32.mrf.mxu0
  %v4167 = vadd.f32 0.0, %v4166
  %v4168 = vpop.f32.mrf.mxu0
  %4169 = vdwg.mxu0
  %v4171 = vsel %vm227, %v65, 0
  %4173 = vmatprep.subr.mxu0 0.0
  %4174 = vmatpush1.msra.mxu0 0.0
  %4175 = vmatprep.subr.mxu0 0.0
  %4176 = vmatpush1.msra.mxu0 0.0
  %4177 = vmatprep.subr.mxu0 0.0
  %4178 = vmatpush1.msra.mxu0 0.0
  %4179 = vmatprep.subr.mxu0 0.0
  %4180 = vmatpush1.msra.mxu0 0.0
  %4181 = vmatprep.subr.mxu0 0.0
  %4182 = vmatpush1.msra.mxu0 0.0
  %4183 = vmatprep.subr.mxu0 0.0
  %4184 = vmatpush1.msra.mxu0 0.0
  %4185 = vmatprep.subr.mxu0 0.0
  %4186 = vmatpush1.msra.mxu0 0.0
  %4187 = vmatprep.subr.mxu0 0.0
  %4188 = vmatpush1.msra.mxu0 0.0
  %4189 = vmatprep.subr.mxu0 0.0
  %4190 = vmatpush1.msra.mxu0 0.0
  %4191 = vmatprep.subr.mxu0 0.0
  %4192 = vmatpush1.msra.mxu0 0.0
  %4193 = vmatprep.subr.mxu0 0.0
  %4194 = vmatpush1.msra.mxu0 0.0
  %4195 = vmatprep.subr.mxu0 0.0
  %4196 = vmatpush1.msra.mxu0 0.0
  %4197 = vmatprep.subr.mxu0 0.0
  %4198 = vmatpush1.msra.mxu0 0.0
  %4199 = vmatprep.subr.mxu0 0.0
  %4200 = vmatpush1.msra.mxu0 0.0
  %4201 = vmatprep.subr.mxu0 0.0
  %4202 = vmatpush1.msra.mxu0 %v192
  %4203 = vmatprep.subr.mxu0 0.0
  %4204 = vmatpush1.msra.mxu0 %v191
  %4205 = vmatprep.subr.mxu0 0.0
  %4206 = vmatpush2.msra.mxu0 0.0
  %4207 = vmatprep.subr.mxu0 0.0
  %4208 = vmatpush2.msra.mxu0 0.0
  %4209 = vmatprep.subr.mxu0 0.0
  %4210 = vmatpush2.msra.mxu0 0.0
  %4211 = vmatprep.subr.mxu0 0.0
  %4212 = vmatpush2.msra.mxu0 0.0
  %4213 = vmatprep.subr.mxu0 0.0
  %4214 = vmatpush2.msra.mxu0 0.0
  %4215 = vmatprep.subr.mxu0 0.0
  %4216 = vmatpush2.msra.mxu0 0.0
  %4217 = vmatprep.subr.mxu0 0.0
  %4218 = vmatpush2.msra.mxu0 0.0
  %4219 = vmatprep.subr.mxu0 0.0
  %4220 = vmatpush2.msra.mxu0 0.0
  %4221 = vmatprep.subr.mxu0 0.0
  %4222 = vmatpush2.msra.mxu0 0.0
  %4223 = vmatprep.subr.mxu0 0.0
  %4224 = vmatpush2.msra.mxu0 0.0
  %4225 = vmatprep.subr.mxu0 0.0
  %4226 = vmatpush2.msra.mxu0 0.0
  %4227 = vmatprep.subr.mxu0 0.0
  %4228 = vmatpush2.msra.mxu0 0.0
  %4229 = vmatprep.subr.mxu0 0.0
  %4230 = vmatpush2.msra.mxu0 0.0
  %4231 = vmatprep.subr.mxu0 0.0
  %4232 = vmatpush2.msra.mxu0 0.0
  %4233 = vmatprep.subr.mxu0 0.0
  %4234 = vmatpush2.msra.mxu0 0.0
  %4235 = vmatprep.subr.mxu0 0.0
  %4236 = vmatpush2.msra.mxu0 0.0
  %4237 = vmatprep.mubr.f32.mxu0 0.0
  %4238 = vmatmul.mubr.f32.gmra.mxu0 %v4171
  %v4239 = vpop.f32.mrf.mxu0
  %v4240 = vadd.f32 0.0, %v4239
  %v4241 = vpop.f32.mrf.mxu0
  %4242 = vdwg.mxu0
  %v4244 = vsel %vm227, %v66, 0
  %4246 = vmatprep.subr.mxu0 0.0
  %4247 = vmatpush1.msra.mxu0 0.0
  %4248 = vmatprep.subr.mxu0 0.0
  %4249 = vmatpush1.msra.mxu0 0.0
  %4250 = vmatprep.subr.mxu0 0.0
  %4251 = vmatpush1.msra.mxu0 0.0
  %4252 = vmatprep.subr.mxu0 0.0
  %4253 = vmatpush1.msra.mxu0 0.0
  %4254 = vmatprep.subr.mxu0 0.0
  %4255 = vmatpush1.msra.mxu0 0.0
  %4256 = vmatprep.subr.mxu0 0.0
  %4257 = vmatpush1.msra.mxu0 0.0
  %4258 = vmatprep.subr.mxu0 0.0
  %4259 = vmatpush1.msra.mxu0 0.0
  %4260 = vmatprep.subr.mxu0 0.0
  %4261 = vmatpush1.msra.mxu0 0.0
  %4262 = vmatprep.subr.mxu0 0.0
  %4263 = vmatpush1.msra.mxu0 0.0
  %4264 = vmatprep.subr.mxu0 0.0
  %4265 = vmatpush1.msra.mxu0 0.0
  %4266 = vmatprep.subr.mxu0 0.0
  %4267 = vmatpush1.msra.mxu0 0.0
  %4268 = vmatprep.subr.mxu0 0.0
  %4269 = vmatpush1.msra.mxu0 0.0
  %4270 = vmatprep.subr.mxu0 0.0
  %4271 = vmatpush1.msra.mxu0 0.0
  %4272 = vmatprep.subr.mxu0 0.0
  %4273 = vmatpush1.msra.mxu0 0.0
  %4274 = vmatprep.subr.mxu0 0.0
  %4275 = vmatpush1.msra.mxu0 %v194
  %4276 = vmatprep.subr.mxu0 0.0
  %4277 = vmatpush1.msra.mxu0 %v193
  %4278 = vmatprep.subr.mxu0 0.0
  %4279 = vmatpush2.msra.mxu0 0.0
  %4280 = vmatprep.subr.mxu0 0.0
  %4281 = vmatpush2.msra.mxu0 0.0
  %4282 = vmatprep.subr.mxu0 0.0
  %4283 = vmatpush2.msra.mxu0 0.0
  %4284 = vmatprep.subr.mxu0 0.0
  %4285 = vmatpush2.msra.mxu0 0.0
  %4286 = vmatprep.subr.mxu0 0.0
  %4287 = vmatpush2.msra.mxu0 0.0
  %4288 = vmatprep.subr.mxu0 0.0
  %4289 = vmatpush2.msra.mxu0 0.0
  %4290 = vmatprep.subr.mxu0 0.0
  %4291 = vmatpush2.msra.mxu0 0.0
  %4292 = vmatprep.subr.mxu0 0.0
  %4293 = vmatpush2.msra.mxu0 0.0
  %4294 = vmatprep.subr.mxu0 0.0
  %4295 = vmatpush2.msra.mxu0 0.0
  %4296 = vmatprep.subr.mxu0 0.0
  %4297 = vmatpush2.msra.mxu0 0.0
  %4298 = vmatprep.subr.mxu0 0.0
  %4299 = vmatpush2.msra.mxu0 0.0
  %4300 = vmatprep.subr.mxu0 0.0
  %4301 = vmatpush2.msra.mxu0 0.0
  %4302 = vmatprep.subr.mxu0 0.0
  %4303 = vmatpush2.msra.mxu0 0.0
  %4304 = vmatprep.subr.mxu0 0.0
  %4305 = vmatpush2.msra.mxu0 0.0
  %4306 = vmatprep.subr.mxu0 0.0
  %4307 = vmatpush2.msra.mxu0 0.0
  %4308 = vmatprep.subr.mxu0 0.0
  %4309 = vmatpush2.msra.mxu0 0.0
  %4310 = vmatprep.mubr.f32.mxu0 0.0
  %4311 = vmatmul.mubr.f32.gmra.mxu0 %v4244
  %v4312 = vpop.f32.mrf.mxu0
  %v4313 = vadd.f32 0.0, %v4312
  %v4314 = vpop.f32.mrf.mxu0
  %4315 = vdwg.mxu0
  %v4317 = vsel %vm227, %v67, 0
  %4319 = vmatprep.subr.mxu0 0.0
  %4320 = vmatpush1.msra.mxu0 0.0
  %4321 = vmatprep.subr.mxu0 0.0
  %4322 = vmatpush1.msra.mxu0 0.0
  %4323 = vmatprep.subr.mxu0 0.0
  %4324 = vmatpush1.msra.mxu0 0.0
  %4325 = vmatprep.subr.mxu0 0.0
  %4326 = vmatpush1.msra.mxu0 0.0
  %4327 = vmatprep.subr.mxu0 0.0
  %4328 = vmatpush1.msra.mxu0 0.0
  %4329 = vmatprep.subr.mxu0 0.0
  %4330 = vmatpush1.msra.mxu0 0.0
  %4331 = vmatprep.subr.mxu0 0.0
  %4332 = vmatpush1.msra.mxu0 0.0
  %4333 = vmatprep.subr.mxu0 0.0
  %4334 = vmatpush1.msra.mxu0 0.0
  %4335 = vmatprep.subr.mxu0 0.0
  %4336 = vmatpush1.msra.mxu0 0.0
  %4337 = vmatprep.subr.mxu0 0.0
  %4338 = vmatpush1.msra.mxu0 0.0
  %4339 = vmatprep.subr.mxu0 0.0
  %4340 = vmatpush1.msra.mxu0 0.0
  %4341 = vmatprep.subr.mxu0 0.0
  %4342 = vmatpush1.msra.mxu0 0.0
  %4343 = vmatprep.subr.mxu0 0.0
  %4344 = vmatpush1.msra.mxu0 0.0
  %4345 = vmatprep.subr.mxu0 0.0
  %4346 = vmatpush1.msra.mxu0 0.0
  %4347 = vmatprep.subr.mxu0 0.0
  %4348 = vmatpush1.msra.mxu0 %v196
  %4349 = vmatprep.subr.mxu0 0.0
  %4350 = vmatpush1.msra.mxu0 %v195
  %4351 = vmatprep.subr.mxu0 0.0
  %4352 = vmatpush2.msra.mxu0 0.0
  %4353 = vmatprep.subr.mxu0 0.0
  %4354 = vmatpush2.msra.mxu0 0.0
  %4355 = vmatprep.subr.mxu0 0.0
  %4356 = vmatpush2.msra.mxu0 0.0
  %4357 = vmatprep.subr.mxu0 0.0
  %4358 = vmatpush2.msra.mxu0 0.0
  %4359 = vmatprep.subr.mxu0 0.0
  %4360 = vmatpush2.msra.mxu0 0.0
  %4361 = vmatprep.subr.mxu0 0.0
  %4362 = vmatpush2.msra.mxu0 0.0
  %4363 = vmatprep.subr.mxu0 0.0
  %4364 = vmatpush2.msra.mxu0 0.0
  %4365 = vmatprep.subr.mxu0 0.0
  %4366 = vmatpush2.msra.mxu0 0.0
  %4367 = vmatprep.subr.mxu0 0.0
  %4368 = vmatpush2.msra.mxu0 0.0
  %4369 = vmatprep.subr.mxu0 0.0
  %4370 = vmatpush2.msra.mxu0 0.0
  %4371 = vmatprep.subr.mxu0 0.0
  %4372 = vmatpush2.msra.mxu0 0.0
  %4373 = vmatprep.subr.mxu0 0.0
  %4374 = vmatpush2.msra.mxu0 0.0
  %4375 = vmatprep.subr.mxu0 0.0
  %4376 = vmatpush2.msra.mxu0 0.0
  %4377 = vmatprep.subr.mxu0 0.0
  %4378 = vmatpush2.msra.mxu0 0.0
  %4379 = vmatprep.subr.mxu0 0.0
  %4380 = vmatpush2.msra.mxu0 0.0
  %4381 = vmatprep.subr.mxu0 0.0
  %4382 = vmatpush2.msra.mxu0 0.0
  %4383 = vmatprep.mubr.f32.mxu0 0.0
  %4384 = vmatmul.mubr.f32.gmra.mxu0 %v4317
  %v4385 = vpop.f32.mrf.mxu0
  %v4386 = vadd.f32 0.0, %v4385
  %v4387 = vpop.f32.mrf.mxu0
  %4388 = vdwg.mxu0
  %v4390 = vsel %vm227, %v68, 0
  %4392 = vmatprep.subr.mxu0 0.0
  %4393 = vmatpush1.msra.mxu0 0.0
  %4394 = vmatprep.subr.mxu0 0.0
  %4395 = vmatpush1.msra.mxu0 0.0
  %4396 = vmatprep.subr.mxu0 0.0
  %4397 = vmatpush1.msra.mxu0 0.0
  %4398 = vmatprep.subr.mxu0 0.0
  %4399 = vmatpush1.msra.mxu0 0.0
  %4400 = vmatprep.subr.mxu0 0.0
  %4401 = vmatpush1.msra.mxu0 0.0
  %4402 = vmatprep.subr.mxu0 0.0
  %4403 = vmatpush1.msra.mxu0 0.0
  %4404 = vmatprep.subr.mxu0 0.0
  %4405 = vmatpush1.msra.mxu0 0.0
  %4406 = vmatprep.subr.mxu0 0.0
  %4407 = vmatpush1.msra.mxu0 0.0
  %4408 = vmatprep.subr.mxu0 0.0
  %4409 = vmatpush1.msra.mxu0 0.0
  %4410 = vmatprep.subr.mxu0 0.0
  %4411 = vmatpush1.msra.mxu0 0.0
  %4412 = vmatprep.subr.mxu0 0.0
  %4413 = vmatpush1.msra.mxu0 0.0
  %4414 = vmatprep.subr.mxu0 0.0
  %4415 = vmatpush1.msra.mxu0 0.0
  %4416 = vmatprep.subr.mxu0 0.0
  %4417 = vmatpush1.msra.mxu0 0.0
  %4418 = vmatprep.subr.mxu0 0.0
  %4419 = vmatpush1.msra.mxu0 0.0
  %4420 = vmatprep.subr.mxu0 0.0
  %4421 = vmatpush1.msra.mxu0 %v198
  %4422 = vmatprep.subr.mxu0 0.0
  %4423 = vmatpush1.msra.mxu0 %v197
  %4424 = vmatprep.subr.mxu0 0.0
  %4425 = vmatpush2.msra.mxu0 0.0
  %4426 = vmatprep.subr.mxu0 0.0
  %4427 = vmatpush2.msra.mxu0 0.0
  %4428 = vmatprep.subr.mxu0 0.0
  %4429 = vmatpush2.msra.mxu0 0.0
  %4430 = vmatprep.subr.mxu0 0.0
  %4431 = vmatpush2.msra.mxu0 0.0
  %4432 = vmatprep.subr.mxu0 0.0
  %4433 = vmatpush2.msra.mxu0 0.0
  %4434 = vmatprep.subr.mxu0 0.0
  %4435 = vmatpush2.msra.mxu0 0.0
  %4436 = vmatprep.subr.mxu0 0.0
  %4437 = vmatpush2.msra.mxu0 0.0
  %4438 = vmatprep.subr.mxu0 0.0
  %4439 = vmatpush2.msra.mxu0 0.0
  %4440 = vmatprep.subr.mxu0 0.0
  %4441 = vmatpush2.msra.mxu0 0.0
  %4442 = vmatprep.subr.mxu0 0.0
  %4443 = vmatpush2.msra.mxu0 0.0
  %4444 = vmatprep.subr.mxu0 0.0
  %4445 = vmatpush2.msra.mxu0 0.0
  %4446 = vmatprep.subr.mxu0 0.0
  %4447 = vmatpush2.msra.mxu0 0.0
  %4448 = vmatprep.subr.mxu0 0.0
  %4449 = vmatpush2.msra.mxu0 0.0
  %4450 = vmatprep.subr.mxu0 0.0
  %4451 = vmatpush2.msra.mxu0 0.0
  %4452 = vmatprep.subr.mxu0 0.0
  %4453 = vmatpush2.msra.mxu0 0.0
  %4454 = vmatprep.subr.mxu0 0.0
  %4455 = vmatpush2.msra.mxu0 0.0
  %4456 = vmatprep.mubr.f32.mxu0 0.0
  %4457 = vmatmul.mubr.f32.gmra.mxu0 %v4390
  %v4458 = vpop.f32.mrf.mxu0
  %v4459 = vadd.f32 0.0, %v4458
  %v4460 = vpop.f32.mrf.mxu0
  %4461 = vdwg.mxu0
  %v4463 = vsel %vm227, %v69, 0
  %4465 = vmatprep.subr.mxu0 0.0
  %4466 = vmatpush1.msra.mxu0 0.0
  %4467 = vmatprep.subr.mxu0 0.0
  %4468 = vmatpush1.msra.mxu0 0.0
  %4469 = vmatprep.subr.mxu0 0.0
  %4470 = vmatpush1.msra.mxu0 0.0
  %4471 = vmatprep.subr.mxu0 0.0
  %4472 = vmatpush1.msra.mxu0 0.0
  %4473 = vmatprep.subr.mxu0 0.0
  %4474 = vmatpush1.msra.mxu0 0.0
  %4475 = vmatprep.subr.mxu0 0.0
  %4476 = vmatpush1.msra.mxu0 0.0
  %4477 = vmatprep.subr.mxu0 0.0
  %4478 = vmatpush1.msra.mxu0 0.0
  %4479 = vmatprep.subr.mxu0 0.0
  %4480 = vmatpush1.msra.mxu0 0.0
  %4481 = vmatprep.subr.mxu0 0.0
  %4482 = vmatpush1.msra.mxu0 0.0
  %4483 = vmatprep.subr.mxu0 0.0
  %4484 = vmatpush1.msra.mxu0 0.0
  %4485 = vmatprep.subr.mxu0 0.0
  %4486 = vmatpush1.msra.mxu0 0.0
  %4487 = vmatprep.subr.mxu0 0.0
  %4488 = vmatpush1.msra.mxu0 0.0
  %4489 = vmatprep.subr.mxu0 0.0
  %4490 = vmatpush1.msra.mxu0 0.0
  %4491 = vmatprep.subr.mxu0 0.0
  %4492 = vmatpush1.msra.mxu0 0.0
  %4493 = vmatprep.subr.mxu0 0.0
  %4494 = vmatpush1.msra.mxu0 %v200
  %4495 = vmatprep.subr.mxu0 0.0
  %4496 = vmatpush1.msra.mxu0 %v199
  %4497 = vmatprep.subr.mxu0 0.0
  %4498 = vmatpush2.msra.mxu0 0.0
  %4499 = vmatprep.subr.mxu0 0.0
  %4500 = vmatpush2.msra.mxu0 0.0
  %4501 = vmatprep.subr.mxu0 0.0
  %4502 = vmatpush2.msra.mxu0 0.0
  %4503 = vmatprep.subr.mxu0 0.0
  %4504 = vmatpush2.msra.mxu0 0.0
  %4505 = vmatprep.subr.mxu0 0.0
  %4506 = vmatpush2.msra.mxu0 0.0
  %4507 = vmatprep.subr.mxu0 0.0
  %4508 = vmatpush2.msra.mxu0 0.0
  %4509 = vmatprep.subr.mxu0 0.0
  %4510 = vmatpush2.msra.mxu0 0.0
  %4511 = vmatprep.subr.mxu0 0.0
  %4512 = vmatpush2.msra.mxu0 0.0
  %4513 = vmatprep.subr.mxu0 0.0
  %4514 = vmatpush2.msra.mxu0 0.0
  %4515 = vmatprep.subr.mxu0 0.0
  %4516 = vmatpush2.msra.mxu0 0.0
  %4517 = vmatprep.subr.mxu0 0.0
  %4518 = vmatpush2.msra.mxu0 0.0
  %4519 = vmatprep.subr.mxu0 0.0
  %4520 = vmatpush2.msra.mxu0 0.0
  %4521 = vmatprep.subr.mxu0 0.0
  %4522 = vmatpush2.msra.mxu0 0.0
  %4523 = vmatprep.subr.mxu0 0.0
  %4524 = vmatpush2.msra.mxu0 0.0
  %4525 = vmatprep.subr.mxu0 0.0
  %4526 = vmatpush2.msra.mxu0 0.0
  %4527 = vmatprep.subr.mxu0 0.0
  %4528 = vmatpush2.msra.mxu0 0.0
  %4529 = vmatprep.mubr.f32.mxu0 0.0
  %4530 = vmatmul.mubr.f32.gmra.mxu0 %v4463
  %v4531 = vpop.f32.mrf.mxu0
  %v4532 = vadd.f32 0.0, %v4531
  %v4533 = vpop.f32.mrf.mxu0
  %4534 = vdwg.mxu0
  %v4536 = vsel %vm227, %v70, 0
  %4538 = vmatprep.subr.mxu0 0.0
  %4539 = vmatpush1.msra.mxu0 0.0
  %4540 = vmatprep.subr.mxu0 0.0
  %4541 = vmatpush1.msra.mxu0 0.0
  %4542 = vmatprep.subr.mxu0 0.0
  %4543 = vmatpush1.msra.mxu0 0.0
  %4544 = vmatprep.subr.mxu0 0.0
  %4545 = vmatpush1.msra.mxu0 0.0
  %4546 = vmatprep.subr.mxu0 0.0
  %4547 = vmatpush1.msra.mxu0 0.0
  %4548 = vmatprep.subr.mxu0 0.0
  %4549 = vmatpush1.msra.mxu0 0.0
  %4550 = vmatprep.subr.mxu0 0.0
  %4551 = vmatpush1.msra.mxu0 0.0
  %4552 = vmatprep.subr.mxu0 0.0
  %4553 = vmatpush1.msra.mxu0 0.0
  %4554 = vmatprep.subr.mxu0 0.0
  %4555 = vmatpush1.msra.mxu0 0.0
  %4556 = vmatprep.subr.mxu0 0.0
  %4557 = vmatpush1.msra.mxu0 0.0
  %4558 = vmatprep.subr.mxu0 0.0
  %4559 = vmatpush1.msra.mxu0 0.0
  %4560 = vmatprep.subr.mxu0 0.0
  %4561 = vmatpush1.msra.mxu0 0.0
  %4562 = vmatprep.subr.mxu0 0.0
  %4563 = vmatpush1.msra.mxu0 0.0
  %4564 = vmatprep.subr.mxu0 0.0
  %4565 = vmatpush1.msra.mxu0 0.0
  %4566 = vmatprep.subr.mxu0 0.0
  %4567 = vmatpush1.msra.mxu0 %v202
  %4568 = vmatprep.subr.mxu0 0.0
  %4569 = vmatpush1.msra.mxu0 %v201
  %4570 = vmatprep.subr.mxu0 0.0
  %4571 = vmatpush2.msra.mxu0 0.0
  %4572 = vmatprep.subr.mxu0 0.0
  %4573 = vmatpush2.msra.mxu0 0.0
  %4574 = vmatprep.subr.mxu0 0.0
  %4575 = vmatpush2.msra.mxu0 0.0
  %4576 = vmatprep.subr.mxu0 0.0
  %4577 = vmatpush2.msra.mxu0 0.0
  %4578 = vmatprep.subr.mxu0 0.0
  %4579 = vmatpush2.msra.mxu0 0.0
  %4580 = vmatprep.subr.mxu0 0.0
  %4581 = vmatpush2.msra.mxu0 0.0
  %4582 = vmatprep.subr.mxu0 0.0
  %4583 = vmatpush2.msra.mxu0 0.0
  %4584 = vmatprep.subr.mxu0 0.0
  %4585 = vmatpush2.msra.mxu0 0.0
  %4586 = vmatprep.subr.mxu0 0.0
  %4587 = vmatpush2.msra.mxu0 0.0
  %4588 = vmatprep.subr.mxu0 0.0
  %4589 = vmatpush2.msra.mxu0 0.0
  %4590 = vmatprep.subr.mxu0 0.0
  %4591 = vmatpush2.msra.mxu0 0.0
  %4592 = vmatprep.subr.mxu0 0.0
  %4593 = vmatpush2.msra.mxu0 0.0
  %4594 = vmatprep.subr.mxu0 0.0
  %4595 = vmatpush2.msra.mxu0 0.0
  %4596 = vmatprep.subr.mxu0 0.0
  %4597 = vmatpush2.msra.mxu0 0.0
  %4598 = vmatprep.subr.mxu0 0.0
  %4599 = vmatpush2.msra.mxu0 0.0
  %4600 = vmatprep.subr.mxu0 0.0
  %4601 = vmatpush2.msra.mxu0 0.0
  %4602 = vmatprep.mubr.f32.mxu0 0.0
  %4603 = vmatmul.mubr.f32.gmra.mxu0 %v4536
  %v4604 = vpop.f32.mrf.mxu0
  %v4605 = vadd.f32 0.0, %v4604
  %v4606 = vpop.f32.mrf.mxu0
  %4607 = vdwg.mxu0
  %v4609 = vsel %vm227, %v71, 0
  %4611 = vmatprep.subr.mxu0 0.0
  %4612 = vmatpush1.msra.mxu0 0.0
  %4613 = vmatprep.subr.mxu0 0.0
  %4614 = vmatpush1.msra.mxu0 0.0
  %4615 = vmatprep.subr.mxu0 0.0
  %4616 = vmatpush1.msra.mxu0 0.0
  %4617 = vmatprep.subr.mxu0 0.0
  %4618 = vmatpush1.msra.mxu0 0.0
  %4619 = vmatprep.subr.mxu0 0.0
  %4620 = vmatpush1.msra.mxu0 0.0
  %4621 = vmatprep.subr.mxu0 0.0
  %4622 = vmatpush1.msra.mxu0 0.0
  %4623 = vmatprep.subr.mxu0 0.0
  %4624 = vmatpush1.msra.mxu0 0.0
  %4625 = vmatprep.subr.mxu0 0.0
  %4626 = vmatpush1.msra.mxu0 0.0
  %4627 = vmatprep.subr.mxu0 0.0
  %4628 = vmatpush1.msra.mxu0 0.0
  %4629 = vmatprep.subr.mxu0 0.0
  %4630 = vmatpush1.msra.mxu0 0.0
  %4631 = vmatprep.subr.mxu0 0.0
  %4632 = vmatpush1.msra.mxu0 0.0
  %4633 = vmatprep.subr.mxu0 0.0
  %4634 = vmatpush1.msra.mxu0 0.0
  %4635 = vmatprep.subr.mxu0 0.0
  %4636 = vmatpush1.msra.mxu0 0.0
  %4637 = vmatprep.subr.mxu0 0.0
  %4638 = vmatpush1.msra.mxu0 0.0
  %4639 = vmatprep.subr.mxu0 0.0
  %4640 = vmatpush1.msra.mxu0 %v204
  %4641 = vmatprep.subr.mxu0 0.0
  %4642 = vmatpush1.msra.mxu0 %v203
  %4643 = vmatprep.subr.mxu0 0.0
  %4644 = vmatpush2.msra.mxu0 0.0
  %4645 = vmatprep.subr.mxu0 0.0
  %4646 = vmatpush2.msra.mxu0 0.0
  %4647 = vmatprep.subr.mxu0 0.0
  %4648 = vmatpush2.msra.mxu0 0.0
  %4649 = vmatprep.subr.mxu0 0.0
  %4650 = vmatpush2.msra.mxu0 0.0
  %4651 = vmatprep.subr.mxu0 0.0
  %4652 = vmatpush2.msra.mxu0 0.0
  %4653 = vmatprep.subr.mxu0 0.0
  %4654 = vmatpush2.msra.mxu0 0.0
  %4655 = vmatprep.subr.mxu0 0.0
  %4656 = vmatpush2.msra.mxu0 0.0
  %4657 = vmatprep.subr.mxu0 0.0
  %4658 = vmatpush2.msra.mxu0 0.0
  %4659 = vmatprep.subr.mxu0 0.0
  %4660 = vmatpush2.msra.mxu0 0.0
  %4661 = vmatprep.subr.mxu0 0.0
  %4662 = vmatpush2.msra.mxu0 0.0
  %4663 = vmatprep.subr.mxu0 0.0
  %4664 = vmatpush2.msra.mxu0 0.0
  %4665 = vmatprep.subr.mxu0 0.0
  %4666 = vmatpush2.msra.mxu0 0.0
  %4667 = vmatprep.subr.mxu0 0.0
  %4668 = vmatpush2.msra.mxu0 0.0
  %4669 = vmatprep.subr.mxu0 0.0
  %4670 = vmatpush2.msra.mxu0 0.0
  %4671 = vmatprep.subr.mxu0 0.0
  %4672 = vmatpush2.msra.mxu0 0.0
  %4673 = vmatprep.subr.mxu0 0.0
  %4674 = vmatpush2.msra.mxu0 0.0
  %4675 = vmatprep.mubr.f32.mxu0 0.0
  %4676 = vmatmul.mubr.f32.gmra.mxu0 %v4609
  %v4677 = vpop.f32.mrf.mxu0
  %v4678 = vadd.f32 0.0, %v4677
  %v4679 = vpop.f32.mrf.mxu0
  %4680 = vdwg.mxu0
  %v4682 = vsel %vm227, %v72, 0
  %4684 = vmatprep.subr.mxu0 0.0
  %4685 = vmatpush1.msra.mxu0 0.0
  %4686 = vmatprep.subr.mxu0 0.0
  %4687 = vmatpush1.msra.mxu0 0.0
  %4688 = vmatprep.subr.mxu0 0.0
  %4689 = vmatpush1.msra.mxu0 0.0
  %4690 = vmatprep.subr.mxu0 0.0
  %4691 = vmatpush1.msra.mxu0 0.0
  %4692 = vmatprep.subr.mxu0 0.0
  %4693 = vmatpush1.msra.mxu0 0.0
  %4694 = vmatprep.subr.mxu0 0.0
  %4695 = vmatpush1.msra.mxu0 0.0
  %4696 = vmatprep.subr.mxu0 0.0
  %4697 = vmatpush1.msra.mxu0 0.0
  %4698 = vmatprep.subr.mxu0 0.0
  %4699 = vmatpush1.msra.mxu0 0.0
  %4700 = vmatprep.subr.mxu0 0.0
  %4701 = vmatpush1.msra.mxu0 0.0
  %4702 = vmatprep.subr.mxu0 0.0
  %4703 = vmatpush1.msra.mxu0 0.0
  %4704 = vmatprep.subr.mxu0 0.0
  %4705 = vmatpush1.msra.mxu0 0.0
  %4706 = vmatprep.subr.mxu0 0.0
  %4707 = vmatpush1.msra.mxu0 0.0
  %4708 = vmatprep.subr.mxu0 0.0
  %4709 = vmatpush1.msra.mxu0 0.0
  %4710 = vmatprep.subr.mxu0 0.0
  %4711 = vmatpush1.msra.mxu0 0.0
  %4712 = vmatprep.subr.mxu0 0.0
  %4713 = vmatpush1.msra.mxu0 %v206
  %4714 = vmatprep.subr.mxu0 0.0
  %4715 = vmatpush1.msra.mxu0 %v205
  %4716 = vmatprep.subr.mxu0 0.0
  %4717 = vmatpush2.msra.mxu0 0.0
  %4718 = vmatprep.subr.mxu0 0.0
  %4719 = vmatpush2.msra.mxu0 0.0
  %4720 = vmatprep.subr.mxu0 0.0
  %4721 = vmatpush2.msra.mxu0 0.0
  %4722 = vmatprep.subr.mxu0 0.0
  %4723 = vmatpush2.msra.mxu0 0.0
  %4724 = vmatprep.subr.mxu0 0.0
  %4725 = vmatpush2.msra.mxu0 0.0
  %4726 = vmatprep.subr.mxu0 0.0
  %4727 = vmatpush2.msra.mxu0 0.0
  %4728 = vmatprep.subr.mxu0 0.0
  %4729 = vmatpush2.msra.mxu0 0.0
  %4730 = vmatprep.subr.mxu0 0.0
  %4731 = vmatpush2.msra.mxu0 0.0
  %4732 = vmatprep.subr.mxu0 0.0
  %4733 = vmatpush2.msra.mxu0 0.0
  %4734 = vmatprep.subr.mxu0 0.0
  %4735 = vmatpush2.msra.mxu0 0.0
  %4736 = vmatprep.subr.mxu0 0.0
  %4737 = vmatpush2.msra.mxu0 0.0
  %4738 = vmatprep.subr.mxu0 0.0
  %4739 = vmatpush2.msra.mxu0 0.0
  %4740 = vmatprep.subr.mxu0 0.0
  %4741 = vmatpush2.msra.mxu0 0.0
  %4742 = vmatprep.subr.mxu0 0.0
  %4743 = vmatpush2.msra.mxu0 0.0
  %4744 = vmatprep.subr.mxu0 0.0
  %4745 = vmatpush2.msra.mxu0 0.0
  %4746 = vmatprep.subr.mxu0 0.0
  %4747 = vmatpush2.msra.mxu0 0.0
  %4748 = vmatprep.mubr.f32.mxu0 0.0
  %4749 = vmatmul.mubr.f32.gmra.mxu0 %v4682
  %v4750 = vpop.f32.mrf.mxu0
  %v4751 = vadd.f32 0.0, %v4750
  %v4752 = vpop.f32.mrf.mxu0
  %4753 = vdwg.mxu0
  %v4755 = vsel %vm227, %v73, 0
  %4757 = vmatprep.subr.mxu0 0.0
  %4758 = vmatpush1.msra.mxu0 0.0
  %4759 = vmatprep.subr.mxu0 0.0
  %4760 = vmatpush1.msra.mxu0 0.0
  %4761 = vmatprep.subr.mxu0 0.0
  %4762 = vmatpush1.msra.mxu0 0.0
  %4763 = vmatprep.subr.mxu0 0.0
  %4764 = vmatpush1.msra.mxu0 0.0
  %4765 = vmatprep.subr.mxu0 0.0
  %4766 = vmatpush1.msra.mxu0 0.0
  %4767 = vmatprep.subr.mxu0 0.0
  %4768 = vmatpush1.msra.mxu0 0.0
  %4769 = vmatprep.subr.mxu0 0.0
  %4770 = vmatpush1.msra.mxu0 0.0
  %4771 = vmatprep.subr.mxu0 0.0
  %4772 = vmatpush1.msra.mxu0 0.0
  %4773 = vmatprep.subr.mxu0 0.0
  %4774 = vmatpush1.msra.mxu0 0.0
  %4775 = vmatprep.subr.mxu0 0.0
  %4776 = vmatpush1.msra.mxu0 0.0
  %4777 = vmatprep.subr.mxu0 0.0
  %4778 = vmatpush1.msra.mxu0 0.0
  %4779 = vmatprep.subr.mxu0 0.0
  %4780 = vmatpush1.msra.mxu0 0.0
  %4781 = vmatprep.subr.mxu0 0.0
  %4782 = vmatpush1.msra.mxu0 0.0
  %4783 = vmatprep.subr.mxu0 0.0
  %4784 = vmatpush1.msra.mxu0 0.0
  %4785 = vmatprep.subr.mxu0 0.0
  %4786 = vmatpush1.msra.mxu0 %v208
  %4787 = vmatprep.subr.mxu0 0.0
  %4788 = vmatpush1.msra.mxu0 %v207
  %4789 = vmatprep.subr.mxu0 0.0
  %4790 = vmatpush2.msra.mxu0 0.0
  %4791 = vmatprep.subr.mxu0 0.0
  %4792 = vmatpush2.msra.mxu0 0.0
  %4793 = vmatprep.subr.mxu0 0.0
  %4794 = vmatpush2.msra.mxu0 0.0
  %4795 = vmatprep.subr.mxu0 0.0
  %4796 = vmatpush2.msra.mxu0 0.0
  %4797 = vmatprep.subr.mxu0 0.0
  %4798 = vmatpush2.msra.mxu0 0.0
  %4799 = vmatprep.subr.mxu0 0.0
  %4800 = vmatpush2.msra.mxu0 0.0
  %4801 = vmatprep.subr.mxu0 0.0
  %4802 = vmatpush2.msra.mxu0 0.0
  %4803 = vmatprep.subr.mxu0 0.0
  %4804 = vmatpush2.msra.mxu0 0.0
  %4805 = vmatprep.subr.mxu0 0.0
  %4806 = vmatpush2.msra.mxu0 0.0
  %4807 = vmatprep.subr.mxu0 0.0
  %4808 = vmatpush2.msra.mxu0 0.0
  %4809 = vmatprep.subr.mxu0 0.0
  %4810 = vmatpush2.msra.mxu0 0.0
  %4811 = vmatprep.subr.mxu0 0.0
  %4812 = vmatpush2.msra.mxu0 0.0
  %4813 = vmatprep.subr.mxu0 0.0
  %4814 = vmatpush2.msra.mxu0 0.0
  %4815 = vmatprep.subr.mxu0 0.0
  %4816 = vmatpush2.msra.mxu0 0.0
  %4817 = vmatprep.subr.mxu0 0.0
  %4818 = vmatpush2.msra.mxu0 0.0
  %4819 = vmatprep.subr.mxu0 0.0
  %4820 = vmatpush2.msra.mxu0 0.0
  %4821 = vmatprep.mubr.f32.mxu0 0.0
  %4822 = vmatmul.mubr.f32.gmra.mxu0 %v4755
  %v4823 = vpop.f32.mrf.mxu0
  %v4824 = vadd.f32 0.0, %v4823
  %v4825 = vpop.f32.mrf.mxu0
  %4826 = vdwg.mxu0
  %v4828 = vsel %vm227, %v74, 0
  %4830 = vmatprep.subr.mxu0 0.0
  %4831 = vmatpush1.msra.mxu0 0.0
  %4832 = vmatprep.subr.mxu0 0.0
  %4833 = vmatpush1.msra.mxu0 0.0
  %4834 = vmatprep.subr.mxu0 0.0
  %4835 = vmatpush1.msra.mxu0 0.0
  %4836 = vmatprep.subr.mxu0 0.0
  %4837 = vmatpush1.msra.mxu0 0.0
  %4838 = vmatprep.subr.mxu0 0.0
  %4839 = vmatpush1.msra.mxu0 0.0
  %4840 = vmatprep.subr.mxu0 0.0
  %4841 = vmatpush1.msra.mxu0 0.0
  %4842 = vmatprep.subr.mxu0 0.0
  %4843 = vmatpush1.msra.mxu0 0.0
  %4844 = vmatprep.subr.mxu0 0.0
  %4845 = vmatpush1.msra.mxu0 0.0
  %4846 = vmatprep.subr.mxu0 0.0
  %4847 = vmatpush1.msra.mxu0 0.0
  %4848 = vmatprep.subr.mxu0 0.0
  %4849 = vmatpush1.msra.mxu0 0.0
  %4850 = vmatprep.subr.mxu0 0.0
  %4851 = vmatpush1.msra.mxu0 0.0
  %4852 = vmatprep.subr.mxu0 0.0
  %4853 = vmatpush1.msra.mxu0 0.0
  %4854 = vmatprep.subr.mxu0 0.0
  %4855 = vmatpush1.msra.mxu0 0.0
  %4856 = vmatprep.subr.mxu0 0.0
  %4857 = vmatpush1.msra.mxu0 0.0
  %4858 = vmatprep.subr.mxu0 0.0
  %4859 = vmatpush1.msra.mxu0 %v210
  %4860 = vmatprep.subr.mxu0 0.0
  %4861 = vmatpush1.msra.mxu0 %v209
  %4862 = vmatprep.subr.mxu0 0.0
  %4863 = vmatpush2.msra.mxu0 0.0
  %4864 = vmatprep.subr.mxu0 0.0
  %4865 = vmatpush2.msra.mxu0 0.0
  %4866 = vmatprep.subr.mxu0 0.0
  %4867 = vmatpush2.msra.mxu0 0.0
  %4868 = vmatprep.subr.mxu0 0.0
  %4869 = vmatpush2.msra.mxu0 0.0
  %4870 = vmatprep.subr.mxu0 0.0
  %4871 = vmatpush2.msra.mxu0 0.0
  %4872 = vmatprep.subr.mxu0 0.0
  %4873 = vmatpush2.msra.mxu0 0.0
  %4874 = vmatprep.subr.mxu0 0.0
  %4875 = vmatpush2.msra.mxu0 0.0
  %4876 = vmatprep.subr.mxu0 0.0
  %4877 = vmatpush2.msra.mxu0 0.0
  %4878 = vmatprep.subr.mxu0 0.0
  %4879 = vmatpush2.msra.mxu0 0.0
  %4880 = vmatprep.subr.mxu0 0.0
  %4881 = vmatpush2.msra.mxu0 0.0
  %4882 = vmatprep.subr.mxu0 0.0
  %4883 = vmatpush2.msra.mxu0 0.0
  %4884 = vmatprep.subr.mxu0 0.0
  %4885 = vmatpush2.msra.mxu0 0.0
  %4886 = vmatprep.subr.mxu0 0.0
  %4887 = vmatpush2.msra.mxu0 0.0
  %4888 = vmatprep.subr.mxu0 0.0
  %4889 = vmatpush2.msra.mxu0 0.0
  %4890 = vmatprep.subr.mxu0 0.0
  %4891 = vmatpush2.msra.mxu0 0.0
  %4892 = vmatprep.subr.mxu0 0.0
  %4893 = vmatpush2.msra.mxu0 0.0
  %4894 = vmatprep.mubr.f32.mxu0 0.0
  %4895 = vmatmul.mubr.f32.gmra.mxu0 %v4828
  %v4896 = vpop.f32.mrf.mxu0
  %v4897 = vadd.f32 0.0, %v4896
  %v4898 = vpop.f32.mrf.mxu0
  %4899 = vdwg.mxu0
  %v4901 = vsel %vm227, %v75, 0
  %4903 = vmatprep.subr.mxu0 0.0
  %4904 = vmatpush1.msra.mxu0 0.0
  %4905 = vmatprep.subr.mxu0 0.0
  %4906 = vmatpush1.msra.mxu0 0.0
  %4907 = vmatprep.subr.mxu0 0.0
  %4908 = vmatpush1.msra.mxu0 0.0
  %4909 = vmatprep.subr.mxu0 0.0
  %4910 = vmatpush1.msra.mxu0 0.0
  %4911 = vmatprep.subr.mxu0 0.0
  %4912 = vmatpush1.msra.mxu0 0.0
  %4913 = vmatprep.subr.mxu0 0.0
  %4914 = vmatpush1.msra.mxu0 0.0
  %4915 = vmatprep.subr.mxu0 0.0
  %4916 = vmatpush1.msra.mxu0 0.0
  %4917 = vmatprep.subr.mxu0 0.0
  %4918 = vmatpush1.msra.mxu0 0.0
  %4919 = vmatprep.subr.mxu0 0.0
  %4920 = vmatpush1.msra.mxu0 0.0
  %4921 = vmatprep.subr.mxu0 0.0
  %4922 = vmatpush1.msra.mxu0 0.0
  %4923 = vmatprep.subr.mxu0 0.0
  %4924 = vmatpush1.msra.mxu0 0.0
  %4925 = vmatprep.subr.mxu0 0.0
  %4926 = vmatpush1.msra.mxu0 0.0
  %4927 = vmatprep.subr.mxu0 0.0
  %4928 = vmatpush1.msra.mxu0 0.0
  %4929 = vmatprep.subr.mxu0 0.0
  %4930 = vmatpush1.msra.mxu0 0.0
  %4931 = vmatprep.subr.mxu0 0.0
  %4932 = vmatpush1.msra.mxu0 %v212
  %4933 = vmatprep.subr.mxu0 0.0
  %4934 = vmatpush1.msra.mxu0 %v211
  %4935 = vmatprep.subr.mxu0 0.0
  %4936 = vmatpush2.msra.mxu0 0.0
  %4937 = vmatprep.subr.mxu0 0.0
  %4938 = vmatpush2.msra.mxu0 0.0
  %4939 = vmatprep.subr.mxu0 0.0
  %4940 = vmatpush2.msra.mxu0 0.0
  %4941 = vmatprep.subr.mxu0 0.0
  %4942 = vmatpush2.msra.mxu0 0.0
  %4943 = vmatprep.subr.mxu0 0.0
  %4944 = vmatpush2.msra.mxu0 0.0
  %4945 = vmatprep.subr.mxu0 0.0
  %4946 = vmatpush2.msra.mxu0 0.0
  %4947 = vmatprep.subr.mxu0 0.0
  %4948 = vmatpush2.msra.mxu0 0.0
  %4949 = vmatprep.subr.mxu0 0.0
  %4950 = vmatpush2.msra.mxu0 0.0
  %4951 = vmatprep.subr.mxu0 0.0
  %4952 = vmatpush2.msra.mxu0 0.0
  %4953 = vmatprep.subr.mxu0 0.0
  %4954 = vmatpush2.msra.mxu0 0.0
  %4955 = vmatprep.subr.mxu0 0.0
  %4956 = vmatpush2.msra.mxu0 0.0
  %4957 = vmatprep.subr.mxu0 0.0
  %4958 = vmatpush2.msra.mxu0 0.0
  %4959 = vmatprep.subr.mxu0 0.0
  %4960 = vmatpush2.msra.mxu0 0.0
  %4961 = vmatprep.subr.mxu0 0.0
  %4962 = vmatpush2.msra.mxu0 0.0
  %4963 = vmatprep.subr.mxu0 0.0
  %4964 = vmatpush2.msra.mxu0 0.0
  %4965 = vmatprep.subr.mxu0 0.0
  %4966 = vmatpush2.msra.mxu0 0.0
  %4967 = vmatprep.mubr.f32.mxu0 0.0
  %4968 = vmatmul.mubr.f32.gmra.mxu0 %v4901
  %v4969 = vpop.f32.mrf.mxu0
  %v4970 = vadd.f32 0.0, %v4969
  %v4971 = vpop.f32.mrf.mxu0
  %4972 = vdwg.mxu0
  %v4974 = vsel %vm227, %v76, 0
  %4976 = vmatprep.subr.mxu0 0.0
  %4977 = vmatpush1.msra.mxu0 0.0
  %4978 = vmatprep.subr.mxu0 0.0
  %4979 = vmatpush1.msra.mxu0 0.0
  %4980 = vmatprep.subr.mxu0 0.0
  %4981 = vmatpush1.msra.mxu0 0.0
  %4982 = vmatprep.subr.mxu0 0.0
  %4983 = vmatpush1.msra.mxu0 0.0
  %4984 = vmatprep.subr.mxu0 0.0
  %4985 = vmatpush1.msra.mxu0 0.0
  %4986 = vmatprep.subr.mxu0 0.0
  %4987 = vmatpush1.msra.mxu0 0.0
  %4988 = vmatprep.subr.mxu0 0.0
  %4989 = vmatpush1.msra.mxu0 0.0
  %4990 = vmatprep.subr.mxu0 0.0
  %4991 = vmatpush1.msra.mxu0 0.0
  %4992 = vmatprep.subr.mxu0 0.0
  %4993 = vmatpush1.msra.mxu0 0.0
  %4994 = vmatprep.subr.mxu0 0.0
  %4995 = vmatpush1.msra.mxu0 0.0
  %4996 = vmatprep.subr.mxu0 0.0
  %4997 = vmatpush1.msra.mxu0 0.0
  %4998 = vmatprep.subr.mxu0 0.0
  %4999 = vmatpush1.msra.mxu0 0.0
  %5000 = vmatprep.subr.mxu0 0.0
  %5001 = vmatpush1.msra.mxu0 0.0
  %5002 = vmatprep.subr.mxu0 0.0
  %5003 = vmatpush1.msra.mxu0 0.0
  %5004 = vmatprep.subr.mxu0 0.0
  %5005 = vmatpush1.msra.mxu0 %v214
  %5006 = vmatprep.subr.mxu0 0.0
  %5007 = vmatpush1.msra.mxu0 %v213
  %5008 = vmatprep.subr.mxu0 0.0
  %5009 = vmatpush2.msra.mxu0 0.0
  %5010 = vmatprep.subr.mxu0 0.0
  %5011 = vmatpush2.msra.mxu0 0.0
  %5012 = vmatprep.subr.mxu0 0.0
  %5013 = vmatpush2.msra.mxu0 0.0
  %5014 = vmatprep.subr.mxu0 0.0
  %5015 = vmatpush2.msra.mxu0 0.0
  %5016 = vmatprep.subr.mxu0 0.0
  %5017 = vmatpush2.msra.mxu0 0.0
  %5018 = vmatprep.subr.mxu0 0.0
  %5019 = vmatpush2.msra.mxu0 0.0
  %5020 = vmatprep.subr.mxu0 0.0
  %5021 = vmatpush2.msra.mxu0 0.0
  %5022 = vmatprep.subr.mxu0 0.0
  %5023 = vmatpush2.msra.mxu0 0.0
  %5024 = vmatprep.subr.mxu0 0.0
  %5025 = vmatpush2.msra.mxu0 0.0
  %5026 = vmatprep.subr.mxu0 0.0
  %5027 = vmatpush2.msra.mxu0 0.0
  %5028 = vmatprep.subr.mxu0 0.0
  %5029 = vmatpush2.msra.mxu0 0.0
  %5030 = vmatprep.subr.mxu0 0.0
  %5031 = vmatpush2.msra.mxu0 0.0
  %5032 = vmatprep.subr.mxu0 0.0
  %5033 = vmatpush2.msra.mxu0 0.0
  %5034 = vmatprep.subr.mxu0 0.0
  %5035 = vmatpush2.msra.mxu0 0.0
  %5036 = vmatprep.subr.mxu0 0.0
  %5037 = vmatpush2.msra.mxu0 0.0
  %5038 = vmatprep.subr.mxu0 0.0
  %5039 = vmatpush2.msra.mxu0 0.0
  %5040 = vmatprep.mubr.f32.mxu0 0.0
  %5041 = vmatmul.mubr.f32.gmra.mxu0 %v4974
  %v5042 = vpop.f32.mrf.mxu0
  %v5043 = vadd.f32 0.0, %v5042
  %v5044 = vpop.f32.mrf.mxu0
  %5045 = vdwg.mxu0
  %v5047 = vsel %vm227, %v77, 0
  %5049 = vmatprep.subr.mxu0 0.0
  %5050 = vmatpush1.msra.mxu0 0.0
  %5051 = vmatprep.subr.mxu0 0.0
  %5052 = vmatpush1.msra.mxu0 0.0
  %5053 = vmatprep.subr.mxu0 0.0
  %5054 = vmatpush1.msra.mxu0 0.0
  %5055 = vmatprep.subr.mxu0 0.0
  %5056 = vmatpush1.msra.mxu0 0.0
  %5057 = vmatprep.subr.mxu0 0.0
  %5058 = vmatpush1.msra.mxu0 0.0
  %5059 = vmatprep.subr.mxu0 0.0
  %5060 = vmatpush1.msra.mxu0 0.0
  %5061 = vmatprep.subr.mxu0 0.0
  %5062 = vmatpush1.msra.mxu0 0.0
  %5063 = vmatprep.subr.mxu0 0.0
  %5064 = vmatpush1.msra.mxu0 0.0
  %5065 = vmatprep.subr.mxu0 0.0
  %5066 = vmatpush1.msra.mxu0 0.0
  %5067 = vmatprep.subr.mxu0 0.0
  %5068 = vmatpush1.msra.mxu0 0.0
  %5069 = vmatprep.subr.mxu0 0.0
  %5070 = vmatpush1.msra.mxu0 0.0
  %5071 = vmatprep.subr.mxu0 0.0
  %5072 = vmatpush1.msra.mxu0 0.0
  %5073 = vmatprep.subr.mxu0 0.0
  %5074 = vmatpush1.msra.mxu0 0.0
  %5075 = vmatprep.subr.mxu0 0.0
  %5076 = vmatpush1.msra.mxu0 0.0
  %5077 = vmatprep.subr.mxu0 0.0
  %5078 = vmatpush1.msra.mxu0 %v216
  %5079 = vmatprep.subr.mxu0 0.0
  %5080 = vmatpush1.msra.mxu0 %v215
  %5081 = vmatprep.subr.mxu0 0.0
  %5082 = vmatpush2.msra.mxu0 0.0
  %5083 = vmatprep.subr.mxu0 0.0
  %5084 = vmatpush2.msra.mxu0 0.0
  %5085 = vmatprep.subr.mxu0 0.0
  %5086 = vmatpush2.msra.mxu0 0.0
  %5087 = vmatprep.subr.mxu0 0.0
  %5088 = vmatpush2.msra.mxu0 0.0
  %5089 = vmatprep.subr.mxu0 0.0
  %5090 = vmatpush2.msra.mxu0 0.0
  %5091 = vmatprep.subr.mxu0 0.0
  %5092 = vmatpush2.msra.mxu0 0.0
  %5093 = vmatprep.subr.mxu0 0.0
  %5094 = vmatpush2.msra.mxu0 0.0
  %5095 = vmatprep.subr.mxu0 0.0
  %5096 = vmatpush2.msra.mxu0 0.0
  %5097 = vmatprep.subr.mxu0 0.0
  %5098 = vmatpush2.msra.mxu0 0.0
  %5099 = vmatprep.subr.mxu0 0.0
  %5100 = vmatpush2.msra.mxu0 0.0
  %5101 = vmatprep.subr.mxu0 0.0
  %5102 = vmatpush2.msra.mxu0 0.0
  %5103 = vmatprep.subr.mxu0 0.0
  %5104 = vmatpush2.msra.mxu0 0.0
  %5105 = vmatprep.subr.mxu0 0.0
  %5106 = vmatpush2.msra.mxu0 0.0
  %5107 = vmatprep.subr.mxu0 0.0
  %5108 = vmatpush2.msra.mxu0 0.0
  %5109 = vmatprep.subr.mxu0 0.0
  %5110 = vmatpush2.msra.mxu0 0.0
  %5111 = vmatprep.subr.mxu0 0.0
  %5112 = vmatpush2.msra.mxu0 0.0
  %5113 = vmatprep.mubr.f32.mxu0 0.0
  %5114 = vmatmul.mubr.f32.gmra.mxu0 %v5047
  %v5115 = vpop.f32.mrf.mxu0
  %v5116 = vadd.f32 0.0, %v5115
  %v5117 = vpop.f32.mrf.mxu0
  %5118 = vdwg.mxu0
  %v5120 = vsel %vm227, %v78, 0
  %5122 = vmatprep.subr.mxu0 0.0
  %5123 = vmatpush1.msra.mxu0 0.0
  %5124 = vmatprep.subr.mxu0 0.0
  %5125 = vmatpush1.msra.mxu0 0.0
  %5126 = vmatprep.subr.mxu0 0.0
  %5127 = vmatpush1.msra.mxu0 0.0
  %5128 = vmatprep.subr.mxu0 0.0
  %5129 = vmatpush1.msra.mxu0 0.0
  %5130 = vmatprep.subr.mxu0 0.0
  %5131 = vmatpush1.msra.mxu0 0.0
  %5132 = vmatprep.subr.mxu0 0.0
  %5133 = vmatpush1.msra.mxu0 0.0
  %5134 = vmatprep.subr.mxu0 0.0
  %5135 = vmatpush1.msra.mxu0 0.0
  %5136 = vmatprep.subr.mxu0 0.0
  %5137 = vmatpush1.msra.mxu0 0.0
  %5138 = vmatprep.subr.mxu0 0.0
  %5139 = vmatpush1.msra.mxu0 0.0
  %5140 = vmatprep.subr.mxu0 0.0
  %5141 = vmatpush1.msra.mxu0 0.0
  %5142 = vmatprep.subr.mxu0 0.0
  %5143 = vmatpush1.msra.mxu0 0.0
  %5144 = vmatprep.subr.mxu0 0.0
  %5145 = vmatpush1.msra.mxu0 0.0
  %5146 = vmatprep.subr.mxu0 0.0
  %5147 = vmatpush1.msra.mxu0 0.0
  %5148 = vmatprep.subr.mxu0 0.0
  %5149 = vmatpush1.msra.mxu0 0.0
  %5150 = vmatprep.subr.mxu0 0.0
  %5151 = vmatpush1.msra.mxu0 %v218
  %5152 = vmatprep.subr.mxu0 0.0
  %5153 = vmatpush1.msra.mxu0 %v217
  %5154 = vmatprep.subr.mxu0 0.0
  %5155 = vmatpush2.msra.mxu0 0.0
  %5156 = vmatprep.subr.mxu0 0.0
  %5157 = vmatpush2.msra.mxu0 0.0
  %5158 = vmatprep.subr.mxu0 0.0
  %5159 = vmatpush2.msra.mxu0 0.0
  %5160 = vmatprep.subr.mxu0 0.0
  %5161 = vmatpush2.msra.mxu0 0.0
  %5162 = vmatprep.subr.mxu0 0.0
  %5163 = vmatpush2.msra.mxu0 0.0
  %5164 = vmatprep.subr.mxu0 0.0
  %5165 = vmatpush2.msra.mxu0 0.0
  %5166 = vmatprep.subr.mxu0 0.0
  %5167 = vmatpush2.msra.mxu0 0.0
  %5168 = vmatprep.subr.mxu0 0.0
  %5169 = vmatpush2.msra.mxu0 0.0
  %5170 = vmatprep.subr.mxu0 0.0
  %5171 = vmatpush2.msra.mxu0 0.0
  %5172 = vmatprep.subr.mxu0 0.0
  %5173 = vmatpush2.msra.mxu0 0.0
  %5174 = vmatprep.subr.mxu0 0.0
  %5175 = vmatpush2.msra.mxu0 0.0
  %5176 = vmatprep.subr.mxu0 0.0
  %5177 = vmatpush2.msra.mxu0 0.0
  %5178 = vmatprep.subr.mxu0 0.0
  %5179 = vmatpush2.msra.mxu0 0.0
  %5180 = vmatprep.subr.mxu0 0.0
  %5181 = vmatpush2.msra.mxu0 0.0
  %5182 = vmatprep.subr.mxu0 0.0
  %5183 = vmatpush2.msra.mxu0 0.0
  %5184 = vmatprep.subr.mxu0 0.0
  %5185 = vmatpush2.msra.mxu0 0.0
  %5186 = vmatprep.mubr.f32.mxu0 0.0
  %5187 = vmatmul.mubr.f32.gmra.mxu0 %v5120
  %v5188 = vpop.f32.mrf.mxu0
  %v5189 = vadd.f32 0.0, %v5188
  %v5190 = vpop.f32.mrf.mxu0
  %5191 = vdwg.mxu0
  %v5193 = vsel %vm227, %v79, 0
  %5195 = vmatprep.subr.mxu0 0.0
  %5196 = vmatpush1.msra.mxu0 0.0
  %5197 = vmatprep.subr.mxu0 0.0
  %5198 = vmatpush1.msra.mxu0 0.0
  %5199 = vmatprep.subr.mxu0 0.0
  %5200 = vmatpush1.msra.mxu0 0.0
  %5201 = vmatprep.subr.mxu0 0.0
  %5202 = vmatpush1.msra.mxu0 0.0
  %5203 = vmatprep.subr.mxu0 0.0
  %5204 = vmatpush1.msra.mxu0 0.0
  %5205 = vmatprep.subr.mxu0 0.0
  %5206 = vmatpush1.msra.mxu0 0.0
  %5207 = vmatprep.subr.mxu0 0.0
  %5208 = vmatpush1.msra.mxu0 0.0
  %5209 = vmatprep.subr.mxu0 0.0
  %5210 = vmatpush1.msra.mxu0 0.0
  %5211 = vmatprep.subr.mxu0 0.0
  %5212 = vmatpush1.msra.mxu0 0.0
  %5213 = vmatprep.subr.mxu0 0.0
  %5214 = vmatpush1.msra.mxu0 0.0
  %5215 = vmatprep.subr.mxu0 0.0
  %5216 = vmatpush1.msra.mxu0 0.0
  %5217 = vmatprep.subr.mxu0 0.0
  %5218 = vmatpush1.msra.mxu0 0.0
  %5219 = vmatprep.subr.mxu0 0.0
  %5220 = vmatpush1.msra.mxu0 0.0
  %5221 = vmatprep.subr.mxu0 0.0
  %5222 = vmatpush1.msra.mxu0 0.0
  %5223 = vmatprep.subr.mxu0 0.0
  %5224 = vmatpush1.msra.mxu0 %v220
  %5225 = vmatprep.subr.mxu0 0.0
  %5226 = vmatpush1.msra.mxu0 %v219
  %5227 = vmatprep.subr.mxu0 0.0
  %5228 = vmatpush2.msra.mxu0 0.0
  %5229 = vmatprep.subr.mxu0 0.0
  %5230 = vmatpush2.msra.mxu0 0.0
  %5231 = vmatprep.subr.mxu0 0.0
  %5232 = vmatpush2.msra.mxu0 0.0
  %5233 = vmatprep.subr.mxu0 0.0
  %5234 = vmatpush2.msra.mxu0 0.0
  %5235 = vmatprep.subr.mxu0 0.0
  %5236 = vmatpush2.msra.mxu0 0.0
  %5237 = vmatprep.subr.mxu0 0.0
  %5238 = vmatpush2.msra.mxu0 0.0
  %5239 = vmatprep.subr.mxu0 0.0
  %5240 = vmatpush2.msra.mxu0 0.0
  %5241 = vmatprep.subr.mxu0 0.0
  %5242 = vmatpush2.msra.mxu0 0.0
  %5243 = vmatprep.subr.mxu0 0.0
  %5244 = vmatpush2.msra.mxu0 0.0
  %5245 = vmatprep.subr.mxu0 0.0
  %5246 = vmatpush2.msra.mxu0 0.0
  %5247 = vmatprep.subr.mxu0 0.0
  %5248 = vmatpush2.msra.mxu0 0.0
  %5249 = vmatprep.subr.mxu0 0.0
  %5250 = vmatpush2.msra.mxu0 0.0
  %5251 = vmatprep.subr.mxu0 0.0
  %5252 = vmatpush2.msra.mxu0 0.0
  %5253 = vmatprep.subr.mxu0 0.0
  %5254 = vmatpush2.msra.mxu0 0.0
  %5255 = vmatprep.subr.mxu0 0.0
  %5256 = vmatpush2.msra.mxu0 0.0
  %5257 = vmatprep.subr.mxu0 0.0
  %5258 = vmatpush2.msra.mxu0 0.0
  %5259 = vmatprep.mubr.f32.mxu0 0.0
  %5260 = vmatmul.mubr.f32.gmra.mxu0 %v5193
  %v5261 = vpop.f32.mrf.mxu0
  %v5262 = vadd.f32 0.0, %v5261
  %v5263 = vpop.f32.mrf.mxu0
  %5264 = vdwg.mxu0
  %v5266 = vsel %vm227, %v80, 0
  %5268 = vmatprep.subr.mxu0 0.0
  %5269 = vmatpush1.msra.mxu0 0.0
  %5270 = vmatprep.subr.mxu0 0.0
  %5271 = vmatpush1.msra.mxu0 0.0
  %5272 = vmatprep.subr.mxu0 0.0
  %5273 = vmatpush1.msra.mxu0 0.0
  %5274 = vmatprep.subr.mxu0 0.0
  %5275 = vmatpush1.msra.mxu0 0.0
  %5276 = vmatprep.subr.mxu0 0.0
  %5277 = vmatpush1.msra.mxu0 0.0
  %5278 = vmatprep.subr.mxu0 0.0
  %5279 = vmatpush1.msra.mxu0 0.0
  %5280 = vmatprep.subr.mxu0 0.0
  %5281 = vmatpush1.msra.mxu0 0.0
  %5282 = vmatprep.subr.mxu0 0.0
  %5283 = vmatpush1.msra.mxu0 0.0
  %5284 = vmatprep.subr.mxu0 0.0
  %5285 = vmatpush1.msra.mxu0 0.0
  %5286 = vmatprep.subr.mxu0 0.0
  %5287 = vmatpush1.msra.mxu0 0.0
  %5288 = vmatprep.subr.mxu0 0.0
  %5289 = vmatpush1.msra.mxu0 0.0
  %5290 = vmatprep.subr.mxu0 0.0
  %5291 = vmatpush1.msra.mxu0 0.0
  %5292 = vmatprep.subr.mxu0 0.0
  %5293 = vmatpush1.msra.mxu0 0.0
  %5294 = vmatprep.subr.mxu0 0.0
  %5295 = vmatpush1.msra.mxu0 0.0
  %5296 = vmatprep.subr.mxu0 0.0
  %5297 = vmatpush1.msra.mxu0 %v222
  %5298 = vmatprep.subr.mxu0 0.0
  %5299 = vmatpush1.msra.mxu0 %v221
  %5300 = vmatprep.subr.mxu0 0.0
  %5301 = vmatpush2.msra.mxu0 0.0
  %5302 = vmatprep.subr.mxu0 0.0
  %5303 = vmatpush2.msra.mxu0 0.0
  %5304 = vmatprep.subr.mxu0 0.0
  %5305 = vmatpush2.msra.mxu0 0.0
  %5306 = vmatprep.subr.mxu0 0.0
  %5307 = vmatpush2.msra.mxu0 0.0
  %5308 = vmatprep.subr.mxu0 0.0
  %5309 = vmatpush2.msra.mxu0 0.0
  %5310 = vmatprep.subr.mxu0 0.0
  %5311 = vmatpush2.msra.mxu0 0.0
  %5312 = vmatprep.subr.mxu0 0.0
  %5313 = vmatpush2.msra.mxu0 0.0
  %5314 = vmatprep.subr.mxu0 0.0
  %5315 = vmatpush2.msra.mxu0 0.0
  %5316 = vmatprep.subr.mxu0 0.0
  %5317 = vmatpush2.msra.mxu0 0.0
  %5318 = vmatprep.subr.mxu0 0.0
  %5319 = vmatpush2.msra.mxu0 0.0
  %5320 = vmatprep.subr.mxu0 0.0
  %5321 = vmatpush2.msra.mxu0 0.0
  %5322 = vmatprep.subr.mxu0 0.0
  %5323 = vmatpush2.msra.mxu0 0.0
  %5324 = vmatprep.subr.mxu0 0.0
  %5325 = vmatpush2.msra.mxu0 0.0
  %5326 = vmatprep.subr.mxu0 0.0
  %5327 = vmatpush2.msra.mxu0 0.0
  %5328 = vmatprep.subr.mxu0 0.0
  %5329 = vmatpush2.msra.mxu0 0.0
  %5330 = vmatprep.subr.mxu0 0.0
  %5331 = vmatpush2.msra.mxu0 0.0
  %5332 = vmatprep.mubr.f32.mxu0 0.0
  %5333 = vmatmul.mubr.f32.gmra.mxu0 %v5266
  %v5334 = vpop.f32.mrf.mxu0
  %v5335 = vadd.f32 0.0, %v5334
  %v5336 = vpop.f32.mrf.mxu0
  %5337 = vdwg.mxu0
  %v5339 = vsel %vm227, %v81, 0
  %5341 = vmatprep.subr.mxu0 0.0
  %5342 = vmatpush1.msra.mxu0 0.0
  %5343 = vmatprep.subr.mxu0 0.0
  %5344 = vmatpush1.msra.mxu0 0.0
  %5345 = vmatprep.subr.mxu0 0.0
  %5346 = vmatpush1.msra.mxu0 0.0
  %5347 = vmatprep.subr.mxu0 0.0
  %5348 = vmatpush1.msra.mxu0 0.0
  %5349 = vmatprep.subr.mxu0 0.0
  %5350 = vmatpush1.msra.mxu0 0.0
  %5351 = vmatprep.subr.mxu0 0.0
  %5352 = vmatpush1.msra.mxu0 0.0
  %5353 = vmatprep.subr.mxu0 0.0
  %5354 = vmatpush1.msra.mxu0 0.0
  %5355 = vmatprep.subr.mxu0 0.0
  %5356 = vmatpush1.msra.mxu0 0.0
  %5357 = vmatprep.subr.mxu0 0.0
  %5358 = vmatpush1.msra.mxu0 0.0
  %5359 = vmatprep.subr.mxu0 0.0
  %5360 = vmatpush1.msra.mxu0 0.0
  %5361 = vmatprep.subr.mxu0 0.0
  %5362 = vmatpush1.msra.mxu0 0.0
  %5363 = vmatprep.subr.mxu0 0.0
  %5364 = vmatpush1.msra.mxu0 0.0
  %5365 = vmatprep.subr.mxu0 0.0
  %5366 = vmatpush1.msra.mxu0 0.0
  %5367 = vmatprep.subr.mxu0 0.0
  %5368 = vmatpush1.msra.mxu0 0.0
  %5369 = vmatprep.subr.mxu0 0.0
  %5370 = vmatpush1.msra.mxu0 %v224
  %5371 = vmatprep.subr.mxu0 0.0
  %5372 = vmatpush1.msra.mxu0 %v223
  %5373 = vmatprep.subr.mxu0 0.0
  %5374 = vmatpush2.msra.mxu0 0.0
  %5375 = vmatprep.subr.mxu0 0.0
  %5376 = vmatpush2.msra.mxu0 0.0
  %5377 = vmatprep.subr.mxu0 0.0
  %5378 = vmatpush2.msra.mxu0 0.0
  %5379 = vmatprep.subr.mxu0 0.0
  %5380 = vmatpush2.msra.mxu0 0.0
  %5381 = vmatprep.subr.mxu0 0.0
  %5382 = vmatpush2.msra.mxu0 0.0
  %5383 = vmatprep.subr.mxu0 0.0
  %5384 = vmatpush2.msra.mxu0 0.0
  %5385 = vmatprep.subr.mxu0 0.0
  %5386 = vmatpush2.msra.mxu0 0.0
  %5387 = vmatprep.subr.mxu0 0.0
  %5388 = vmatpush2.msra.mxu0 0.0
  %5389 = vmatprep.subr.mxu0 0.0
  %5390 = vmatpush2.msra.mxu0 0.0
  %5391 = vmatprep.subr.mxu0 0.0
  %5392 = vmatpush2.msra.mxu0 0.0
  %5393 = vmatprep.subr.mxu0 0.0
  %5394 = vmatpush2.msra.mxu0 0.0
  %5395 = vmatprep.subr.mxu0 0.0
  %5396 = vmatpush2.msra.mxu0 0.0
  %5397 = vmatprep.subr.mxu0 0.0
  %5398 = vmatpush2.msra.mxu0 0.0
  %5399 = vmatprep.subr.mxu0 0.0
  %5400 = vmatpush2.msra.mxu0 0.0
  %5401 = vmatprep.subr.mxu0 0.0
  %5402 = vmatpush2.msra.mxu0 0.0
  %5403 = vmatprep.subr.mxu0 0.0
  %5404 = vmatpush2.msra.mxu0 0.0
  %5405 = vmatprep.mubr.f32.mxu0 0.0
  %5406 = vmatmul.mubr.f32.gmra.mxu0 %v5339
  %v5407 = vpop.f32.mrf.mxu0
  %v5408 = vadd.f32 0.0, %v5407
  %v5409 = vpop.f32.mrf.mxu0
  %5410 = vdwg.mxu0
  %v5412 = vsel %vm227, %v82, 0
  %5414 = vmatprep.subr.mxu0 0.0
  %5415 = vmatpush1.msra.mxu0 0.0
  %5416 = vmatprep.subr.mxu0 0.0
  %5417 = vmatpush1.msra.mxu0 0.0
  %5418 = vmatprep.subr.mxu0 0.0
  %5419 = vmatpush1.msra.mxu0 0.0
  %5420 = vmatprep.subr.mxu0 0.0
  %5421 = vmatpush1.msra.mxu0 0.0
  %5422 = vmatprep.subr.mxu0 0.0
  %5423 = vmatpush1.msra.mxu0 0.0
  %5424 = vmatprep.subr.mxu0 0.0
  %5425 = vmatpush1.msra.mxu0 0.0
  %5426 = vmatprep.subr.mxu0 0.0
  %5427 = vmatpush1.msra.mxu0 0.0
  %5428 = vmatprep.subr.mxu0 0.0
  %5429 = vmatpush1.msra.mxu0 0.0
  %5430 = vmatprep.subr.mxu0 0.0
  %5431 = vmatpush1.msra.mxu0 0.0
  %5432 = vmatprep.subr.mxu0 0.0
  %5433 = vmatpush1.msra.mxu0 0.0
  %5434 = vmatprep.subr.mxu0 0.0
  %5435 = vmatpush1.msra.mxu0 0.0
  %5436 = vmatprep.subr.mxu0 0.0
  %5437 = vmatpush1.msra.mxu0 0.0
  %5438 = vmatprep.subr.mxu0 0.0
  %5439 = vmatpush1.msra.mxu0 0.0
  %5440 = vmatprep.subr.mxu0 0.0
  %5441 = vmatpush1.msra.mxu0 0.0
  %5442 = vmatprep.subr.mxu0 0.0
  %5443 = vmatpush1.msra.mxu0 %v226
  %5444 = vmatprep.subr.mxu0 0.0
  %5445 = vmatpush1.msra.mxu0 %v225
  %5446 = vmatprep.subr.mxu0 0.0
  %5447 = vmatpush2.msra.mxu0 0.0
  %5448 = vmatprep.subr.mxu0 0.0
  %5449 = vmatpush2.msra.mxu0 0.0
  %5450 = vmatprep.subr.mxu0 0.0
  %5451 = vmatpush2.msra.mxu0 0.0
  %5452 = vmatprep.subr.mxu0 0.0
  %5453 = vmatpush2.msra.mxu0 0.0
  %5454 = vmatprep.subr.mxu0 0.0
  %5455 = vmatpush2.msra.mxu0 0.0
  %5456 = vmatprep.subr.mxu0 0.0
  %5457 = vmatpush2.msra.mxu0 0.0
  %5458 = vmatprep.subr.mxu0 0.0
  %5459 = vmatpush2.msra.mxu0 0.0
  %5460 = vmatprep.subr.mxu0 0.0
  %5461 = vmatpush2.msra.mxu0 0.0
  %5462 = vmatprep.subr.mxu0 0.0
  %5463 = vmatpush2.msra.mxu0 0.0
  %5464 = vmatprep.subr.mxu0 0.0
  %5465 = vmatpush2.msra.mxu0 0.0
  %5466 = vmatprep.subr.mxu0 0.0
  %5467 = vmatpush2.msra.mxu0 0.0
  %5468 = vmatprep.subr.mxu0 0.0
  %5469 = vmatpush2.msra.mxu0 0.0
  %5470 = vmatprep.subr.mxu0 0.0
  %5471 = vmatpush2.msra.mxu0 0.0
  %5472 = vmatprep.subr.mxu0 0.0
  %5473 = vmatpush2.msra.mxu0 0.0
  %5474 = vmatprep.subr.mxu0 0.0
  %5475 = vmatpush2.msra.mxu0 0.0
  %5476 = vmatprep.subr.mxu0 0.0
  %5477 = vmatpush2.msra.mxu0 0.0
  %5478 = vmatprep.mubr.f32.mxu0 0.0
  %5479 = vmatmul.mubr.f32.gmra.mxu0 %v5412
  %v5480 = vpop.f32.mrf.mxu0
  %v5481 = vadd.f32 0.0, %v5480
  %v5482 = vpop.f32.mrf.mxu0
  %5483 = vdwg.mxu0
  %vm5484 = vcmask 123904
  %5485 = vst.msk [vmem:[%s2] sm:$0x3] %vm5484, %v298
  %5486 = vst.msk [vmem:[%s2 + $0x2] sm:$0x3] %vm5484, %v371
  %5487 = vst.msk [vmem:[%s2 + $0x4] sm:$0x3] %vm5484, %v444
  %5488 = vst.msk [vmem:[%s2 + $0x6] sm:$0x3] %vm5484, %v517
  %5489 = vst.msk [vmem:[%s2 + $0x8] sm:$0x3] %vm5484, %v590
  %5490 = vst.msk [vmem:[%s2 + $0xa] sm:$0x3] %vm5484, %v663
  %5491 = vst.msk [vmem:[%s2 + $0xc] sm:$0x3] %vm5484, %v736
  %5492 = vst.msk [vmem:[%s2 + $0xe] sm:$0x3] %vm5484, %v809
  %5493 = vst.msk [vmem:[%s2 + $0x10] sm:$0x3] %vm5484, %v882
  %5494 = vst.msk [vmem:[%s2 + $0x12] sm:$0x3] %vm5484, %v955
  %5495 = vst.msk [vmem:[%s2 + $0x14] sm:$0x3] %vm5484, %v1028
  %5496 = vst.msk [vmem:[%s2 + $0x16] sm:$0x3] %vm5484, %v1101
  %5497 = vst.msk [vmem:[%s2 + $0x18] sm:$0x3] %vm5484, %v1174
  %5498 = vst.msk [vmem:[%s2 + $0x1a] sm:$0x3] %vm5484, %v1247
  %5499 = vst.msk [vmem:[%s2 + $0x1c] sm:$0x3] %vm5484, %v1320
  %5500 = vst.msk [vmem:[%s2 + $0x1e] sm:$0x3] %vm5484, %v1393
  %5501 = vst.msk [vmem:[%s2 + $0x20] sm:$0x3] %vm5484, %v1466
  %5502 = vst.msk [vmem:[%s2 + $0x22] sm:$0x3] %vm5484, %v1539
  %5503 = vst.msk [vmem:[%s2 + $0x24] sm:$0x3] %vm5484, %v1612
  %5504 = vst.msk [vmem:[%s2 + $0x26] sm:$0x3] %vm5484, %v1685
  %5505 = vst.msk [vmem:[%s2 + $0x28] sm:$0x3] %vm5484, %v1758
  %5506 = vst.msk [vmem:[%s2 + $0x2a] sm:$0x3] %vm5484, %v1831
  %5507 = vst.msk [vmem:[%s2 + $0x2c] sm:$0x3] %vm5484, %v1904
  %5508 = vst.msk [vmem:[%s2 + $0x2e] sm:$0x3] %vm5484, %v1977
  %5509 = vst.msk [vmem:[%s2 + $0x30] sm:$0x3] %vm5484, %v2050
  %5510 = vst.msk [vmem:[%s2 + $0x32] sm:$0x3] %vm5484, %v2123
  %5511 = vst.msk [vmem:[%s2 + $0x34] sm:$0x3] %vm5484, %v2196
  %5512 = vst.msk [vmem:[%s2 + $0x36] sm:$0x3] %vm5484, %v2269
  %5513 = vst.msk [vmem:[%s2 + $0x38] sm:$0x3] %vm5484, %v2342
  %5514 = vst.msk [vmem:[%s2 + $0x3a] sm:$0x3] %vm5484, %v2415
  %5515 = vst.msk [vmem:[%s2 + $0x3c] sm:$0x3] %vm5484, %v2488
  %5516 = vst.msk [vmem:[%s2 + $0x3e] sm:$0x3] %vm5484, %v2561
  %5517 = vst.msk [vmem:[%s2 + $0x40] sm:$0x3] %vm5484, %v2634
  %5518 = vst.msk [vmem:[%s2 + $0x42] sm:$0x3] %vm5484, %v2707
  %5519 = vst.msk [vmem:[%s2 + $0x44] sm:$0x3] %vm5484, %v2780
  %5520 = vst.msk [vmem:[%s2 + $0x46] sm:$0x3] %vm5484, %v2853
  %5521 = vst.msk [vmem:[%s2 + $0x48] sm:$0x3] %vm5484, %v2926
  %5522 = vst.msk [vmem:[%s2 + $0x4a] sm:$0x3] %vm5484, %v2999
  %5523 = vst.msk [vmem:[%s2 + $0x4c] sm:$0x3] %vm5484, %v3072
  %5524 = vst.msk [vmem:[%s2 + $0x4e] sm:$0x3] %vm5484, %v3145
  %5525 = vst.msk [vmem:[%s2 + $0x50] sm:$0x3] %vm5484, %v3218
  %5526 = vst.msk [vmem:[%s2 + $0x52] sm:$0x3] %vm5484, %v3291
  %5527 = vst.msk [vmem:[%s2 + $0x54] sm:$0x3] %vm5484, %v3364
  %5528 = vst.msk [vmem:[%s2 + $0x56] sm:$0x3] %vm5484, %v3437
  %5529 = vst.msk [vmem:[%s2 + $0x58] sm:$0x3] %vm5484, %v3510
  %5530 = vst.msk [vmem:[%s2 + $0x5a] sm:$0x3] %vm5484, %v3583
  %5531 = vst.msk [vmem:[%s2 + $0x5c] sm:$0x3] %vm5484, %v3656
  %5532 = vst.msk [vmem:[%s2 + $0x5e] sm:$0x3] %vm5484, %v3729
  %5533 = vst.msk [vmem:[%s2 + $0x60] sm:$0x3] %vm5484, %v3802
  %5534 = vst.msk [vmem:[%s2 + $0x62] sm:$0x3] %vm5484, %v3875
  %5535 = vst.msk [vmem:[%s2 + $0x64] sm:$0x3] %vm5484, %v3948
  %5536 = vst.msk [vmem:[%s2 + $0x66] sm:$0x3] %vm5484, %v4021
  %5537 = vst.msk [vmem:[%s2 + $0x68] sm:$0x3] %vm5484, %v4094
  %5538 = vst.msk [vmem:[%s2 + $0x6a] sm:$0x3] %vm5484, %v4167
  %5539 = vst.msk [vmem:[%s2 + $0x6c] sm:$0x3] %vm5484, %v4240
  %5540 = vst.msk [vmem:[%s2 + $0x6e] sm:$0x3] %vm5484, %v4313
  %5541 = vst.msk [vmem:[%s2 + $0x70] sm:$0x3] %vm5484, %v4386
  %5542 = vst.msk [vmem:[%s2 + $0x72] sm:$0x3] %vm5484, %v4459
  %5543 = vst.msk [vmem:[%s2 + $0x74] sm:$0x3] %vm5484, %v4532
  %5544 = vst.msk [vmem:[%s2 + $0x76] sm:$0x3] %vm5484, %v4605
  %5545 = vst.msk [vmem:[%s2 + $0x78] sm:$0x3] %vm5484, %v4678
  %5546 = vst.msk [vmem:[%s2 + $0x7a] sm:$0x3] %vm5484, %v4751
  %5547 = vst.msk [vmem:[%s2 + $0x7c] sm:$0x3] %vm5484, %v4824
  %5548 = vst.msk [vmem:[%s2 + $0x7e] sm:$0x3] %vm5484, %v4897
  %5549 = vst.msk [vmem:[%s2 + $0x80] sm:$0x3] %vm5484, %v4970
  %5550 = vst.msk [vmem:[%s2 + $0x82] sm:$0x3] %vm5484, %v5043
  %5551 = vst.msk [vmem:[%s2 + $0x84] sm:$0x3] %vm5484, %v5116
  %5552 = vst.msk [vmem:[%s2 + $0x86] sm:$0x3] %vm5484, %v5189
  %5553 = vst.msk [vmem:[%s2 + $0x88] sm:$0x3] %vm5484, %v5262
  %5554 = vst.msk [vmem:[%s2 + $0x8a] sm:$0x3] %vm5484, %v5335
  %5555 = vst.msk [vmem:[%s2 + $0x8c] sm:$0x3] %vm5484, %v5408
  %5556 = vst.msk [vmem:[%s2 + $0x8e] sm:$0x3] %vm5484, %v5481
  // Predicated region
  $region10: #{tpu_custom_call.1} parent=0 // pred_check
    _
  $region11: #{tpu_custom_call.1} parent=0 // pred_check_branch
    %5558 = sbr.rel (0) target = $region13
  $region12: #{tpu_custom_call.1} parent=0 // pred_region
    _
  $region13: #{tpu_custom_call.1} parent=0 // pred_fallthru
    _
  // Predicated region
  $region14: #{tpu_custom_call.1} parent=0 // pred_check
    _
  $region15: #{tpu_custom_call.1} parent=0 // pred_check_branch
    %5560 = sbr.rel (0) target = $region17
  $region16: #{tpu_custom_call.1} parent=0 // pred_region
    _
  $region17: #{tpu_custom_call.1} parent=0 // pred_fallthru
    _

</llo_original>
